<compile_context>
chip_gen: v7x
topology: tpu7x:2x2x1
jax: 0.10.0
libtpu: 0.0.40
codegen_flags: <defaults>
</compile_context>

<pallas_src>
import jax
import jax.numpy as jnp
from jax.experimental import pallas as pl
from jax.experimental.pallas import tpu as pltpu


def lstm_mlp_kernel(x_ref,
                    wih0_ref, whh0_ref, b0_ref,
                    w1cat_ref, b1_ref,
                    aw_ref, ab_ref,
                    f1w_ref, f1b_ref,
                    f2w_ref, f2b_ref,
                    f3w_ref, f3b_ref,
                    out_ref):
    BB, T, IN = x_ref.shape
    H = whh0_ref.shape[0]
    G = 4 * H

    # ---- hoisted, loop-invariant work -------------------------------------
    # Layer-0 input projection for all time steps at once (bias folded in).
    x2d = x_ref[...].reshape(BB * T, IN)
    x_proj = (jnp.dot(x2d, wih0_ref[...], preferred_element_type=jnp.float32)
              + b0_ref[...]).reshape(BB, T, G)                      # (BB, T, 4H)

    whh0 = whh0_ref[...]                                            # (H, 4H)
    w1cat = w1cat_ref[...]                                          # (2H, 4H)
    b1b = jnp.broadcast_to(b1_ref[...], (BB, G))                    # hoisted bias bcast
    aw = aw_ref[...]                                                # (1, H)
    ab = ab_ref[...]                                                # (1, 1)

    h0 = jnp.zeros((BB, H), jnp.float32)
    c0 = jnp.zeros((BB, H), jnp.float32)
    h1 = jnp.zeros((BB, H), jnp.float32)
    c1 = jnp.zeros((BB, H), jnp.float32)

    scores = []
    # ---- fully-unrolled serial recurrence (T static, small) ----------------
    for t in range(T):
        # layer 0: only the recurrent matmul remains per step
        g0 = x_proj[:, t, :] + jnp.dot(h0, whh0,
                                       preferred_element_type=jnp.float32)
        s0 = jax.nn.sigmoid(g0)                     # one full-width EUP launch
        i0, f0, o0 = s0[:, 0:H], s0[:, H:2 * H], s0[:, 3 * H:4 * H]
        gg0 = jnp.tanh(g0[:, 2 * H:3 * H])
        c0 = f0 * c0 + i0 * gg0
        h0 = o0 * jnp.tanh(c0)

        # layer 1: fused [x | h] @ [Wih1; Whh1] -> one MXU issue per step
        hcat = jnp.concatenate([h0, h1], axis=1)                    # (BB, 2H)
        g1 = jnp.dot(hcat, w1cat, preferred_element_type=jnp.float32) + b1b
        s1 = jax.nn.sigmoid(g1)
        i1, f1, o1 = s1[:, 0:H], s1[:, H:2 * H], s1[:, 3 * H:4 * H]
        gg1 = jnp.tanh(g1[:, 2 * H:3 * H])
        c1 = f1 * c1 + i1 * gg1
        h1 = o1 * jnp.tanh(c1)

        # per-step attention score (XLU lane reduce) — no (T,B,H) scratch
        scores.append(jnp.sum(h1 * aw, axis=-1, keepdims=True) + ab)  # (BB, 1)

    # ---- attention softmax over time (only att[T-1] is consumed) ----------
    s = jnp.concatenate(scores, axis=1)                             # (BB, T)
    m = jnp.max(s, axis=1, keepdims=True)
    e = jnp.exp(s - m)
    att_last = e[:, T - 1:T] / jnp.sum(e, axis=1, keepdims=True)    # (BB, 1)

    feat = h1 * att_last                                            # (BB, H)

    # ---- MLP head ----------------------------------------------------------
    z1 = jnp.maximum(
        jnp.dot(feat, f1w_ref[...], preferred_element_type=jnp.float32)
        + f1b_ref[...], 0.0)
    z2 = jnp.maximum(
        jnp.dot(z1, f2w_ref[...], preferred_element_type=jnp.float32)
        + f2b_ref[...], 0.0)
    # Note: OUT=1 output is a masked (sub-lane-width) store; negligible here.
    out_ref[...] = (
        jnp.dot(z2, f3w_ref[...], preferred_element_type=jnp.float32)
        + f3b_ref[...])


def price_prediction_lstm_forward(x, params, *, block_b=None):
    """x: (B, T, input_size) float32 -> (B, output_size)."""
    B, T, IN = x.shape
    H = params["whh0"].shape[0]
    OUT = params["f3w"].shape[1]

    if block_b is None:
        block_b = B
    assert B % block_b == 0, "batch must be divisible by block_b"
    grid = (B // block_b,)

    # One-time weight prep: fuse layer-1 input/recurrent weights (would be
    # precomputed outside the hot path in a real deployment).
    w1cat = jnp.concatenate([params["wih1"], params["whh1"]], axis=0)  # (2H, 4H)

    args = (x,
            params["wih0"], params["whh0"], params["b0"],
            w1cat, params["b1"],
            params["aw"], params["ab"],
            params["f1w"], params["f1b"],
            params["f2w"], params["f2b"],
            params["f3w"], params["f3b"])

    in_specs = [pl.BlockSpec((block_b, T, IN), lambda i: (i, 0, 0))]
    for a in args[1:]:
        in_specs.append(pl.BlockSpec(a.shape, lambda i, nd=a.ndim: (0,) * nd))

    return pl.pallas_call(
        lstm_mlp_kernel,
        out_shape=jax.ShapeDtypeStruct((B, OUT), jnp.float32),
        grid=grid,
        in_specs=in_specs,
        out_specs=pl.BlockSpec((block_b, OUT), lambda i: (i, 0)),
        compiler_params=pltpu.CompilerParams(
            dimension_semantics=("parallel",)),   # batch shard across TCs (v7x)
    )(*args)


def init_params(key, input_size, hidden_size, output_size):
    H = hidden_size
    keys = jax.random.split(key, 16)
    bound = 1.0 / jnp.sqrt(jnp.float32(H))

    def u(kk, shape):
        return jax.random.uniform(kk, shape, jnp.float32, -bound, bound)

    return dict(
        # LSTM layer 0 (weights pre-transposed; b = b_ih + b_hh)
        wih0=u(keys[0], (input_size, 4 * H)),
        whh0=u(keys[1], (H, 4 * H)),
        b0=u(keys[2], (1, 4 * H)) + u(keys[3], (1, 4 * H)),
        # LSTM layer 1
        wih1=u(keys[4], (H, 4 * H)),
        whh1=u(keys[5], (H, 4 * H)),
        b1=u(keys[6], (1, 4 * H)) + u(keys[7], (1, 4 * H)),
        # attention = nn.Linear(H, 1)
        aw=u(keys[8], (1, H)),
        ab=u(keys[9], (1, 1)),
        # fc1 / fc2 / fc3
        f1w=u(keys[10], (H, 128)),
        f1b=u(keys[11], (1, 128)),
        f2w=u(keys[12], (128, 64)),
        f2b=u(keys[13], (1, 64)),
        f3w=u(keys[14], (64, output_size)),
        f3b=u(keys[15], (1, output_size)),
    )


def reference_forward(x, params):
    """Pure-JAX reference mirroring the PyTorch forward (eval mode)."""
    B, T, _ = x.shape
    H = params["whh0"].shape[0]

    def cell(x_in, h, c, wih, whh, b):
        g = x_in @ wih + h @ whh + b
        i = jax.nn.sigmoid(g[:, :H])
        f = jax.nn.sigmoid(g[:, H:2 * H])
        gg = jnp.tanh(g[:, 2 * H:3 * H])
        o = jax.nn.sigmoid(g[:, 3 * H:])
        c = f * c + i * gg
        h = o * jnp.tanh(c)
        return h, c

    h0 = jnp.zeros((B, H)); c0 = jnp.zeros((B, H))
    h1 = jnp.zeros((B, H)); c1 = jnp.zeros((B, H))
    outs = []
    for t in range(T):
        h0, c0 = cell(x[:, t, :], h0, c0, params["wih0"], params["whh0"], params["b0"])
        h1, c1 = cell(h0, h1, c1, params["wih1"], params["whh1"], params["b1"])
        outs.append(h1)
    seq = jnp.stack(outs, axis=1)                                  # (B, T, H)
    scores = seq @ params["aw"].T + params["ab"][0, 0]             # (B, T, 1)
    att = jax.nn.softmax(scores, axis=1)
    feat = (seq * att)[:, -1, :]
    z1 = jnp.maximum(feat @ params["f1w"] + params["f1b"], 0.0)
    z2 = jnp.maximum(z1 @ params["f2w"] + params["f2b"], 0.0)
    return z2 @ params["f3w"] + params["f3b"]


if __name__ == "__main__":
    # Batched up (B=16) to fill vreg sublanes; blocked by 8 so the batch grid
    # axis can shard across TensorCores on multi-TC chips.
    B, T, IN, H, OUT = 16, 8, 4, 32, 1
    key = jax.random.PRNGKey(0)
    kx, kp = jax.random.split(key)
    x = jax.random.normal(kx, (B, T, IN), dtype=jnp.float32)
    params = init_params(kp, IN, H, OUT)

    out = price_prediction_lstm_forward(x, params, block_b=8)
    out = jax.block_until_ready(out)

    ref = reference_forward(x, params)
    assert out.shape == (B, OUT)
    assert jnp.allclose(out, ref, atol=1e-4, rtol=1e-4), (out, ref)
    print("KERNEL_OK")
</pallas_src>

<mosaic_0001>
module attributes {stable_mosaic.version = 11 : i64} {
  func.func @lstm_mlp_kernel(%arg0: i32, %arg1: memref<8x8x4xf32, #tpu.memory_space<vmem>>, %arg2: memref<4x128xf32, #tpu.memory_space<vmem>>, %arg3: memref<32x128xf32, #tpu.memory_space<vmem>>, %arg4: memref<1x128xf32, #tpu.memory_space<vmem>>, %arg5: memref<64x128xf32, #tpu.memory_space<vmem>>, %arg6: memref<1x128xf32, #tpu.memory_space<vmem>>, %arg7: memref<1x32xf32, #tpu.memory_space<vmem>>, %arg8: memref<1x1xf32, #tpu.memory_space<vmem>>, %arg9: memref<32x128xf32, #tpu.memory_space<vmem>>, %arg10: memref<1x128xf32, #tpu.memory_space<vmem>>, %arg11: memref<128x64xf32, #tpu.memory_space<vmem>>, %arg12: memref<1x64xf32, #tpu.memory_space<vmem>>, %arg13: memref<64x1xf32, #tpu.memory_space<vmem>>, %arg14: memref<1x1xf32, #tpu.memory_space<vmem>>, %arg15: memref<8x1xf32, #tpu.memory_space<vmem>>) attributes {dimension_semantics = [#tpu.dimension_semantics<parallel>], iteration_bounds = array<i64: 2>, scalar_prefetch = 0 : i64, scratch_operands = 0 : i64, tpu.core_type = #tpu.core_type<tc>, window_params = [{transform_indices = @transform_0, window_bounds = array<i64: 8, 8, 4>}, {pipeline_mode = #tpu.pipeline_mode<synchronous>, transform_indices = @transform_1, window_bounds = array<i64: 4, 128>}, {pipeline_mode = #tpu.pipeline_mode<synchronous>, transform_indices = @transform_2, window_bounds = array<i64: 32, 128>}, {pipeline_mode = #tpu.pipeline_mode<synchronous>, transform_indices = @transform_3, window_bounds = array<i64: 1, 128>}, {pipeline_mode = #tpu.pipeline_mode<synchronous>, transform_indices = @transform_4, window_bounds = array<i64: 64, 128>}, {pipeline_mode = #tpu.pipeline_mode<synchronous>, transform_indices = @transform_5, window_bounds = array<i64: 1, 128>}, {pipeline_mode = #tpu.pipeline_mode<synchronous>, transform_indices = @transform_6, window_bounds = array<i64: 1, 32>}, {pipeline_mode = #tpu.pipeline_mode<synchronous>, transform_indices = @transform_7, window_bounds = array<i64: 1, 1>}, {pipeline_mode = #tpu.pipeline_mode<synchronous>, transform_indices = @transform_8, window_bounds = array<i64: 32, 128>}, {pipeline_mode = #tpu.pipeline_mode<synchronous>, transform_indices = @transform_9, window_bounds = array<i64: 1, 128>}, {pipeline_mode = #tpu.pipeline_mode<synchronous>, transform_indices = @transform_10, window_bounds = array<i64: 128, 64>}, {pipeline_mode = #tpu.pipeline_mode<synchronous>, transform_indices = @transform_11, window_bounds = array<i64: 1, 64>}, {pipeline_mode = #tpu.pipeline_mode<synchronous>, transform_indices = @transform_12, window_bounds = array<i64: 64, 1>}, {pipeline_mode = #tpu.pipeline_mode<synchronous>, transform_indices = @transform_13, window_bounds = array<i64: 1, 1>}, {transform_indices = @transform_14, window_bounds = array<i64: 8, 1>}]} {
    %c0 = arith.constant 0 : index
    %c0_0 = arith.constant 0 : index
    %c0_1 = arith.constant 0 : index
    %0 = vector.load %arg1[%c0, %c0_0, %c0_1] : memref<8x8x4xf32, #tpu.memory_space<vmem>>, vector<8x8x4xf32>
    %1 = vector.shape_cast %0 : vector<8x8x4xf32> to vector<64x4xf32>
    %c0_2 = arith.constant 0 : index
    %c0_3 = arith.constant 0 : index
    %2 = vector.load %arg2[%c0_2, %c0_3] : memref<4x128xf32, #tpu.memory_space<vmem>>, vector<4x128xf32>
    %cst = arith.constant dense<0.000000e+00> : vector<64x128xf32>
    %3 = tpu.matmul %1, %2, %cst {dimension_numbers = #tpu.dot_dimension_numbers<[1], [0], [0], [1], [0, 0, 1, 1], [], []>} : vector<64x4xf32>, vector<4x128xf32>, vector<64x128xf32> -> vector<64x128xf32>
    %c0_4 = arith.constant 0 : index
    %c0_5 = arith.constant 0 : index
    %4 = vector.load %arg4[%c0_4, %c0_5] : memref<1x128xf32, #tpu.memory_space<vmem>>, vector<1x128xf32>
    %5 = vector.broadcast %4 : vector<1x128xf32> to vector<64x128xf32>
    %6 = arith.addf %3, %5 : vector<64x128xf32>
    %7 = vector.shape_cast %6 : vector<64x128xf32> to vector<8x8x128xf32>
    %c0_6 = arith.constant 0 : index
    %c0_7 = arith.constant 0 : index
    %8 = vector.load %arg3[%c0_6, %c0_7] : memref<32x128xf32, #tpu.memory_space<vmem>>, vector<32x128xf32>
    %c0_8 = arith.constant 0 : index
    %c0_9 = arith.constant 0 : index
    %9 = vector.load %arg5[%c0_8, %c0_9] : memref<64x128xf32, #tpu.memory_space<vmem>>, vector<64x128xf32>
    %c0_10 = arith.constant 0 : index
    %c0_11 = arith.constant 0 : index
    %10 = vector.load %arg6[%c0_10, %c0_11] : memref<1x128xf32, #tpu.memory_space<vmem>>, vector<1x128xf32>
    %11 = vector.shape_cast %10 : vector<1x128xf32> to vector<1x128xf32>
    %12 = vector.broadcast %11 : vector<1x128xf32> to vector<8x128xf32>
    %c0_12 = arith.constant 0 : index
    %c0_13 = arith.constant 0 : index
    %13 = vector.load %arg7[%c0_12, %c0_13] : memref<1x32xf32, #tpu.memory_space<vmem>>, vector<1x32xf32>
    %c0_14 = arith.constant 0 : index
    %c0_15 = arith.constant 0 : index
    %14 = vector.load %arg8[%c0_14, %c0_15] : memref<1x1xf32, #tpu.memory_space<vmem>>, vector<1x1xf32>
    %cst_16 = arith.constant 0.000000e+00 : f32
    %15 = vector.broadcast %cst_16 : f32 to vector<8x32xf32>
    %cst_17 = arith.constant 0.000000e+00 : f32
    %16 = vector.broadcast %cst_17 : f32 to vector<8x32xf32>
    %cst_18 = arith.constant 0.000000e+00 : f32
    %17 = vector.broadcast %cst_18 : f32 to vector<8x32xf32>
    %cst_19 = arith.constant 0.000000e+00 : f32
    %18 = vector.broadcast %cst_19 : f32 to vector<8x32xf32>
    %19 = vector.extract_strided_slice %7 {offsets = [0, 0, 0], sizes = [8, 1, 128], strides = [1, 1, 1]} : vector<8x8x128xf32> to vector<8x1x128xf32>
    %20 = vector.shape_cast %19 : vector<8x1x128xf32> to vector<8x128xf32>
    %cst_20 = arith.constant dense<0.000000e+00> : vector<8x128xf32>
    %21 = tpu.matmul %15, %8, %cst_20 {dimension_numbers = #tpu.dot_dimension_numbers<[1], [0], [0], [1], [0, 0, 1, 1], [], []>} : vector<8x32xf32>, vector<32x128xf32>, vector<8x128xf32> -> vector<8x128xf32>
    %22 = arith.addf %20, %21 : vector<8x128xf32>
    %23 = arith.negf %22 : vector<8x128xf32>
    %24 = math.exp %23 : vector<8x128xf32>
    %cst_21 = arith.constant 1.000000e+00 : f32
    %25 = vector.broadcast %cst_21 : f32 to vector<8x128xf32>
    %26 = arith.addf %25, %24 : vector<8x128xf32>
    %27 = arith.divf %25, %26 : vector<8x128xf32>
    %28 = vector.extract_strided_slice %27 {offsets = [0, 0], sizes = [8, 32], strides = [1, 1]} : vector<8x128xf32> to vector<8x32xf32>
    %29 = vector.extract_strided_slice %27 {offsets = [0, 32], sizes = [8, 32], strides = [1, 1]} : vector<8x128xf32> to vector<8x32xf32>
    %30 = vector.extract_strided_slice %27 {offsets = [0, 96], sizes = [8, 32], strides = [1, 1]} : vector<8x128xf32> to vector<8x32xf32>
    %31 = vector.extract_strided_slice %22 {offsets = [0, 64], sizes = [8, 32], strides = [1, 1]} : vector<8x128xf32> to vector<8x32xf32>
    %32 = math.tanh %31 : vector<8x32xf32>
    %33 = arith.mulf %29, %16 : vector<8x32xf32>
    %34 = arith.mulf %28, %32 : vector<8x32xf32>
    %35 = arith.addf %33, %34 : vector<8x32xf32>
    %36 = math.tanh %35 : vector<8x32xf32>
    %37 = arith.mulf %30, %36 : vector<8x32xf32>
    %38 = tpu.concatenate %37, %17 in 1 : vector<8x32xf32>, vector<8x32xf32> -> vector<8x64xf32>
    %cst_22 = arith.constant dense<0.000000e+00> : vector<8x128xf32>
    %39 = tpu.matmul %38, %9, %cst_22 {dimension_numbers = #tpu.dot_dimension_numbers<[1], [0], [0], [1], [0, 0, 1, 1], [], []>} : vector<8x64xf32>, vector<64x128xf32>, vector<8x128xf32> -> vector<8x128xf32>
    %40 = arith.addf %39, %12 : vector<8x128xf32>
    %41 = arith.negf %40 : vector<8x128xf32>
    %42 = math.exp %41 : vector<8x128xf32>
    %cst_23 = arith.constant 1.000000e+00 : f32
    %43 = vector.broadcast %cst_23 : f32 to vector<8x128xf32>
    %44 = arith.addf %43, %42 : vector<8x128xf32>
    %45 = arith.divf %43, %44 : vector<8x128xf32>
    %46 = vector.extract_strided_slice %45 {offsets = [0, 0], sizes = [8, 32], strides = [1, 1]} : vector<8x128xf32> to vector<8x32xf32>
    %47 = vector.extract_strided_slice %45 {offsets = [0, 32], sizes = [8, 32], strides = [1, 1]} : vector<8x128xf32> to vector<8x32xf32>
    %48 = vector.extract_strided_slice %45 {offsets = [0, 96], sizes = [8, 32], strides = [1, 1]} : vector<8x128xf32> to vector<8x32xf32>
    %49 = vector.extract_strided_slice %40 {offsets = [0, 64], sizes = [8, 32], strides = [1, 1]} : vector<8x128xf32> to vector<8x32xf32>
    %50 = math.tanh %49 : vector<8x32xf32>
    %51 = arith.mulf %47, %18 : vector<8x32xf32>
    %52 = arith.mulf %46, %50 : vector<8x32xf32>
    %53 = arith.addf %51, %52 : vector<8x32xf32>
    %54 = math.tanh %53 : vector<8x32xf32>
    %55 = arith.mulf %48, %54 : vector<8x32xf32>
    %56 = vector.broadcast %13 : vector<1x32xf32> to vector<8x32xf32>
    %57 = arith.mulf %55, %56 : vector<8x32xf32>
    %cst_24 = arith.constant dense<0.000000e+00> : vector<8xf32>
    %58 = vector.multi_reduction <add>, %57, %cst_24 [1] : vector<8x32xf32> to vector<8xf32>
    %59 = vector.shape_cast %58 : vector<8xf32> to vector<8x1xf32>
    %60 = vector.broadcast %14 : vector<1x1xf32> to vector<8x1xf32>
    %61 = arith.addf %59, %60 : vector<8x1xf32>
    %62 = vector.extract_strided_slice %7 {offsets = [0, 1, 0], sizes = [8, 1, 128], strides = [1, 1, 1]} : vector<8x8x128xf32> to vector<8x1x128xf32>
    %63 = vector.shape_cast %62 : vector<8x1x128xf32> to vector<8x128xf32>
    %cst_25 = arith.constant dense<0.000000e+00> : vector<8x128xf32>
    %64 = tpu.matmul %37, %8, %cst_25 {dimension_numbers = #tpu.dot_dimension_numbers<[1], [0], [0], [1], [0, 0, 1, 1], [], []>} : vector<8x32xf32>, vector<32x128xf32>, vector<8x128xf32> -> vector<8x128xf32>
    %65 = arith.addf %63, %64 : vector<8x128xf32>
    %66 = arith.negf %65 : vector<8x128xf32>
    %67 = math.exp %66 : vector<8x128xf32>
    %cst_26 = arith.constant 1.000000e+00 : f32
    %68 = vector.broadcast %cst_26 : f32 to vector<8x128xf32>
    %69 = arith.addf %68, %67 : vector<8x128xf32>
    %70 = arith.divf %68, %69 : vector<8x128xf32>
    %71 = vector.extract_strided_slice %70 {offsets = [0, 0], sizes = [8, 32], strides = [1, 1]} : vector<8x128xf32> to vector<8x32xf32>
    %72 = vector.extract_strided_slice %70 {offsets = [0, 32], sizes = [8, 32], strides = [1, 1]} : vector<8x128xf32> to vector<8x32xf32>
    %73 = vector.extract_strided_slice %70 {offsets = [0, 96], sizes = [8, 32], strides = [1, 1]} : vector<8x128xf32> to vector<8x32xf32>
    %74 = vector.extract_strided_slice %65 {offsets = [0, 64], sizes = [8, 32], strides = [1, 1]} : vector<8x128xf32> to vector<8x32xf32>
    %75 = math.tanh %74 : vector<8x32xf32>
    %76 = arith.mulf %72, %35 : vector<8x32xf32>
    %77 = arith.mulf %71, %75 : vector<8x32xf32>
    %78 = arith.addf %76, %77 : vector<8x32xf32>
    %79 = math.tanh %78 : vector<8x32xf32>
    %80 = arith.mulf %73, %79 : vector<8x32xf32>
    %81 = tpu.concatenate %80, %55 in 1 : vector<8x32xf32>, vector<8x32xf32> -> vector<8x64xf32>
    %cst_27 = arith.constant dense<0.000000e+00> : vector<8x128xf32>
    %82 = tpu.matmul %81, %9, %cst_27 {dimension_numbers = #tpu.dot_dimension_numbers<[1], [0], [0], [1], [0, 0, 1, 1], [], []>} : vector<8x64xf32>, vector<64x128xf32>, vector<8x128xf32> -> vector<8x128xf32>
    %83 = arith.addf %82, %12 : vector<8x128xf32>
    %84 = arith.negf %83 : vector<8x128xf32>
    %85 = math.exp %84 : vector<8x128xf32>
    %cst_28 = arith.constant 1.000000e+00 : f32
    %86 = vector.broadcast %cst_28 : f32 to vector<8x128xf32>
    %87 = arith.addf %86, %85 : vector<8x128xf32>
    %88 = arith.divf %86, %87 : vector<8x128xf32>
    %89 = vector.extract_strided_slice %88 {offsets = [0, 0], sizes = [8, 32], strides = [1, 1]} : vector<8x128xf32> to vector<8x32xf32>
    %90 = vector.extract_strided_slice %88 {offsets = [0, 32], sizes = [8, 32], strides = [1, 1]} : vector<8x128xf32> to vector<8x32xf32>
    %91 = vector.extract_strided_slice %88 {offsets = [0, 96], sizes = [8, 32], strides = [1, 1]} : vector<8x128xf32> to vector<8x32xf32>
    %92 = vector.extract_strided_slice %83 {offsets = [0, 64], sizes = [8, 32], strides = [1, 1]} : vector<8x128xf32> to vector<8x32xf32>
    %93 = math.tanh %92 : vector<8x32xf32>
    %94 = arith.mulf %90, %53 : vector<8x32xf32>
    %95 = arith.mulf %89, %93 : vector<8x32xf32>
    %96 = arith.addf %94, %95 : vector<8x32xf32>
    %97 = math.tanh %96 : vector<8x32xf32>
    %98 = arith.mulf %91, %97 : vector<8x32xf32>
    %99 = vector.broadcast %13 : vector<1x32xf32> to vector<8x32xf32>
    %100 = arith.mulf %98, %99 : vector<8x32xf32>
    %cst_29 = arith.constant dense<0.000000e+00> : vector<8xf32>
    %101 = vector.multi_reduction <add>, %100, %cst_29 [1] : vector<8x32xf32> to vector<8xf32>
    %102 = vector.shape_cast %101 : vector<8xf32> to vector<8x1xf32>
    %103 = vector.broadcast %14 : vector<1x1xf32> to vector<8x1xf32>
    %104 = arith.addf %102, %103 : vector<8x1xf32>
    %105 = vector.extract_strided_slice %7 {offsets = [0, 2, 0], sizes = [8, 1, 128], strides = [1, 1, 1]} : vector<8x8x128xf32> to vector<8x1x128xf32>
    %106 = vector.shape_cast %105 : vector<8x1x128xf32> to vector<8x128xf32>
    %cst_30 = arith.constant dense<0.000000e+00> : vector<8x128xf32>
    %107 = tpu.matmul %80, %8, %cst_30 {dimension_numbers = #tpu.dot_dimension_numbers<[1], [0], [0], [1], [0, 0, 1, 1], [], []>} : vector<8x32xf32>, vector<32x128xf32>, vector<8x128xf32> -> vector<8x128xf32>
    %108 = arith.addf %106, %107 : vector<8x128xf32>
    %109 = arith.negf %108 : vector<8x128xf32>
    %110 = math.exp %109 : vector<8x128xf32>
    %cst_31 = arith.constant 1.000000e+00 : f32
    %111 = vector.broadcast %cst_31 : f32 to vector<8x128xf32>
    %112 = arith.addf %111, %110 : vector<8x128xf32>
    %113 = arith.divf %111, %112 : vector<8x128xf32>
    %114 = vector.extract_strided_slice %113 {offsets = [0, 0], sizes = [8, 32], strides = [1, 1]} : vector<8x128xf32> to vector<8x32xf32>
    %115 = vector.extract_strided_slice %113 {offsets = [0, 32], sizes = [8, 32], strides = [1, 1]} : vector<8x128xf32> to vector<8x32xf32>
    %116 = vector.extract_strided_slice %113 {offsets = [0, 96], sizes = [8, 32], strides = [1, 1]} : vector<8x128xf32> to vector<8x32xf32>
    %117 = vector.extract_strided_slice %108 {offsets = [0, 64], sizes = [8, 32], strides = [1, 1]} : vector<8x128xf32> to vector<8x32xf32>
    %118 = math.tanh %117 : vector<8x32xf32>
    %119 = arith.mulf %115, %78 : vector<8x32xf32>
    %120 = arith.mulf %114, %118 : vector<8x32xf32>
    %121 = arith.addf %119, %120 : vector<8x32xf32>
    %122 = math.tanh %121 : vector<8x32xf32>
    %123 = arith.mulf %116, %122 : vector<8x32xf32>
    %124 = tpu.concatenate %123, %98 in 1 : vector<8x32xf32>, vector<8x32xf32> -> vector<8x64xf32>
    %cst_32 = arith.constant dense<0.000000e+00> : vector<8x128xf32>
    %125 = tpu.matmul %124, %9, %cst_32 {dimension_numbers = #tpu.dot_dimension_numbers<[1], [0], [0], [1], [0, 0, 1, 1], [], []>} : vector<8x64xf32>, vector<64x128xf32>, vector<8x128xf32> -> vector<8x128xf32>
    %126 = arith.addf %125, %12 : vector<8x128xf32>
    %127 = arith.negf %126 : vector<8x128xf32>
    %128 = math.exp %127 : vector<8x128xf32>
    %cst_33 = arith.constant 1.000000e+00 : f32
    %129 = vector.broadcast %cst_33 : f32 to vector<8x128xf32>
    %130 = arith.addf %129, %128 : vector<8x128xf32>
    %131 = arith.divf %129, %130 : vector<8x128xf32>
    %132 = vector.extract_strided_slice %131 {offsets = [0, 0], sizes = [8, 32], strides = [1, 1]} : vector<8x128xf32> to vector<8x32xf32>
    %133 = vector.extract_strided_slice %131 {offsets = [0, 32], sizes = [8, 32], strides = [1, 1]} : vector<8x128xf32> to vector<8x32xf32>
    %134 = vector.extract_strided_slice %131 {offsets = [0, 96], sizes = [8, 32], strides = [1, 1]} : vector<8x128xf32> to vector<8x32xf32>
    %135 = vector.extract_strided_slice %126 {offsets = [0, 64], sizes = [8, 32], strides = [1, 1]} : vector<8x128xf32> to vector<8x32xf32>
    %136 = math.tanh %135 : vector<8x32xf32>
    %137 = arith.mulf %133, %96 : vector<8x32xf32>
    %138 = arith.mulf %132, %136 : vector<8x32xf32>
    %139 = arith.addf %137, %138 : vector<8x32xf32>
    %140 = math.tanh %139 : vector<8x32xf32>
    %141 = arith.mulf %134, %140 : vector<8x32xf32>
    %142 = vector.broadcast %13 : vector<1x32xf32> to vector<8x32xf32>
    %143 = arith.mulf %141, %142 : vector<8x32xf32>
    %cst_34 = arith.constant dense<0.000000e+00> : vector<8xf32>
    %144 = vector.multi_reduction <add>, %143, %cst_34 [1] : vector<8x32xf32> to vector<8xf32>
    %145 = vector.shape_cast %144 : vector<8xf32> to vector<8x1xf32>
    %146 = vector.broadcast %14 : vector<1x1xf32> to vector<8x1xf32>
    %147 = arith.addf %145, %146 : vector<8x1xf32>
    %148 = vector.extract_strided_slice %7 {offsets = [0, 3, 0], sizes = [8, 1, 128], strides = [1, 1, 1]} : vector<8x8x128xf32> to vector<8x1x128xf32>
    %149 = vector.shape_cast %148 : vector<8x1x128xf32> to vector<8x128xf32>
    %cst_35 = arith.constant dense<0.000000e+00> : vector<8x128xf32>
    %150 = tpu.matmul %123, %8, %cst_35 {dimension_numbers = #tpu.dot_dimension_numbers<[1], [0], [0], [1], [0, 0, 1, 1], [], []>} : vector<8x32xf32>, vector<32x128xf32>, vector<8x128xf32> -> vector<8x128xf32>
    %151 = arith.addf %149, %150 : vector<8x128xf32>
    %152 = arith.negf %151 : vector<8x128xf32>
    %153 = math.exp %152 : vector<8x128xf32>
    %cst_36 = arith.constant 1.000000e+00 : f32
    %154 = vector.broadcast %cst_36 : f32 to vector<8x128xf32>
    %155 = arith.addf %154, %153 : vector<8x128xf32>
    %156 = arith.divf %154, %155 : vector<8x128xf32>
    %157 = vector.extract_strided_slice %156 {offsets = [0, 0], sizes = [8, 32], strides = [1, 1]} : vector<8x128xf32> to vector<8x32xf32>
    %158 = vector.extract_strided_slice %156 {offsets = [0, 32], sizes = [8, 32], strides = [1, 1]} : vector<8x128xf32> to vector<8x32xf32>
    %159 = vector.extract_strided_slice %156 {offsets = [0, 96], sizes = [8, 32], strides = [1, 1]} : vector<8x128xf32> to vector<8x32xf32>
    %160 = vector.extract_strided_slice %151 {offsets = [0, 64], sizes = [8, 32], strides = [1, 1]} : vector<8x128xf32> to vector<8x32xf32>
    %161 = math.tanh %160 : vector<8x32xf32>
    %162 = arith.mulf %158, %121 : vector<8x32xf32>
    %163 = arith.mulf %157, %161 : vector<8x32xf32>
    %164 = arith.addf %162, %163 : vector<8x32xf32>
    %165 = math.tanh %164 : vector<8x32xf32>
    %166 = arith.mulf %159, %165 : vector<8x32xf32>
    %167 = tpu.concatenate %166, %141 in 1 : vector<8x32xf32>, vector<8x32xf32> -> vector<8x64xf32>
    %cst_37 = arith.constant dense<0.000000e+00> : vector<8x128xf32>
    %168 = tpu.matmul %167, %9, %cst_37 {dimension_numbers = #tpu.dot_dimension_numbers<[1], [0], [0], [1], [0, 0, 1, 1], [], []>} : vector<8x64xf32>, vector<64x128xf32>, vector<8x128xf32> -> vector<8x128xf32>
    %169 = arith.addf %168, %12 : vector<8x128xf32>
    %170 = arith.negf %169 : vector<8x128xf32>
    %171 = math.exp %170 : vector<8x128xf32>
    %cst_38 = arith.constant 1.000000e+00 : f32
    %172 = vector.broadcast %cst_38 : f32 to vector<8x128xf32>
    %173 = arith.addf %172, %171 : vector<8x128xf32>
    %174 = arith.divf %172, %173 : vector<8x128xf32>
    %175 = vector.extract_strided_slice %174 {offsets = [0, 0], sizes = [8, 32], strides = [1, 1]} : vector<8x128xf32> to vector<8x32xf32>
    %176 = vector.extract_strided_slice %174 {offsets = [0, 32], sizes = [8, 32], strides = [1, 1]} : vector<8x128xf32> to vector<8x32xf32>
    %177 = vector.extract_strided_slice %174 {offsets = [0, 96], sizes = [8, 32], strides = [1, 1]} : vector<8x128xf32> to vector<8x32xf32>
    %178 = vector.extract_strided_slice %169 {offsets = [0, 64], sizes = [8, 32], strides = [1, 1]} : vector<8x128xf32> to vector<8x32xf32>
    %179 = math.tanh %178 : vector<8x32xf32>
    %180 = arith.mulf %176, %139 : vector<8x32xf32>
    %181 = arith.mulf %175, %179 : vector<8x32xf32>
    %182 = arith.addf %180, %181 : vector<8x32xf32>
    %183 = math.tanh %182 : vector<8x32xf32>
    %184 = arith.mulf %177, %183 : vector<8x32xf32>
    %185 = vector.broadcast %13 : vector<1x32xf32> to vector<8x32xf32>
    %186 = arith.mulf %184, %185 : vector<8x32xf32>
    %cst_39 = arith.constant dense<0.000000e+00> : vector<8xf32>
    %187 = vector.multi_reduction <add>, %186, %cst_39 [1] : vector<8x32xf32> to vector<8xf32>
    %188 = vector.shape_cast %187 : vector<8xf32> to vector<8x1xf32>
    %189 = vector.broadcast %14 : vector<1x1xf32> to vector<8x1xf32>
    %190 = arith.addf %188, %189 : vector<8x1xf32>
    %191 = vector.extract_strided_slice %7 {offsets = [0, 4, 0], sizes = [8, 1, 128], strides = [1, 1, 1]} : vector<8x8x128xf32> to vector<8x1x128xf32>
    %192 = vector.shape_cast %191 : vector<8x1x128xf32> to vector<8x128xf32>
    %cst_40 = arith.constant dense<0.000000e+00> : vector<8x128xf32>
    %193 = tpu.matmul %166, %8, %cst_40 {dimension_numbers = #tpu.dot_dimension_numbers<[1], [0], [0], [1], [0, 0, 1, 1], [], []>} : vector<8x32xf32>, vector<32x128xf32>, vector<8x128xf32> -> vector<8x128xf32>
    %194 = arith.addf %192, %193 : vector<8x128xf32>
    %195 = arith.negf %194 : vector<8x128xf32>
    %196 = math.exp %195 : vector<8x128xf32>
    %cst_41 = arith.constant 1.000000e+00 : f32
    %197 = vector.broadcast %cst_41 : f32 to vector<8x128xf32>
    %198 = arith.addf %197, %196 : vector<8x128xf32>
    %199 = arith.divf %197, %198 : vector<8x128xf32>
    %200 = vector.extract_strided_slice %199 {offsets = [0, 0], sizes = [8, 32], strides = [1, 1]} : vector<8x128xf32> to vector<8x32xf32>
    %201 = vector.extract_strided_slice %199 {offsets = [0, 32], sizes = [8, 32], strides = [1, 1]} : vector<8x128xf32> to vector<8x32xf32>
    %202 = vector.extract_strided_slice %199 {offsets = [0, 96], sizes = [8, 32], strides = [1, 1]} : vector<8x128xf32> to vector<8x32xf32>
    %203 = vector.extract_strided_slice %194 {offsets = [0, 64], sizes = [8, 32], strides = [1, 1]} : vector<8x128xf32> to vector<8x32xf32>
    %204 = math.tanh %203 : vector<8x32xf32>
    %205 = arith.mulf %201, %164 : vector<8x32xf32>
    %206 = arith.mulf %200, %204 : vector<8x32xf32>
    %207 = arith.addf %205, %206 : vector<8x32xf32>
    %208 = math.tanh %207 : vector<8x32xf32>
    %209 = arith.mulf %202, %208 : vector<8x32xf32>
    %210 = tpu.concatenate %209, %184 in 1 : vector<8x32xf32>, vector<8x32xf32> -> vector<8x64xf32>
    %cst_42 = arith.constant dense<0.000000e+00> : vector<8x128xf32>
    %211 = tpu.matmul %210, %9, %cst_42 {dimension_numbers = #tpu.dot_dimension_numbers<[1], [0], [0], [1], [0, 0, 1, 1], [], []>} : vector<8x64xf32>, vector<64x128xf32>, vector<8x128xf32> -> vector<8x128xf32>
    %212 = arith.addf %211, %12 : vector<8x128xf32>
    %213 = arith.negf %212 : vector<8x128xf32>
    %214 = math.exp %213 : vector<8x128xf32>
    %cst_43 = arith.constant 1.000000e+00 : f32
    %215 = vector.broadcast %cst_43 : f32 to vector<8x128xf32>
    %216 = arith.addf %215, %214 : vector<8x128xf32>
    %217 = arith.divf %215, %216 : vector<8x128xf32>
    %218 = vector.extract_strided_slice %217 {offsets = [0, 0], sizes = [8, 32], strides = [1, 1]} : vector<8x128xf32> to vector<8x32xf32>
    %219 = vector.extract_strided_slice %217 {offsets = [0, 32], sizes = [8, 32], strides = [1, 1]} : vector<8x128xf32> to vector<8x32xf32>
    %220 = vector.extract_strided_slice %217 {offsets = [0, 96], sizes = [8, 32], strides = [1, 1]} : vector<8x128xf32> to vector<8x32xf32>
    %221 = vector.extract_strided_slice %212 {offsets = [0, 64], sizes = [8, 32], strides = [1, 1]} : vector<8x128xf32> to vector<8x32xf32>
    %222 = math.tanh %221 : vector<8x32xf32>
    %223 = arith.mulf %219, %182 : vector<8x32xf32>
    %224 = arith.mulf %218, %222 : vector<8x32xf32>
    %225 = arith.addf %223, %224 : vector<8x32xf32>
    %226 = math.tanh %225 : vector<8x32xf32>
    %227 = arith.mulf %220, %226 : vector<8x32xf32>
    %228 = vector.broadcast %13 : vector<1x32xf32> to vector<8x32xf32>
    %229 = arith.mulf %227, %228 : vector<8x32xf32>
    %cst_44 = arith.constant dense<0.000000e+00> : vector<8xf32>
    %230 = vector.multi_reduction <add>, %229, %cst_44 [1] : vector<8x32xf32> to vector<8xf32>
    %231 = vector.shape_cast %230 : vector<8xf32> to vector<8x1xf32>
    %232 = vector.broadcast %14 : vector<1x1xf32> to vector<8x1xf32>
    %233 = arith.addf %231, %232 : vector<8x1xf32>
    %234 = vector.extract_strided_slice %7 {offsets = [0, 5, 0], sizes = [8, 1, 128], strides = [1, 1, 1]} : vector<8x8x128xf32> to vector<8x1x128xf32>
    %235 = vector.shape_cast %234 : vector<8x1x128xf32> to vector<8x128xf32>
    %cst_45 = arith.constant dense<0.000000e+00> : vector<8x128xf32>
    %236 = tpu.matmul %209, %8, %cst_45 {dimension_numbers = #tpu.dot_dimension_numbers<[1], [0], [0], [1], [0, 0, 1, 1], [], []>} : vector<8x32xf32>, vector<32x128xf32>, vector<8x128xf32> -> vector<8x128xf32>
    %237 = arith.addf %235, %236 : vector<8x128xf32>
    %238 = arith.negf %237 : vector<8x128xf32>
    %239 = math.exp %238 : vector<8x128xf32>
    %cst_46 = arith.constant 1.000000e+00 : f32
    %240 = vector.broadcast %cst_46 : f32 to vector<8x128xf32>
    %241 = arith.addf %240, %239 : vector<8x128xf32>
    %242 = arith.divf %240, %241 : vector<8x128xf32>
    %243 = vector.extract_strided_slice %242 {offsets = [0, 0], sizes = [8, 32], strides = [1, 1]} : vector<8x128xf32> to vector<8x32xf32>
    %244 = vector.extract_strided_slice %242 {offsets = [0, 32], sizes = [8, 32], strides = [1, 1]} : vector<8x128xf32> to vector<8x32xf32>
    %245 = vector.extract_strided_slice %242 {offsets = [0, 96], sizes = [8, 32], strides = [1, 1]} : vector<8x128xf32> to vector<8x32xf32>
    %246 = vector.extract_strided_slice %237 {offsets = [0, 64], sizes = [8, 32], strides = [1, 1]} : vector<8x128xf32> to vector<8x32xf32>
    %247 = math.tanh %246 : vector<8x32xf32>
    %248 = arith.mulf %244, %207 : vector<8x32xf32>
    %249 = arith.mulf %243, %247 : vector<8x32xf32>
    %250 = arith.addf %248, %249 : vector<8x32xf32>
    %251 = math.tanh %250 : vector<8x32xf32>
    %252 = arith.mulf %245, %251 : vector<8x32xf32>
    %253 = tpu.concatenate %252, %227 in 1 : vector<8x32xf32>, vector<8x32xf32> -> vector<8x64xf32>
    %cst_47 = arith.constant dense<0.000000e+00> : vector<8x128xf32>
    %254 = tpu.matmul %253, %9, %cst_47 {dimension_numbers = #tpu.dot_dimension_numbers<[1], [0], [0], [1], [0, 0, 1, 1], [], []>} : vector<8x64xf32>, vector<64x128xf32>, vector<8x128xf32> -> vector<8x128xf32>
    %255 = arith.addf %254, %12 : vector<8x128xf32>
    %256 = arith.negf %255 : vector<8x128xf32>
    %257 = math.exp %256 : vector<8x128xf32>
    %cst_48 = arith.constant 1.000000e+00 : f32
    %258 = vector.broadcast %cst_48 : f32 to vector<8x128xf32>
    %259 = arith.addf %258, %257 : vector<8x128xf32>
    %260 = arith.divf %258, %259 : vector<8x128xf32>
    %261 = vector.extract_strided_slice %260 {offsets = [0, 0], sizes = [8, 32], strides = [1, 1]} : vector<8x128xf32> to vector<8x32xf32>
    %262 = vector.extract_strided_slice %260 {offsets = [0, 32], sizes = [8, 32], strides = [1, 1]} : vector<8x128xf32> to vector<8x32xf32>
    %263 = vector.extract_strided_slice %260 {offsets = [0, 96], sizes = [8, 32], strides = [1, 1]} : vector<8x128xf32> to vector<8x32xf32>
    %264 = vector.extract_strided_slice %255 {offsets = [0, 64], sizes = [8, 32], strides = [1, 1]} : vector<8x128xf32> to vector<8x32xf32>
    %265 = math.tanh %264 : vector<8x32xf32>
    %266 = arith.mulf %262, %225 : vector<8x32xf32>
    %267 = arith.mulf %261, %265 : vector<8x32xf32>
    %268 = arith.addf %266, %267 : vector<8x32xf32>
    %269 = math.tanh %268 : vector<8x32xf32>
    %270 = arith.mulf %263, %269 : vector<8x32xf32>
    %271 = vector.broadcast %13 : vector<1x32xf32> to vector<8x32xf32>
    %272 = arith.mulf %270, %271 : vector<8x32xf32>
    %cst_49 = arith.constant dense<0.000000e+00> : vector<8xf32>
    %273 = vector.multi_reduction <add>, %272, %cst_49 [1] : vector<8x32xf32> to vector<8xf32>
    %274 = vector.shape_cast %273 : vector<8xf32> to vector<8x1xf32>
    %275 = vector.broadcast %14 : vector<1x1xf32> to vector<8x1xf32>
    %276 = arith.addf %274, %275 : vector<8x1xf32>
    %277 = vector.extract_strided_slice %7 {offsets = [0, 6, 0], sizes = [8, 1, 128], strides = [1, 1, 1]} : vector<8x8x128xf32> to vector<8x1x128xf32>
    %278 = vector.shape_cast %277 : vector<8x1x128xf32> to vector<8x128xf32>
    %cst_50 = arith.constant dense<0.000000e+00> : vector<8x128xf32>
    %279 = tpu.matmul %252, %8, %cst_50 {dimension_numbers = #tpu.dot_dimension_numbers<[1], [0], [0], [1], [0, 0, 1, 1], [], []>} : vector<8x32xf32>, vector<32x128xf32>, vector<8x128xf32> -> vector<8x128xf32>
    %280 = arith.addf %278, %279 : vector<8x128xf32>
    %281 = arith.negf %280 : vector<8x128xf32>
    %282 = math.exp %281 : vector<8x128xf32>
    %cst_51 = arith.constant 1.000000e+00 : f32
    %283 = vector.broadcast %cst_51 : f32 to vector<8x128xf32>
    %284 = arith.addf %283, %282 : vector<8x128xf32>
    %285 = arith.divf %283, %284 : vector<8x128xf32>
    %286 = vector.extract_strided_slice %285 {offsets = [0, 0], sizes = [8, 32], strides = [1, 1]} : vector<8x128xf32> to vector<8x32xf32>
    %287 = vector.extract_strided_slice %285 {offsets = [0, 32], sizes = [8, 32], strides = [1, 1]} : vector<8x128xf32> to vector<8x32xf32>
    %288 = vector.extract_strided_slice %285 {offsets = [0, 96], sizes = [8, 32], strides = [1, 1]} : vector<8x128xf32> to vector<8x32xf32>
    %289 = vector.extract_strided_slice %280 {offsets = [0, 64], sizes = [8, 32], strides = [1, 1]} : vector<8x128xf32> to vector<8x32xf32>
    %290 = math.tanh %289 : vector<8x32xf32>
    %291 = arith.mulf %287, %250 : vector<8x32xf32>
    %292 = arith.mulf %286, %290 : vector<8x32xf32>
    %293 = arith.addf %291, %292 : vector<8x32xf32>
    %294 = math.tanh %293 : vector<8x32xf32>
    %295 = arith.mulf %288, %294 : vector<8x32xf32>
    %296 = tpu.concatenate %295, %270 in 1 : vector<8x32xf32>, vector<8x32xf32> -> vector<8x64xf32>
    %cst_52 = arith.constant dense<0.000000e+00> : vector<8x128xf32>
    %297 = tpu.matmul %296, %9, %cst_52 {dimension_numbers = #tpu.dot_dimension_numbers<[1], [0], [0], [1], [0, 0, 1, 1], [], []>} : vector<8x64xf32>, vector<64x128xf32>, vector<8x128xf32> -> vector<8x128xf32>
    %298 = arith.addf %297, %12 : vector<8x128xf32>
    %299 = arith.negf %298 : vector<8x128xf32>
    %300 = math.exp %299 : vector<8x128xf32>
    %cst_53 = arith.constant 1.000000e+00 : f32
    %301 = vector.broadcast %cst_53 : f32 to vector<8x128xf32>
    %302 = arith.addf %301, %300 : vector<8x128xf32>
    %303 = arith.divf %301, %302 : vector<8x128xf32>
    %304 = vector.extract_strided_slice %303 {offsets = [0, 0], sizes = [8, 32], strides = [1, 1]} : vector<8x128xf32> to vector<8x32xf32>
    %305 = vector.extract_strided_slice %303 {offsets = [0, 32], sizes = [8, 32], strides = [1, 1]} : vector<8x128xf32> to vector<8x32xf32>
    %306 = vector.extract_strided_slice %303 {offsets = [0, 96], sizes = [8, 32], strides = [1, 1]} : vector<8x128xf32> to vector<8x32xf32>
    %307 = vector.extract_strided_slice %298 {offsets = [0, 64], sizes = [8, 32], strides = [1, 1]} : vector<8x128xf32> to vector<8x32xf32>
    %308 = math.tanh %307 : vector<8x32xf32>
    %309 = arith.mulf %305, %268 : vector<8x32xf32>
    %310 = arith.mulf %304, %308 : vector<8x32xf32>
    %311 = arith.addf %309, %310 : vector<8x32xf32>
    %312 = math.tanh %311 : vector<8x32xf32>
    %313 = arith.mulf %306, %312 : vector<8x32xf32>
    %314 = vector.broadcast %13 : vector<1x32xf32> to vector<8x32xf32>
    %315 = arith.mulf %313, %314 : vector<8x32xf32>
    %cst_54 = arith.constant dense<0.000000e+00> : vector<8xf32>
    %316 = vector.multi_reduction <add>, %315, %cst_54 [1] : vector<8x32xf32> to vector<8xf32>
    %317 = vector.shape_cast %316 : vector<8xf32> to vector<8x1xf32>
    %318 = vector.broadcast %14 : vector<1x1xf32> to vector<8x1xf32>
    %319 = arith.addf %317, %318 : vector<8x1xf32>
    %320 = vector.extract_strided_slice %7 {offsets = [0, 7, 0], sizes = [8, 1, 128], strides = [1, 1, 1]} : vector<8x8x128xf32> to vector<8x1x128xf32>
    %321 = vector.shape_cast %320 : vector<8x1x128xf32> to vector<8x128xf32>
    %cst_55 = arith.constant dense<0.000000e+00> : vector<8x128xf32>
    %322 = tpu.matmul %295, %8, %cst_55 {dimension_numbers = #tpu.dot_dimension_numbers<[1], [0], [0], [1], [0, 0, 1, 1], [], []>} : vector<8x32xf32>, vector<32x128xf32>, vector<8x128xf32> -> vector<8x128xf32>
    %323 = arith.addf %321, %322 : vector<8x128xf32>
    %324 = arith.negf %323 : vector<8x128xf32>
    %325 = math.exp %324 : vector<8x128xf32>
    %cst_56 = arith.constant 1.000000e+00 : f32
    %326 = vector.broadcast %cst_56 : f32 to vector<8x128xf32>
    %327 = arith.addf %326, %325 : vector<8x128xf32>
    %328 = arith.divf %326, %327 : vector<8x128xf32>
    %329 = vector.extract_strided_slice %328 {offsets = [0, 0], sizes = [8, 32], strides = [1, 1]} : vector<8x128xf32> to vector<8x32xf32>
    %330 = vector.extract_strided_slice %328 {offsets = [0, 32], sizes = [8, 32], strides = [1, 1]} : vector<8x128xf32> to vector<8x32xf32>
    %331 = vector.extract_strided_slice %328 {offsets = [0, 96], sizes = [8, 32], strides = [1, 1]} : vector<8x128xf32> to vector<8x32xf32>
    %332 = vector.extract_strided_slice %323 {offsets = [0, 64], sizes = [8, 32], strides = [1, 1]} : vector<8x128xf32> to vector<8x32xf32>
    %333 = math.tanh %332 : vector<8x32xf32>
    %334 = arith.mulf %330, %293 : vector<8x32xf32>
    %335 = arith.mulf %329, %333 : vector<8x32xf32>
    %336 = arith.addf %334, %335 : vector<8x32xf32>
    %337 = math.tanh %336 : vector<8x32xf32>
    %338 = arith.mulf %331, %337 : vector<8x32xf32>
    %339 = tpu.concatenate %338, %313 in 1 : vector<8x32xf32>, vector<8x32xf32> -> vector<8x64xf32>
    %cst_57 = arith.constant dense<0.000000e+00> : vector<8x128xf32>
    %340 = tpu.matmul %339, %9, %cst_57 {dimension_numbers = #tpu.dot_dimension_numbers<[1], [0], [0], [1], [0, 0, 1, 1], [], []>} : vector<8x64xf32>, vector<64x128xf32>, vector<8x128xf32> -> vector<8x128xf32>
    %341 = arith.addf %340, %12 : vector<8x128xf32>
    %342 = arith.negf %341 : vector<8x128xf32>
    %343 = math.exp %342 : vector<8x128xf32>
    %cst_58 = arith.constant 1.000000e+00 : f32
    %344 = vector.broadcast %cst_58 : f32 to vector<8x128xf32>
    %345 = arith.addf %344, %343 : vector<8x128xf32>
    %346 = arith.divf %344, %345 : vector<8x128xf32>
    %347 = vector.extract_strided_slice %346 {offsets = [0, 0], sizes = [8, 32], strides = [1, 1]} : vector<8x128xf32> to vector<8x32xf32>
    %348 = vector.extract_strided_slice %346 {offsets = [0, 32], sizes = [8, 32], strides = [1, 1]} : vector<8x128xf32> to vector<8x32xf32>
    %349 = vector.extract_strided_slice %346 {offsets = [0, 96], sizes = [8, 32], strides = [1, 1]} : vector<8x128xf32> to vector<8x32xf32>
    %350 = vector.extract_strided_slice %341 {offsets = [0, 64], sizes = [8, 32], strides = [1, 1]} : vector<8x128xf32> to vector<8x32xf32>
    %351 = math.tanh %350 : vector<8x32xf32>
    %352 = arith.mulf %348, %311 : vector<8x32xf32>
    %353 = arith.mulf %347, %351 : vector<8x32xf32>
    %354 = arith.addf %352, %353 : vector<8x32xf32>
    %355 = math.tanh %354 : vector<8x32xf32>
    %356 = arith.mulf %349, %355 : vector<8x32xf32>
    %357 = vector.broadcast %13 : vector<1x32xf32> to vector<8x32xf32>
    %358 = arith.mulf %356, %357 : vector<8x32xf32>
    %cst_59 = arith.constant dense<0.000000e+00> : vector<8xf32>
    %359 = vector.multi_reduction <add>, %358, %cst_59 [1] : vector<8x32xf32> to vector<8xf32>
    %360 = vector.shape_cast %359 : vector<8xf32> to vector<8x1xf32>
    %361 = vector.broadcast %14 : vector<1x1xf32> to vector<8x1xf32>
    %362 = arith.addf %360, %361 : vector<8x1xf32>
    %363 = tpu.concatenate %61, %104, %147, %190, %233, %276, %319, %362 in 1 : vector<8x1xf32>, vector<8x1xf32>, vector<8x1xf32>, vector<8x1xf32>, vector<8x1xf32>, vector<8x1xf32>, vector<8x1xf32>, vector<8x1xf32> -> vector<8x8xf32>
    %cst_60 = arith.constant dense<0xFF800000> : vector<8xf32>
    %364 = vector.multi_reduction <maximumf>, %363, %cst_60 [1] : vector<8x8xf32> to vector<8xf32>
    %365 = vector.shape_cast %364 : vector<8xf32> to vector<8x1xf32>
    %366 = vector.broadcast %365 : vector<8x1xf32> to vector<8x8xf32>
    %367 = arith.subf %363, %366 : vector<8x8xf32>
    %368 = math.exp %367 : vector<8x8xf32>
    %369 = vector.extract_strided_slice %368 {offsets = [0, 7], sizes = [8, 1], strides = [1, 1]} : vector<8x8xf32> to vector<8x1xf32>
    %cst_61 = arith.constant dense<0.000000e+00> : vector<8xf32>
    %370 = vector.multi_reduction <add>, %368, %cst_61 [1] : vector<8x8xf32> to vector<8xf32>
    %371 = vector.shape_cast %370 : vector<8xf32> to vector<8x1xf32>
    %372 = arith.divf %369, %371 : vector<8x1xf32>
    %373 = vector.broadcast %372 : vector<8x1xf32> to vector<8x32xf32>
    %374 = arith.mulf %356, %373 : vector<8x32xf32>
    %c0_62 = arith.constant 0 : index
    %c0_63 = arith.constant 0 : index
    %375 = vector.load %arg9[%c0_62, %c0_63] : memref<32x128xf32, #tpu.memory_space<vmem>>, vector<32x128xf32>
    %cst_64 = arith.constant dense<0.000000e+00> : vector<8x128xf32>
    %376 = tpu.matmul %374, %375, %cst_64 {dimension_numbers = #tpu.dot_dimension_numbers<[1], [0], [0], [1], [0, 0, 1, 1], [], []>} : vector<8x32xf32>, vector<32x128xf32>, vector<8x128xf32> -> vector<8x128xf32>
    %c0_65 = arith.constant 0 : index
    %c0_66 = arith.constant 0 : index
    %377 = vector.load %arg10[%c0_65, %c0_66] : memref<1x128xf32, #tpu.memory_space<vmem>>, vector<1x128xf32>
    %378 = vector.broadcast %377 : vector<1x128xf32> to vector<8x128xf32>
    %379 = arith.addf %376, %378 : vector<8x128xf32>
    %cst_67 = arith.constant 0.000000e+00 : f32
    %380 = vector.broadcast %cst_67 : f32 to vector<8x128xf32>
    %381 = arith.maximumf %379, %380 : vector<8x128xf32>
    %c0_68 = arith.constant 0 : index
    %c0_69 = arith.constant 0 : index
    %382 = vector.load %arg11[%c0_68, %c0_69] : memref<128x64xf32, #tpu.memory_space<vmem>>, vector<128x64xf32>
    %cst_70 = arith.constant dense<0.000000e+00> : vector<8x64xf32>
    %383 = tpu.matmul %381, %382, %cst_70 {dimension_numbers = #tpu.dot_dimension_numbers<[1], [0], [0], [1], [0, 0, 1, 1], [], []>} : vector<8x128xf32>, vector<128x64xf32>, vector<8x64xf32> -> vector<8x64xf32>
    %c0_71 = arith.constant 0 : index
    %c0_72 = arith.constant 0 : index
    %384 = vector.load %arg12[%c0_71, %c0_72] : memref<1x64xf32, #tpu.memory_space<vmem>>, vector<1x64xf32>
    %385 = vector.broadcast %384 : vector<1x64xf32> to vector<8x64xf32>
    %386 = arith.addf %383, %385 : vector<8x64xf32>
    %cst_73 = arith.constant 0.000000e+00 : f32
    %387 = vector.broadcast %cst_73 : f32 to vector<8x64xf32>
    %388 = arith.maximumf %386, %387 : vector<8x64xf32>
    %c0_74 = arith.constant 0 : index
    %c0_75 = arith.constant 0 : index
    %389 = vector.load %arg13[%c0_74, %c0_75] : memref<64x1xf32, #tpu.memory_space<vmem>>, vector<64x1xf32>
    %cst_76 = arith.constant dense<0.000000e+00> : vector<8x1xf32>
    %390 = tpu.matmul %388, %389, %cst_76 {dimension_numbers = #tpu.dot_dimension_numbers<[1], [0], [0], [1], [0, 0, 1, 1], [], []>} : vector<8x64xf32>, vector<64x1xf32>, vector<8x1xf32> -> vector<8x1xf32>
    %c0_77 = arith.constant 0 : index
    %c0_78 = arith.constant 0 : index
    %391 = vector.load %arg14[%c0_77, %c0_78] : memref<1x1xf32, #tpu.memory_space<vmem>>, vector<1x1xf32>
    %392 = vector.broadcast %391 : vector<1x1xf32> to vector<8x1xf32>
    %393 = arith.addf %390, %392 : vector<8x1xf32>
    %c0_79 = arith.constant 0 : index
    %c0_80 = arith.constant 0 : index
    %394 = vector.load %arg15[%c0_79, %c0_80] : memref<8x1xf32, #tpu.memory_space<vmem>>, vector<8x1xf32>
    tpu.vector_store %arg15[%c0_79, %c0_80], %393 {strides = array<i32>} : memref<8x1xf32, #tpu.memory_space<vmem>>, vector<8x1xf32>,
    return
  }
  func.func @transform_0(%arg0: i32) -> (i32, i32, i32) {
    %c0_i32 = arith.constant 0 : i32
    %c0_i32_0 = arith.constant 0 : i32
    %c0_i32_1 = arith.constant 0 : i32
    return %arg0, %c0_i32, %c0_i32_0 : i32, i32, i32
  }
  func.func @transform_1(%arg0: i32) -> (i32, i32) {
    %c0_i32 = arith.constant 0 : i32
    %c0_i32_0 = arith.constant 0 : i32
    %c0_i32_1 = arith.constant 0 : i32
    return %c0_i32, %c0_i32_0 : i32, i32
  }
  func.func @transform_2(%arg0: i32) -> (i32, i32) {
    %c0_i32 = arith.constant 0 : i32
    %c0_i32_0 = arith.constant 0 : i32
    %c0_i32_1 = arith.constant 0 : i32
    return %c0_i32, %c0_i32_0 : i32, i32
  }
  func.func @transform_3(%arg0: i32) -> (i32, i32) {
    %c0_i32 = arith.constant 0 : i32
    %c0_i32_0 = arith.constant 0 : i32
    %c0_i32_1 = arith.constant 0 : i32
    return %c0_i32, %c0_i32_0 : i32, i32
  }
  func.func @transform_4(%arg0: i32) -> (i32, i32) {
    %c0_i32 = arith.constant 0 : i32
    %c0_i32_0 = arith.constant 0 : i32
    %c0_i32_1 = arith.constant 0 : i32
    return %c0_i32, %c0_i32_0 : i32, i32
  }
  func.func @transform_5(%arg0: i32) -> (i32, i32) {
    %c0_i32 = arith.constant 0 : i32
    %c0_i32_0 = arith.constant 0 : i32
    %c0_i32_1 = arith.constant 0 : i32
    return %c0_i32, %c0_i32_0 : i32, i32
  }
  func.func @transform_6(%arg0: i32) -> (i32, i32) {
    %c0_i32 = arith.constant 0 : i32
    %c0_i32_0 = arith.constant 0 : i32
    %c0_i32_1 = arith.constant 0 : i32
    return %c0_i32, %c0_i32_0 : i32, i32
  }
  func.func @transform_7(%arg0: i32) -> (i32, i32) {
    %c0_i32 = arith.constant 0 : i32
    %c0_i32_0 = arith.constant 0 : i32
    %c0_i32_1 = arith.constant 0 : i32
    return %c0_i32, %c0_i32_0 : i32, i32
  }
  func.func @transform_8(%arg0: i32) -> (i32, i32) {
    %c0_i32 = arith.constant 0 : i32
    %c0_i32_0 = arith.constant 0 : i32
    %c0_i32_1 = arith.constant 0 : i32
    return %c0_i32, %c0_i32_0 : i32, i32
  }
  func.func @transform_9(%arg0: i32) -> (i32, i32) {
    %c0_i32 = arith.constant 0 : i32
    %c0_i32_0 = arith.constant 0 : i32
    %c0_i32_1 = arith.constant 0 : i32
    return %c0_i32, %c0_i32_0 : i32, i32
  }
  func.func @transform_10(%arg0: i32) -> (i32, i32) {
    %c0_i32 = arith.constant 0 : i32
    %c0_i32_0 = arith.constant 0 : i32
    %c0_i32_1 = arith.constant 0 : i32
    return %c0_i32, %c0_i32_0 : i32, i32
  }
  func.func @transform_11(%arg0: i32) -> (i32, i32) {
    %c0_i32 = arith.constant 0 : i32
    %c0_i32_0 = arith.constant 0 : i32
    %c0_i32_1 = arith.constant 0 : i32
    return %c0_i32, %c0_i32_0 : i32, i32
  }
  func.func @transform_12(%arg0: i32) -> (i32, i32) {
    %c0_i32 = arith.constant 0 : i32
    %c0_i32_0 = arith.constant 0 : i32
    %c0_i32_1 = arith.constant 0 : i32
    return %c0_i32, %c0_i32_0 : i32, i32
  }
  func.func @transform_13(%arg0: i32) -> (i32, i32) {
    %c0_i32 = arith.constant 0 : i32
    %c0_i32_0 = arith.constant 0 : i32
    %c0_i32_1 = arith.constant 0 : i32
    return %c0_i32, %c0_i32_0 : i32, i32
  }
  func.func @transform_14(%arg0: i32) -> (i32, i32) {
    %c0_i32 = arith.constant 0 : i32
    %c0_i32_0 = arith.constant 0 : i32
    return %arg0, %c0_i32 : i32, i32
  }
}

</mosaic_0001>

<llo_original>
// kernel: tpu_custom_call.1
$region0: #{tpu_custom_call.1}
  #allocation0 [shape = 'u32[]', space=smem, size = 0x4, offset = 0x4, fixed_abs, tag = 'smem constant byte address 0x4 - core index']
  #allocation1 [shape = 'u32[144,128]{1,0:T(1,128)}', space=vmem, size = 0x12000, scoped, tag = 'internal scratch']
  #allocation2 [shape = 'f32[1,1]{1,0:T(1,128)S(1)}', space=vmem, size = 0x200, scoped, tag = 'scoped memory for tpu_custom_call.1']
  #allocation3 [shape = 'f32[1,1]{1,0:T(1,128)S(1)}', space=vmem, size = 0x200, scoped, tag = 'scoped memory for tpu_custom_call.1']
  %s0 = inlined_call_operand.vmem [shape: f32[16,8,4], index: 0, kind: input, shape index: {}]
  %s1 = inlined_call_operand.vmem [shape: f32[4,128], index: 1, kind: input, shape index: {}]
  %s2 = inlined_call_operand.vmem [shape: f32[32,128], index: 2, kind: input, shape index: {}]
  %s3 = inlined_call_operand.vmem [shape: f32[1,128], index: 3, kind: input, shape index: {}]
  %s4 = inlined_call_operand.vmem [shape: f32[64,128], index: 4, kind: input, shape index: {}]
  %s5 = inlined_call_operand.vmem [shape: f32[1,128], index: 5, kind: input, shape index: {}]
  %s6 = inlined_call_operand.vmem [shape: f32[1,32], index: 6, kind: input, shape index: {}]
  %s7 = inlined_call_operand.<no memory space> [shape: f32[1,1], index: 7, kind: input, shape index: {}]
  %s8 = inlined_call_operand.vmem [shape: f32[32,128], index: 8, kind: input, shape index: {}]
  %s9 = inlined_call_operand.vmem [shape: f32[1,128], index: 9, kind: input, shape index: {}]
  %s10 = inlined_call_operand.vmem [shape: f32[128,64], index: 10, kind: input, shape index: {}]
  %s11 = inlined_call_operand.vmem [shape: f32[1,64], index: 11, kind: input, shape index: {}]
  %s12 = inlined_call_operand.vmem [shape: f32[64,1], index: 12, kind: input, shape index: {}]
  %s13 = inlined_call_operand.<no memory space> [shape: f32[1,1], index: 13, kind: input, shape index: {}]
  %s14 = inlined_call_operand.vmem [shape: f32[16,1], index: 14, kind: output, shape index: {}]
  %s15 = sld [smem:[#allocation0]]
  $region89: #{tpu_custom_call.1} parent=0
    _
  %s17 = ssub.s32 1, %s15
  %s18 = scalar_select 0, %s17, %s15
  %v19 = vstv %s7
  %20 = vst [vmem:[#allocation2] sm:$0x1] %v19
  %v21 = vstv %s13
  %22 = vst [vmem:[#allocation3] sm:$0x1] %v21
  loop: start=0, step=1, limit=4
  $region2: #{tpu_custom_call.1} parent=0 // loop_pre_header
    _
  $region3: #{tpu_custom_call.1} parent=0 // loop_header
    %s24 = sphi 0, %s28
    %p25 = scmp.ge.s32.totalorder %s24, 4
    %s34 = sphi 0, %s36
    %s37 = sphi 0, %s34
    %s38 = sphi 0, %s37
    %s54 = sphi 0, %s38
    %s58 = sphi 0, %s58
    %s60 = sphi 0, %s58
    %s61 = sphi 0, %s60
    %s75 = sphi 0, %s61
    %s79 = sphi 0, %s79
    %s81 = sphi 0, %s79
    %s82 = sphi 0, %s81
    %s96 = sphi 0, %s82
    %s100 = sphi 0, %s100
    %s102 = sphi 0, %s100
    %s103 = sphi 0, %s102
    %s117 = sphi 0, %s103
    %s121 = sphi 0, %s121
    %s123 = sphi 0, %s121
    %s124 = sphi 0, %s123
    %s138 = sphi 0, %s124
    %s142 = sphi 0, %s142
    %s144 = sphi 0, %s142
    %s145 = sphi 0, %s144
    %s159 = sphi 0, %s145
    %s163 = sphi 0, %s163
    %s165 = sphi 0, %s163
    %s166 = sphi 0, %s165
    %s180 = sphi 0, %s166
    %s184 = sphi 0, %s184
    %s186 = sphi 0, %s184
    %s187 = sphi 0, %s186
    %s201 = sphi 0, %s187
    %s205 = sphi 0, %s205
    %s207 = sphi 0, %s205
    %s208 = sphi 0, %s207
    %s222 = sphi 0, %s208
    %s226 = sphi 0, %s226
    %s228 = sphi 0, %s226
    %s229 = sphi 0, %s228
    %s243 = sphi 0, %s229
    %s247 = sphi 0, %s247
    %s249 = sphi 0, %s247
    %s250 = sphi 0, %s249
    %s264 = sphi 0, %s250
    %s268 = sphi 0, %s268
    %s270 = sphi 0, %s268
    %s271 = sphi 0, %s270
    %s285 = sphi 0, %s271
    %s289 = sphi 0, %s289
    %s291 = sphi 0, %s289
    %s292 = sphi 0, %s291
    %s306 = sphi 0, %s292
    %s310 = sphi 0, %s310
    %s312 = sphi 0, %s310
    %s313 = sphi 0, %s312
    %s327 = sphi 0, %s313
    %s333 = sphi 0, %s335
    %s336 = sphi 0, %s333
    %s337 = sphi 0, %s336
    %s353 = sphi 0, %s337
  $region4: #{tpu_custom_call.1} parent=0 // loop_header_branch
    %27 = sbr.rel (%p25) target = $region8
  $region5: #{tpu_custom_call.1} parent=0 // loop_body
    %s29 = ssub.s32 %s24, 1
    %s30 = ssub.s32 %s24, 2
    %s31 = sadd.s32 %s24, 1
    %s32 = ssub.s32 %s24, %s31
    %p33 = scmp.eq.s32.totalorder %s32, 0
    %s35 = sadd.s32 %s34, 1
    %s36 = scalar_select %p33, %s34, %s35
    %p39 = pneg %p33
    %p40 = scmp.eq.s32.totalorder %s24, 1
    %p41 = por %p39, %p40
    %p42 = scmp.ne.s32.totalorder %s34, %s37
    %p43 = scmp.eq.s32.totalorder %s24, 0
    %p44 = por %p42, %p43
    %p45 = scmp.ne.s32.totalorder %s34, %s37
    %p46 = scmp.eq.s32.totalorder %s29, 1
    %p47 = por %p45, %p46
    %p48 = scmp.ne.s32.totalorder %s37, %s38
    %p49 = scmp.eq.s32.totalorder %s29, 0
    %p50 = por %p48, %p49
    %p51 = scmp.ne.s32.totalorder %s37, %s38
    %p52 = scmp.eq.s32.totalorder %s30, 1
    %p53 = por %p51, %p52
    %p55 = scmp.ne.s32.totalorder %s38, %s54
    %p56 = scmp.eq.s32.totalorder %s30, 0
    %p57 = por %p55, %p56
    %s59 = sadd.s32 %s58, 1
    %p62 = scmp.eq.s32.totalorder %s24, 1
    %p63 = scmp.ne.s32.totalorder %s58, %s60
    %p64 = scmp.eq.s32.totalorder %s24, 0
    %p65 = por %p63, %p64
    %p66 = scmp.ne.s32.totalorder %s58, %s60
    %p67 = scmp.eq.s32.totalorder %s29, 1
    %p68 = por %p66, %p67
    %p69 = scmp.ne.s32.totalorder %s60, %s61
    %p70 = scmp.eq.s32.totalorder %s29, 0
    %p71 = por %p69, %p70
    %p72 = scmp.ne.s32.totalorder %s60, %s61
    %p73 = scmp.eq.s32.totalorder %s30, 1
    %p74 = por %p72, %p73
    %p76 = scmp.ne.s32.totalorder %s61, %s75
    %p77 = scmp.eq.s32.totalorder %s30, 0
    %p78 = por %p76, %p77
    %s80 = sadd.s32 %s79, 1
    %p83 = scmp.eq.s32.totalorder %s24, 1
    %p84 = scmp.ne.s32.totalorder %s79, %s81
    %p85 = scmp.eq.s32.totalorder %s24, 0
    %p86 = por %p84, %p85
    %p87 = scmp.ne.s32.totalorder %s79, %s81
    %p88 = scmp.eq.s32.totalorder %s29, 1
    %p89 = por %p87, %p88
    %p90 = scmp.ne.s32.totalorder %s81, %s82
    %p91 = scmp.eq.s32.totalorder %s29, 0
    %p92 = por %p90, %p91
    %p93 = scmp.ne.s32.totalorder %s81, %s82
    %p94 = scmp.eq.s32.totalorder %s30, 1
    %p95 = por %p93, %p94
    %p97 = scmp.ne.s32.totalorder %s82, %s96
    %p98 = scmp.eq.s32.totalorder %s30, 0
    %p99 = por %p97, %p98
    %s101 = sadd.s32 %s100, 1
    %p104 = scmp.eq.s32.totalorder %s24, 1
    %p105 = scmp.ne.s32.totalorder %s100, %s102
    %p106 = scmp.eq.s32.totalorder %s24, 0
    %p107 = por %p105, %p106
    %p108 = scmp.ne.s32.totalorder %s100, %s102
    %p109 = scmp.eq.s32.totalorder %s29, 1
    %p110 = por %p108, %p109
    %p111 = scmp.ne.s32.totalorder %s102, %s103
    %p112 = scmp.eq.s32.totalorder %s29, 0
    %p113 = por %p111, %p112
    %p114 = scmp.ne.s32.totalorder %s102, %s103
    %p115 = scmp.eq.s32.totalorder %s30, 1
    %p116 = por %p114, %p115
    %p118 = scmp.ne.s32.totalorder %s103, %s117
    %p119 = scmp.eq.s32.totalorder %s30, 0
    %p120 = por %p118, %p119
    %s122 = sadd.s32 %s121, 1
    %p125 = scmp.eq.s32.totalorder %s24, 1
    %p126 = scmp.ne.s32.totalorder %s121, %s123
    %p127 = scmp.eq.s32.totalorder %s24, 0
    %p128 = por %p126, %p127
    %p129 = scmp.ne.s32.totalorder %s121, %s123
    %p130 = scmp.eq.s32.totalorder %s29, 1
    %p131 = por %p129, %p130
    %p132 = scmp.ne.s32.totalorder %s123, %s124
    %p133 = scmp.eq.s32.totalorder %s29, 0
    %p134 = por %p132, %p133
    %p135 = scmp.ne.s32.totalorder %s123, %s124
    %p136 = scmp.eq.s32.totalorder %s30, 1
    %p137 = por %p135, %p136
    %p139 = scmp.ne.s32.totalorder %s124, %s138
    %p140 = scmp.eq.s32.totalorder %s30, 0
    %p141 = por %p139, %p140
    %s143 = sadd.s32 %s142, 1
    %p146 = scmp.eq.s32.totalorder %s24, 1
    %p147 = scmp.ne.s32.totalorder %s142, %s144
    %p148 = scmp.eq.s32.totalorder %s24, 0
    %p149 = por %p147, %p148
    %p150 = scmp.ne.s32.totalorder %s142, %s144
    %p151 = scmp.eq.s32.totalorder %s29, 1
    %p152 = por %p150, %p151
    %p153 = scmp.ne.s32.totalorder %s144, %s145
    %p154 = scmp.eq.s32.totalorder %s29, 0
    %p155 = por %p153, %p154
    %p156 = scmp.ne.s32.totalorder %s144, %s145
    %p157 = scmp.eq.s32.totalorder %s30, 1
    %p158 = por %p156, %p157
    %p160 = scmp.ne.s32.totalorder %s145, %s159
    %p161 = scmp.eq.s32.totalorder %s30, 0
    %p162 = por %p160, %p161
    %s164 = sadd.s32 %s163, 1
    %p167 = scmp.eq.s32.totalorder %s24, 1
    %p168 = scmp.ne.s32.totalorder %s163, %s165
    %p169 = scmp.eq.s32.totalorder %s24, 0
    %p170 = por %p168, %p169
    %p171 = scmp.ne.s32.totalorder %s163, %s165
    %p172 = scmp.eq.s32.totalorder %s29, 1
    %p173 = por %p171, %p172
    %p174 = scmp.ne.s32.totalorder %s165, %s166
    %p175 = scmp.eq.s32.totalorder %s29, 0
    %p176 = por %p174, %p175
    %p177 = scmp.ne.s32.totalorder %s165, %s166
    %p178 = scmp.eq.s32.totalorder %s30, 1
    %p179 = por %p177, %p178
    %p181 = scmp.ne.s32.totalorder %s166, %s180
    %p182 = scmp.eq.s32.totalorder %s30, 0
    %p183 = por %p181, %p182
    %s185 = sadd.s32 %s184, 1
    %p188 = scmp.eq.s32.totalorder %s24, 1
    %p189 = scmp.ne.s32.totalorder %s184, %s186
    %p190 = scmp.eq.s32.totalorder %s24, 0
    %p191 = por %p189, %p190
    %p192 = scmp.ne.s32.totalorder %s184, %s186
    %p193 = scmp.eq.s32.totalorder %s29, 1
    %p194 = por %p192, %p193
    %p195 = scmp.ne.s32.totalorder %s186, %s187
    %p196 = scmp.eq.s32.totalorder %s29, 0
    %p197 = por %p195, %p196
    %p198 = scmp.ne.s32.totalorder %s186, %s187
    %p199 = scmp.eq.s32.totalorder %s30, 1
    %p200 = por %p198, %p199
    %p202 = scmp.ne.s32.totalorder %s187, %s201
    %p203 = scmp.eq.s32.totalorder %s30, 0
    %p204 = por %p202, %p203
    %s206 = sadd.s32 %s205, 1
    %p209 = scmp.eq.s32.totalorder %s24, 1
    %p210 = scmp.ne.s32.totalorder %s205, %s207
    %p211 = scmp.eq.s32.totalorder %s24, 0
    %p212 = por %p210, %p211
    %p213 = scmp.ne.s32.totalorder %s205, %s207
    %p214 = scmp.eq.s32.totalorder %s29, 1
    %p215 = por %p213, %p214
    %p216 = scmp.ne.s32.totalorder %s207, %s208
    %p217 = scmp.eq.s32.totalorder %s29, 0
    %p218 = por %p216, %p217
    %p219 = scmp.ne.s32.totalorder %s207, %s208
    %p220 = scmp.eq.s32.totalorder %s30, 1
    %p221 = por %p219, %p220
    %p223 = scmp.ne.s32.totalorder %s208, %s222
    %p224 = scmp.eq.s32.totalorder %s30, 0
    %p225 = por %p223, %p224
    %s227 = sadd.s32 %s226, 1
    %p230 = scmp.eq.s32.totalorder %s24, 1
    %p231 = scmp.ne.s32.totalorder %s226, %s228
    %p232 = scmp.eq.s32.totalorder %s24, 0
    %p233 = por %p231, %p232
    %p234 = scmp.ne.s32.totalorder %s226, %s228
    %p235 = scmp.eq.s32.totalorder %s29, 1
    %p236 = por %p234, %p235
    %p237 = scmp.ne.s32.totalorder %s228, %s229
    %p238 = scmp.eq.s32.totalorder %s29, 0
    %p239 = por %p237, %p238
    %p240 = scmp.ne.s32.totalorder %s228, %s229
    %p241 = scmp.eq.s32.totalorder %s30, 1
    %p242 = por %p240, %p241
    %p244 = scmp.ne.s32.totalorder %s229, %s243
    %p245 = scmp.eq.s32.totalorder %s30, 0
    %p246 = por %p244, %p245
    %s248 = sadd.s32 %s247, 1
    %p251 = scmp.eq.s32.totalorder %s24, 1
    %p252 = scmp.ne.s32.totalorder %s247, %s249
    %p253 = scmp.eq.s32.totalorder %s24, 0
    %p254 = por %p252, %p253
    %p255 = scmp.ne.s32.totalorder %s247, %s249
    %p256 = scmp.eq.s32.totalorder %s29, 1
    %p257 = por %p255, %p256
    %p258 = scmp.ne.s32.totalorder %s249, %s250
    %p259 = scmp.eq.s32.totalorder %s29, 0
    %p260 = por %p258, %p259
    %p261 = scmp.ne.s32.totalorder %s249, %s250
    %p262 = scmp.eq.s32.totalorder %s30, 1
    %p263 = por %p261, %p262
    %p265 = scmp.ne.s32.totalorder %s250, %s264
    %p266 = scmp.eq.s32.totalorder %s30, 0
    %p267 = por %p265, %p266
    %s269 = sadd.s32 %s268, 1
    %p272 = scmp.eq.s32.totalorder %s24, 1
    %p273 = scmp.ne.s32.totalorder %s268, %s270
    %p274 = scmp.eq.s32.totalorder %s24, 0
    %p275 = por %p273, %p274
    %p276 = scmp.ne.s32.totalorder %s268, %s270
    %p277 = scmp.eq.s32.totalorder %s29, 1
    %p278 = por %p276, %p277
    %p279 = scmp.ne.s32.totalorder %s270, %s271
    %p280 = scmp.eq.s32.totalorder %s29, 0
    %p281 = por %p279, %p280
    %p282 = scmp.ne.s32.totalorder %s270, %s271
    %p283 = scmp.eq.s32.totalorder %s30, 1
    %p284 = por %p282, %p283
    %p286 = scmp.ne.s32.totalorder %s271, %s285
    %p287 = scmp.eq.s32.totalorder %s30, 0
    %p288 = por %p286, %p287
    %s290 = sadd.s32 %s289, 1
    %p293 = scmp.eq.s32.totalorder %s24, 1
    %p294 = scmp.ne.s32.totalorder %s289, %s291
    %p295 = scmp.eq.s32.totalorder %s24, 0
    %p296 = por %p294, %p295
    %p297 = scmp.ne.s32.totalorder %s289, %s291
    %p298 = scmp.eq.s32.totalorder %s29, 1
    %p299 = por %p297, %p298
    %p300 = scmp.ne.s32.totalorder %s291, %s292
    %p301 = scmp.eq.s32.totalorder %s29, 0
    %p302 = por %p300, %p301
    %p303 = scmp.ne.s32.totalorder %s291, %s292
    %p304 = scmp.eq.s32.totalorder %s30, 1
    %p305 = por %p303, %p304
    %p307 = scmp.ne.s32.totalorder %s292, %s306
    %p308 = scmp.eq.s32.totalorder %s30, 0
    %p309 = por %p307, %p308
    %s311 = sadd.s32 %s310, 1
    %p314 = scmp.eq.s32.totalorder %s24, 1
    %p315 = scmp.ne.s32.totalorder %s310, %s312
    %p316 = scmp.eq.s32.totalorder %s24, 0
    %p317 = por %p315, %p316
    %p318 = scmp.ne.s32.totalorder %s310, %s312
    %p319 = scmp.eq.s32.totalorder %s29, 1
    %p320 = por %p318, %p319
    %p321 = scmp.ne.s32.totalorder %s312, %s313
    %p322 = scmp.eq.s32.totalorder %s29, 0
    %p323 = por %p321, %p322
    %p324 = scmp.ne.s32.totalorder %s312, %s313
    %p325 = scmp.eq.s32.totalorder %s30, 1
    %p326 = por %p324, %p325
    %p328 = scmp.ne.s32.totalorder %s313, %s327
    %p329 = scmp.eq.s32.totalorder %s30, 0
    %p330 = por %p328, %p329
    %s331 = ssub.s32 %s24, %s31
    %p332 = scmp.eq.s32.totalorder %s331, 0
    %s334 = sadd.s32 %s333, 1
    %s335 = scalar_select %p332, %s333, %s334
    %p338 = pneg %p332
    %p339 = scmp.eq.s32.totalorder %s24, 1
    %p340 = por %p338, %p339
    %p341 = scmp.ne.s32.totalorder %s333, %s336
    %p342 = scmp.eq.s32.totalorder %s24, 0
    %p343 = por %p341, %p342
    %p344 = scmp.ne.s32.totalorder %s333, %s336
    %p345 = scmp.eq.s32.totalorder %s29, 1
    %p346 = por %p344, %p345
    %p347 = scmp.ne.s32.totalorder %s336, %s337
    %p348 = scmp.eq.s32.totalorder %s29, 0
    %p349 = por %p347, %p348
    %p350 = scmp.ne.s32.totalorder %s336, %s337
    %p351 = scmp.eq.s32.totalorder %s30, 1
    %p352 = por %p350, %p351
    %p354 = scmp.ne.s32.totalorder %s337, %s353
    %p355 = scmp.eq.s32.totalorder %s30, 0
    %p356 = por %p354, %p355
    %p357 = scmp.le.s32.totalorder 1, %s24
    %p358 = scmp.lt.s32.totalorder %s24, 3
    %p359 = pnand %p357, %p358
    %p360 = pneg %p359
    // Predicated region
    $region9: #{tpu_custom_call.1} parent=5 // pred_check
      _
    $region10: #{tpu_custom_call.1} parent=5 // pred_check_branch
      %362 = sbr.rel (%p359) target = $region12
    $region11: #{tpu_custom_call.1} parent=5 // pred_region
      %s363 = ssub.s32 %s24, 1
      // Predicated region
      $region13: #{tpu_custom_call.1} parent=11 // pred_check
        %p364 = pneg %p71
      $region14: #{tpu_custom_call.1} parent=11 // pred_check_branch
        %366 = sbr.rel (%p364) target = $region16
      $region15: #{tpu_custom_call.1} parent=11 // pred_region
        _
      $region16: #{tpu_custom_call.1} parent=11 // pred_fallthru
        _
      // Predicated region
      $region17: #{tpu_custom_call.1} parent=11 // pred_check
        %p367 = pneg %p92
      $region18: #{tpu_custom_call.1} parent=11 // pred_check_branch
        %369 = sbr.rel (%p367) target = $region20
      $region19: #{tpu_custom_call.1} parent=11 // pred_region
        _
      $region20: #{tpu_custom_call.1} parent=11 // pred_fallthru
        _
      // Predicated region
      $region21: #{tpu_custom_call.1} parent=11 // pred_check
        %p370 = pneg %p113
      $region22: #{tpu_custom_call.1} parent=11 // pred_check_branch
        %372 = sbr.rel (%p370) target = $region24
      $region23: #{tpu_custom_call.1} parent=11 // pred_region
        _
      $region24: #{tpu_custom_call.1} parent=11 // pred_fallthru
        _
      // Predicated region
      $region25: #{tpu_custom_call.1} parent=11 // pred_check
        %p373 = pneg %p134
      $region26: #{tpu_custom_call.1} parent=11 // pred_check_branch
        %375 = sbr.rel (%p373) target = $region28
      $region27: #{tpu_custom_call.1} parent=11 // pred_region
        _
      $region28: #{tpu_custom_call.1} parent=11 // pred_fallthru
        _
      // Predicated region
      $region29: #{tpu_custom_call.1} parent=11 // pred_check
        %p376 = pneg %p155
      $region30: #{tpu_custom_call.1} parent=11 // pred_check_branch
        %378 = sbr.rel (%p376) target = $region32
      $region31: #{tpu_custom_call.1} parent=11 // pred_region
        _
      $region32: #{tpu_custom_call.1} parent=11 // pred_fallthru
        _
      // Predicated region
      $region33: #{tpu_custom_call.1} parent=11 // pred_check
        %p379 = pneg %p176
      $region34: #{tpu_custom_call.1} parent=11 // pred_check_branch
        %381 = sbr.rel (%p379) target = $region36
      $region35: #{tpu_custom_call.1} parent=11 // pred_region
        _
      $region36: #{tpu_custom_call.1} parent=11 // pred_fallthru
        _
      // Predicated region
      $region37: #{tpu_custom_call.1} parent=11 // pred_check
        %p382 = pneg %p197
      $region38: #{tpu_custom_call.1} parent=11 // pred_check_branch
        %384 = sbr.rel (%p382) target = $region40
      $region39: #{tpu_custom_call.1} parent=11 // pred_region
        _
      $region40: #{tpu_custom_call.1} parent=11 // pred_fallthru
        _
      // Predicated region
      $region41: #{tpu_custom_call.1} parent=11 // pred_check
        %p385 = pneg %p218
      $region42: #{tpu_custom_call.1} parent=11 // pred_check_branch
        %387 = sbr.rel (%p385) target = $region44
      $region43: #{tpu_custom_call.1} parent=11 // pred_region
        _
      $region44: #{tpu_custom_call.1} parent=11 // pred_fallthru
        _
      // Predicated region
      $region45: #{tpu_custom_call.1} parent=11 // pred_check
        %p388 = pneg %p239
      $region46: #{tpu_custom_call.1} parent=11 // pred_check_branch
        %390 = sbr.rel (%p388) target = $region48
      $region47: #{tpu_custom_call.1} parent=11 // pred_region
        _
      $region48: #{tpu_custom_call.1} parent=11 // pred_fallthru
        _
      // Predicated region
      $region49: #{tpu_custom_call.1} parent=11 // pred_check
        %p391 = pneg %p260
      $region50: #{tpu_custom_call.1} parent=11 // pred_check_branch
        %393 = sbr.rel (%p391) target = $region52
      $region51: #{tpu_custom_call.1} parent=11 // pred_region
        _
      $region52: #{tpu_custom_call.1} parent=11 // pred_fallthru
        _
      // Predicated region
      $region53: #{tpu_custom_call.1} parent=11 // pred_check
        %p394 = pneg %p281
      $region54: #{tpu_custom_call.1} parent=11 // pred_check_branch
        %396 = sbr.rel (%p394) target = $region56
      $region55: #{tpu_custom_call.1} parent=11 // pred_region
        _
      $region56: #{tpu_custom_call.1} parent=11 // pred_fallthru
        _
      // Predicated region
      $region57: #{tpu_custom_call.1} parent=11 // pred_check
        %p397 = pneg %p302
      $region58: #{tpu_custom_call.1} parent=11 // pred_check_branch
        %399 = sbr.rel (%p397) target = $region60
      $region59: #{tpu_custom_call.1} parent=11 // pred_region
        _
      $region60: #{tpu_custom_call.1} parent=11 // pred_fallthru
        _
      // Predicated region
      $region61: #{tpu_custom_call.1} parent=11 // pred_check
        %p400 = pneg %p323
      $region62: #{tpu_custom_call.1} parent=11 // pred_check_branch
        %402 = sbr.rel (%p400) target = $region64
      $region63: #{tpu_custom_call.1} parent=11 // pred_region
        _
      $region64: #{tpu_custom_call.1} parent=11 // pred_fallthru
        _
    $region12: #{tpu_custom_call.1} parent=5 // pred_fallthru
      _
    %p403 = scmp.lt.s32.totalorder %s24, 2
    // Predicated region
    $region65: #{tpu_custom_call.1} parent=5 // pred_check
      %p404 = pneg %p403
    $region66: #{tpu_custom_call.1} parent=5 // pred_check_branch
      %406 = sbr.rel (%p404) target = $region68
    $region67: #{tpu_custom_call.1} parent=5 // pred_region
      // Predicated region
      $region69: #{tpu_custom_call.1} parent=67 // pred_check
        %p407 = pneg %p44
      $region70: #{tpu_custom_call.1} parent=67 // pred_check_branch
        %409 = sbr.rel (%p407) target = $region72
      $region71: #{tpu_custom_call.1} parent=67 // pred_region
        %s410 = smul.u32 8, %s24
        %p411 = scmp.lt.s32.totalorder %s410, 15
        %s412 = scalar_select %p411, %s410, 15
        %s413 = smul.addr %s412, 8
        %s414 = scalar_lea.vmem %s0, %s413
        %s415 = smul.u32 8, %s24
      $region72: #{tpu_custom_call.1} parent=67 // pred_fallthru
        _
    $region68: #{tpu_custom_call.1} parent=5 // pred_fallthru
      _
    %p416 = scmp.le.s32.totalorder 1, %s24
    %p417 = scmp.lt.s32.totalorder %s24, 3
    %p418 = pnand %p416, %p417
    %p419 = pneg %p418
    // Predicated region
    $region73: #{tpu_custom_call.1} parent=5 // pred_check
      _
    $region74: #{tpu_custom_call.1} parent=5 // pred_check_branch
      %421 = sbr.rel (%p418) target = $region76
    $region75: #{tpu_custom_call.1} parent=5 // pred_region
      %s422 = ssub.s32 %s24, 1
      %s423 = smul.u32 8, %s29
      %p424 = scmp.lt.s32.totalorder %s423, 15
      %s425 = scalar_select %p424, %s423, 15
      %s426 = smul.addr %s425, 8
      %s427 = scalar_lea.vmem %s0, %s426
      %p428 = pneg %p50
      %p429 = pneg %p47
      %p430 = pneg %p71
      %p431 = pneg %p68
      %p432 = pneg %p92
      %p433 = pneg %p89
      %p434 = pneg %p113
      %p435 = pneg %p110
      %p436 = pneg %p134
      %p437 = pneg %p131
      %p438 = pneg %p155
      %p439 = pneg %p152
      %p440 = pneg %p176
      %p441 = pneg %p173
      %p442 = pneg %p197
      %p443 = pneg %p194
      %p444 = pneg %p218
      %p445 = pneg %p215
      %p446 = pneg %p239
      %p447 = pneg %p236
      %p448 = pneg %p260
      %p449 = pneg %p257
      %p450 = pneg %p281
      %p451 = pneg %p278
      %p452 = pneg %p302
      %p453 = pneg %p299
      %p454 = pneg %p323
      %p455 = pneg %p320
      %p456 = pneg %p349
      %p457 = pneg %p346
      %p458 = scmp.lt.s32.totalorder %s29, 1
      %s459 = scalar_select %p458, %s29, 1
      %s460 = smul.addr %s459, 8
      %s461 = scalar_lea.vmem %s14, %s460
      %s462 = smul.u32 8, %s29
      %p463 = scmp.lt.s32.totalorder %s462, 15
      %s464 = scalar_select %p463, %s462, 15
      %s465 = smul.addr %s464, 8
      %s466 = scalar_lea.vmem %s0, %s465
      %s467 = smul.u32 8, %s29
      %p468 = scmp.lt.s32.totalorder %s29, 1
      %s469 = scalar_select %p468, %s29, 1
      %s470 = smul.addr %s469, 8
      %s471 = scalar_lea.vmem %s14, %s470
      %v472 = vld [vmem:[%s466] sm:$0xff]
      %v473 = vld [vmem:[%s466 + $0x8] sm:$0xff]
      %v474 = vld [vmem:[%s466 + $0x10] sm:$0xff]
      %v475 = vld [vmem:[%s466 + $0x18] sm:$0xff]
      %v476 = vld [vmem:[%s466 + $0x20] sm:$0xff]
      %v477 = vld [vmem:[%s466 + $0x28] sm:$0xff]
      %v478 = vld [vmem:[%s466 + $0x30] sm:$0xff]
      %v479 = vld [vmem:[%s466 + $0x38] sm:$0xff]
      %v480 = vld [vmem:[%s1] sm:$0xf]
      %v481 = vld [vmem:[%s3] sm:$0x1]
      %v483 = vlaneseq
      %v484 = vshrl.u32 %v483, 7
      %v485 = vsub.s32 0, %v484
      %v486 = vrot.slane %v481, %v485
      %vm488 = vcmask 31744
      %v490 = vsel %vm488, %v472, 0
      %v493 = vsel %vm488, %v473, 0
      %v496 = vsel %vm488, %v474, 0
      %v499 = vsel %vm488, %v475, 0
      %v502 = vsel %vm488, %v476, 0
      %v505 = vsel %vm488, %v477, 0
      %v508 = vsel %vm488, %v478, 0
      %v511 = vsel %vm488, %v479, 0
      %vm513 = vcmask 1043456
      %v515 = vsel %vm513, %v480, 0
      %517 = vmatprep.subr.mxu0 0.0
      %518 = vmatpush1.msra.mxu0 %v515
      %519 = vmatprep.subr.mxu0 0.0
      %520 = vmatpush1.msra.mxu0 0.0
      %521 = vmatprep.subr.mxu0 0.0
      %522 = vmatpush1.msra.mxu0 0.0
      %523 = vmatprep.subr.mxu0 0.0
      %524 = vmatpush1.msra.mxu0 0.0
      %525 = vmatprep.subr.mxu0 0.0
      %526 = vmatpush1.msra.mxu0 0.0
      %527 = vmatprep.subr.mxu0 0.0
      %528 = vmatpush1.msra.mxu0 0.0
      %529 = vmatprep.subr.mxu0 0.0
      %530 = vmatpush1.msra.mxu0 0.0
      %531 = vmatprep.subr.mxu0 0.0
      %532 = vmatpush1.msra.mxu0 0.0
      %533 = vmatprep.subr.mxu0 0.0
      %534 = vmatpush1.msra.mxu0 0.0
      %535 = vmatprep.subr.mxu0 0.0
      %536 = vmatpush1.msra.mxu0 0.0
      %537 = vmatprep.subr.mxu0 0.0
      %538 = vmatpush1.msra.mxu0 0.0
      %539 = vmatprep.subr.mxu0 0.0
      %540 = vmatpush1.msra.mxu0 0.0
      %541 = vmatprep.subr.mxu0 0.0
      %542 = vmatpush1.msra.mxu0 0.0
      %543 = vmatprep.subr.mxu0 0.0
      %544 = vmatpush1.msra.mxu0 0.0
      %545 = vmatprep.subr.mxu0 0.0
      %546 = vmatpush1.msra.mxu0 0.0
      %547 = vmatprep.subr.mxu0 0.0
      %548 = vmatpush1.msra.mxu0 0.0
      %549 = vmatprep.subr.mxu0 0.0
      %550 = vmatpush1.msra.mxu0 0.0
      %551 = vmatprep.subr.mxu0 0.0
      %552 = vmatpush1.msra.mxu0 0.0
      %553 = vmatprep.subr.mxu0 0.0
      %554 = vmatpush1.msra.mxu0 0.0
      %555 = vmatprep.subr.mxu0 0.0
      %556 = vmatpush1.msra.mxu0 0.0
      %557 = vmatprep.subr.mxu0 0.0
      %558 = vmatpush1.msra.mxu0 0.0
      %559 = vmatprep.subr.mxu0 0.0
      %560 = vmatpush1.msra.mxu0 0.0
      %561 = vmatprep.subr.mxu0 0.0
      %562 = vmatpush1.msra.mxu0 0.0
      %563 = vmatprep.subr.mxu0 0.0
      %564 = vmatpush1.msra.mxu0 0.0
      %565 = vmatprep.subr.mxu0 0.0
      %566 = vmatpush1.msra.mxu0 0.0
      %567 = vmatprep.subr.mxu0 0.0
      %568 = vmatpush1.msra.mxu0 0.0
      %569 = vmatprep.subr.mxu0 0.0
      %570 = vmatpush1.msra.mxu0 0.0
      %571 = vmatprep.subr.mxu0 0.0
      %572 = vmatpush1.msra.mxu0 0.0
      %573 = vmatprep.subr.mxu0 0.0
      %574 = vmatpush1.msra.mxu0 0.0
      %575 = vmatprep.subr.mxu0 0.0
      %576 = vmatpush1.msra.mxu0 0.0
      %577 = vmatprep.subr.mxu0 0.0
      %578 = vmatpush1.msra.mxu0 0.0
      %579 = vmatprep.subr.mxu0 0.0
      %580 = vmatpush1.msra.mxu0 0.0
      %581 = vmatprep.mubr.f32.mxu0 0.0
      %582 = vmatmul.mubr.f32.gmra.mrb[0].mxu0 %v490
      %v583 = vpop.f32.mrb[0].mxu0
      %v584 = vadd.f32 %v486, %v583
      %v585 = vpop.f32.mrb[0].mxu0
      %586 = vmatprep.mubr.f32.mxu0 0.0
      %587 = vmatmul.mubr.f32.gmra.mrb[0].mxu0 %v493
      %v588 = vpop.f32.mrb[0].mxu0
      %v589 = vadd.f32 %v486, %v588
      %v590 = vpop.f32.mrb[0].mxu0
      %591 = vmatprep.mubr.f32.mxu0 0.0
      %592 = vmatmul.mubr.f32.gmra.mrb[0].mxu0 %v496
      %v593 = vpop.f32.mrb[0].mxu0
      %v594 = vadd.f32 %v486, %v593
      %v595 = vpop.f32.mrb[0].mxu0
      %596 = vmatprep.mubr.f32.mxu0 0.0
      %597 = vmatmul.mubr.f32.gmra.mrb[0].mxu0 %v499
      %v598 = vpop.f32.mrb[0].mxu0
      %v599 = vadd.f32 %v486, %v598
      %v600 = vpop.f32.mrb[0].mxu0
      %601 = vmatprep.mubr.f32.mxu0 0.0
      %602 = vmatmul.mubr.f32.gmra.mrb[0].mxu0 %v502
      %v603 = vpop.f32.mrb[0].mxu0
      %v604 = vadd.f32 %v486, %v603
      %v605 = vpop.f32.mrb[0].mxu0
      %606 = vmatprep.mubr.f32.mxu0 0.0
      %607 = vmatmul.mubr.f32.gmra.mrb[0].mxu0 %v505
      %v608 = vpop.f32.mrb[0].mxu0
      %v609 = vadd.f32 %v486, %v608
      %v610 = vpop.f32.mrb[0].mxu0
      %611 = vmatprep.mubr.f32.mxu0 0.0
      %612 = vmatmul.mubr.f32.gmra.mrb[0].mxu0 %v508
      %v613 = vpop.f32.mrb[0].mxu0
      %v614 = vadd.f32 %v486, %v613
      %v615 = vpop.f32.mrb[0].mxu0
      %616 = vmatprep.mubr.f32.mxu0 0.0
      %617 = vmatmul.mubr.f32.gmra.mrb[0].mxu0 %v511
      %v618 = vpop.f32.mrb[0].mxu0
      %v619 = vadd.f32 %v486, %v618
      %v620 = vpop.f32.mrb[0].mxu0
      %621 = vdwg.mxu0
      %v622 = vld [vmem:[%s2] sm:$0xff]
      %v623 = vld [vmem:[%s2 + $0x8] sm:$0xff]
      %v624 = vld [vmem:[%s2 + $0x10] sm:$0xff]
      %v625 = vld [vmem:[%s2 + $0x18] sm:$0xff]
      %v626 = vld [vmem:[%s4] sm:$0xff]
      %v627 = vld [vmem:[%s4 + $0x8] sm:$0xff]
      %v628 = vld [vmem:[%s4 + $0x10] sm:$0xff]
      %v629 = vld [vmem:[%s4 + $0x18] sm:$0xff]
      %v630 = vld [vmem:[%s4 + $0x20] sm:$0xff]
      %v631 = vld [vmem:[%s4 + $0x28] sm:$0xff]
      %v632 = vld [vmem:[%s4 + $0x30] sm:$0xff]
      %v633 = vld [vmem:[%s4 + $0x38] sm:$0xff]
      %v634 = vld [vmem:[%s5] sm:$0x1]
      %v636 = vlaneseq
      %v637 = vshrl.u32 %v636, 7
      %v638 = vsub.s32 0, %v637
      %v639 = vrot.slane %v634, %v638
      %v641 = vld [vmem:[%s6] sm:$0x1]
      %v642 = vld [vmem:[#allocation2] sm:$0x1]
      %vm643 = vcmask 261120
      %v645 = vsel %vm643, 0.0, 0
      %647 = vmatprep.subr.mxu0 0.0
      %648 = vmatpush1.msra.mxu0 %v622
      %649 = vmatprep.subr.mxu0 0.0
      %650 = vmatpush1.msra.mxu0 %v623
      %651 = vmatprep.subr.mxu0 0.0
      %652 = vmatpush1.msra.mxu0 %v624
      %653 = vmatprep.subr.mxu0 0.0
      %654 = vmatpush1.msra.mxu0 %v625
      %655 = vmatprep.subr.mxu0 0.0
      %656 = vmatpush1.msra.mxu0 0.0
      %657 = vmatprep.subr.mxu0 0.0
      %658 = vmatpush1.msra.mxu0 0.0
      %659 = vmatprep.subr.mxu0 0.0
      %660 = vmatpush1.msra.mxu0 0.0
      %661 = vmatprep.subr.mxu0 0.0
      %662 = vmatpush1.msra.mxu0 0.0
      %663 = vmatprep.subr.mxu0 0.0
      %664 = vmatpush1.msra.mxu0 0.0
      %665 = vmatprep.subr.mxu0 0.0
      %666 = vmatpush1.msra.mxu0 0.0
      %667 = vmatprep.subr.mxu0 0.0
      %668 = vmatpush1.msra.mxu0 0.0
      %669 = vmatprep.subr.mxu0 0.0
      %670 = vmatpush1.msra.mxu0 0.0
      %671 = vmatprep.subr.mxu0 0.0
      %672 = vmatpush1.msra.mxu0 0.0
      %673 = vmatprep.subr.mxu0 0.0
      %674 = vmatpush1.msra.mxu0 0.0
      %675 = vmatprep.subr.mxu0 0.0
      %676 = vmatpush1.msra.mxu0 0.0
      %677 = vmatprep.subr.mxu0 0.0
      %678 = vmatpush1.msra.mxu0 0.0
      %679 = vmatprep.subr.mxu0 0.0
      %680 = vmatpush1.msra.mxu0 0.0
      %681 = vmatprep.subr.mxu0 0.0
      %682 = vmatpush1.msra.mxu0 0.0
      %683 = vmatprep.subr.mxu0 0.0
      %684 = vmatpush1.msra.mxu0 0.0
      %685 = vmatprep.subr.mxu0 0.0
      %686 = vmatpush1.msra.mxu0 0.0
      %687 = vmatprep.subr.mxu0 0.0
      %688 = vmatpush1.msra.mxu0 0.0
      %689 = vmatprep.subr.mxu0 0.0
      %690 = vmatpush1.msra.mxu0 0.0
      %691 = vmatprep.subr.mxu0 0.0
      %692 = vmatpush1.msra.mxu0 0.0
      %693 = vmatprep.subr.mxu0 0.0
      %694 = vmatpush1.msra.mxu0 0.0
      %695 = vmatprep.subr.mxu0 0.0
      %696 = vmatpush1.msra.mxu0 0.0
      %697 = vmatprep.subr.mxu0 0.0
      %698 = vmatpush1.msra.mxu0 0.0
      %699 = vmatprep.subr.mxu0 0.0
      %700 = vmatpush1.msra.mxu0 0.0
      %701 = vmatprep.subr.mxu0 0.0
      %702 = vmatpush1.msra.mxu0 0.0
      %703 = vmatprep.subr.mxu0 0.0
      %704 = vmatpush1.msra.mxu0 0.0
      %705 = vmatprep.subr.mxu0 0.0
      %706 = vmatpush1.msra.mxu0 0.0
      %707 = vmatprep.subr.mxu0 0.0
      %708 = vmatpush1.msra.mxu0 0.0
      %709 = vmatprep.subr.mxu0 0.0
      %710 = vmatpush1.msra.mxu0 0.0
      %711 = vmatprep.mubr.f32.mxu0 0.0
      %712 = vmatmul.mubr.f32.gmra.mrb[0].mxu0 %v645
      %v713 = vpop.f32.mrb[0].mxu0
      %v714 = vadd.f32 0.0, %v713
      %v715 = vpop.f32.mrb[0].mxu0
      %716 = vdwg.mxu0
      %v718 = vrot.slane %v714, 1
      %v719 = vrot.slane %v714, 2
      %v720 = vrot.slane %v714, 3
      %v721 = vrot.slane %v714, 4
      %v722 = vrot.slane %v714, 5
      %v723 = vrot.slane %v714, 6
      %v724 = vrot.slane %v714, 7
      %v733 = vadd.f32 %v584, %v714
      %v734 = vadd.f32 %v589, %v718
      %v735 = vadd.f32 %v594, %v719
      %v736 = vadd.f32 %v599, %v720
      %v737 = vadd.f32 %v604, %v721
      %v738 = vadd.f32 %v609, %v722
      %v739 = vadd.f32 %v614, %v723
      %v740 = vadd.f32 %v619, %v724
      %v741 = vxor.u32 %v733, 2147483648
      %v742 = vxor.u32 %v734, 2147483648
      %v743 = vxor.u32 %v735, 2147483648
      %v744 = vxor.u32 %v736, 2147483648
      %v745 = vxor.u32 %v737, 2147483648
      %v746 = vxor.u32 %v738, 2147483648
      %v747 = vxor.u32 %v739, 2147483648
      %v748 = vxor.u32 %v740, 2147483648
      %v749 = vmul.f32 %v741, 1.442695
      %v750 = vpow.pop %v749
      %v751 = vmul.f32 %v742, 1.442695
      %v752 = vpow.pop %v751
      %v753 = vmul.f32 %v743, 1.442695
      %v754 = vpow.pop %v753
      %v755 = vmul.f32 %v744, 1.442695
      %v756 = vpow.pop %v755
      %v757 = vmul.f32 %v745, 1.442695
      %v758 = vpow.pop %v757
      %v759 = vmul.f32 %v746, 1.442695
      %v760 = vpow.pop %v759
      %v761 = vmul.f32 %v747, 1.442695
      %v762 = vpow.pop %v761
      %v763 = vmul.f32 %v748, 1.442695
      %v764 = vpow.pop %v763
      %v765 = vadd.f32 %v750, 1.0
      %v766 = vadd.f32 %v752, 1.0
      %v767 = vadd.f32 %v754, 1.0
      %v768 = vadd.f32 %v756, 1.0
      %v769 = vadd.f32 %v758, 1.0
      %v770 = vadd.f32 %v760, 1.0
      %v771 = vadd.f32 %v762, 1.0
      %v772 = vadd.f32 %v764, 1.0
      %v773 = vrcp.pop %v765
      %v774 = vmul.f32 1.0, %v773
      %v775 = vrcp.pop %v766
      %v776 = vmul.f32 1.0, %v775
      %v777 = vrcp.pop %v767
      %v778 = vmul.f32 1.0, %v777
      %v779 = vrcp.pop %v768
      %v780 = vmul.f32 1.0, %v779
      %v781 = vrcp.pop %v769
      %v782 = vmul.f32 1.0, %v781
      %v783 = vrcp.pop %v770
      %v784 = vmul.f32 1.0, %v783
      %v785 = vrcp.pop %v771
      %v786 = vmul.f32 1.0, %v785
      %v787 = vrcp.pop %v772
      %v788 = vmul.f32 1.0, %v787
      %v789 = vtanh.pop %v733
      %v790 = vtanh.pop %v734
      %v791 = vtanh.pop %v735
      %v792 = vtanh.pop %v736
      %v793 = vtanh.pop %v737
      %v794 = vtanh.pop %v738
      %v795 = vtanh.pop %v739
      %v796 = vtanh.pop %v740
      %v797 = vmul.f32 %v774, 0.0
      %v798 = vmul.f32 %v776, 0.0
      %v799 = vmul.f32 %v778, 0.0
      %v800 = vmul.f32 %v780, 0.0
      %v801 = vmul.f32 %v782, 0.0
      %v802 = vmul.f32 %v784, 0.0
      %v803 = vmul.f32 %v786, 0.0
      %v804 = vmul.f32 %v788, 0.0
      %813 = vrot.lane.b32.xlu0 %v789, 64
      %v814 = vpop.permute.xlu0 %813
      %815 = vrot.lane.b32.xlu0 %v790, 64
      %v816 = vpop.permute.xlu0 %815
      %817 = vrot.lane.b32.xlu0 %v791, 64
      %v818 = vpop.permute.xlu0 %817
      %819 = vrot.lane.b32.xlu0 %v792, 64
      %v820 = vpop.permute.xlu0 %819
      %821 = vrot.lane.b32.xlu0 %v793, 64
      %v822 = vpop.permute.xlu0 %821
      %823 = vrot.lane.b32.xlu0 %v794, 64
      %v824 = vpop.permute.xlu0 %823
      %825 = vrot.lane.b32.xlu0 %v795, 64
      %v826 = vpop.permute.xlu0 %825
      %827 = vrot.lane.b32.xlu0 %v796, 64
      %v828 = vpop.permute.xlu0 %827
      %v837 = vmul.f32 %v774, %v814
      %v838 = vmul.f32 %v776, %v816
      %v839 = vmul.f32 %v778, %v818
      %v840 = vmul.f32 %v780, %v820
      %v841 = vmul.f32 %v782, %v822
      %v842 = vmul.f32 %v784, %v824
      %v843 = vmul.f32 %v786, %v826
      %v844 = vmul.f32 %v788, %v828
      %853 = vrot.lane.b32.xlu0 %v837, 32
      %v854 = vpop.permute.xlu0 %853
      %855 = vrot.lane.b32.xlu0 %v838, 32
      %v856 = vpop.permute.xlu0 %855
      %857 = vrot.lane.b32.xlu0 %v839, 32
      %v858 = vpop.permute.xlu0 %857
      %859 = vrot.lane.b32.xlu0 %v840, 32
      %v860 = vpop.permute.xlu0 %859
      %861 = vrot.lane.b32.xlu0 %v841, 32
      %v862 = vpop.permute.xlu0 %861
      %863 = vrot.lane.b32.xlu0 %v842, 32
      %v864 = vpop.permute.xlu0 %863
      %865 = vrot.lane.b32.xlu0 %v843, 32
      %v866 = vpop.permute.xlu0 %865
      %867 = vrot.lane.b32.xlu0 %v844, 32
      %v868 = vpop.permute.xlu0 %867
      %v877 = vadd.f32 %v797, %v854
      %v878 = vadd.f32 %v798, %v856
      %v879 = vadd.f32 %v799, %v858
      %v880 = vadd.f32 %v800, %v860
      %v881 = vadd.f32 %v801, %v862
      %v882 = vadd.f32 %v802, %v864
      %v883 = vadd.f32 %v803, %v866
      %v884 = vadd.f32 %v804, %v868
      %v885 = vtanh.pop %v877
      %v886 = vtanh.pop %v878
      %v887 = vtanh.pop %v879
      %v888 = vtanh.pop %v880
      %v889 = vtanh.pop %v881
      %v890 = vtanh.pop %v882
      %v891 = vtanh.pop %v883
      %v892 = vtanh.pop %v884
      %901 = vrot.lane.b32.xlu0 %v885, 64
      %v902 = vpop.permute.xlu0 %901
      %903 = vrot.lane.b32.xlu0 %v886, 64
      %v904 = vpop.permute.xlu0 %903
      %905 = vrot.lane.b32.xlu0 %v887, 64
      %v906 = vpop.permute.xlu0 %905
      %907 = vrot.lane.b32.xlu0 %v888, 64
      %v908 = vpop.permute.xlu0 %907
      %909 = vrot.lane.b32.xlu0 %v889, 64
      %v910 = vpop.permute.xlu0 %909
      %911 = vrot.lane.b32.xlu0 %v890, 64
      %v912 = vpop.permute.xlu0 %911
      %913 = vrot.lane.b32.xlu0 %v891, 64
      %v914 = vpop.permute.xlu0 %913
      %915 = vrot.lane.b32.xlu0 %v892, 64
      %v916 = vpop.permute.xlu0 %915
      %v925 = vmul.f32 %v774, %v902
      %v926 = vmul.f32 %v776, %v904
      %v927 = vmul.f32 %v778, %v906
      %v928 = vmul.f32 %v780, %v908
      %v929 = vmul.f32 %v782, %v910
      %v930 = vmul.f32 %v784, %v912
      %v931 = vmul.f32 %v786, %v914
      %v932 = vmul.f32 %v788, %v916
      %v941 = vrot.slane %v926, 7
      %vm942 = vcmask 1041409
      %v943 = vsel %vm942, %v941, %v925
      %v944 = vrot.slane %v927, 6
      %vm945 = vcmask 1042434
      %v946 = vsel %vm945, %v944, %v943
      %v947 = vrot.slane %v928, 5
      %vm948 = vcmask 1043459
      %v949 = vsel %vm948, %v947, %v946
      %v950 = vrot.slane %v929, 4
      %vm951 = vcmask 1044484
      %v952 = vsel %vm951, %v950, %v949
      %v953 = vrot.slane %v930, 3
      %vm954 = vcmask 1045509
      %v955 = vsel %vm954, %v953, %v952
      %v956 = vrot.slane %v931, 2
      %vm957 = vcmask 1046534
      %v958 = vsel %vm957, %v956, %v955
      %v959 = vrot.slane %v932, 1
      %vm960 = vcmask 1047559
      %v961 = vsel %vm960, %v959, %v958
      %962 = vrot.lane.b32.xlu0 %v961, 32
      %v963 = vpop.permute.xlu0 %962
      %v965 = vsel %vm643, %v963, 0.0
      %vm966 = vcmask 523264
      %v968 = vsel %vm966, %v965, 0
      %970 = vmatprep.subr.mxu0 0.0
      %971 = vmatpush1.msra.mxu0 %v626
      %972 = vmatprep.subr.mxu0 0.0
      %973 = vmatpush1.msra.mxu0 %v627
      %974 = vmatprep.subr.mxu0 0.0
      %975 = vmatpush1.msra.mxu0 %v628
      %976 = vmatprep.subr.mxu0 0.0
      %977 = vmatpush1.msra.mxu0 %v629
      %978 = vmatprep.subr.mxu0 0.0
      %979 = vmatpush1.msra.mxu0 %v630
      %980 = vmatprep.subr.mxu0 0.0
      %981 = vmatpush1.msra.mxu0 %v631
      %982 = vmatprep.subr.mxu0 0.0
      %983 = vmatpush1.msra.mxu0 %v632
      %984 = vmatprep.subr.mxu0 0.0
      %985 = vmatpush1.msra.mxu0 %v633
      %986 = vmatprep.subr.mxu0 0.0
      %987 = vmatpush1.msra.mxu0 0.0
      %988 = vmatprep.subr.mxu0 0.0
      %989 = vmatpush1.msra.mxu0 0.0
      %990 = vmatprep.subr.mxu0 0.0
      %991 = vmatpush1.msra.mxu0 0.0
      %992 = vmatprep.subr.mxu0 0.0
      %993 = vmatpush1.msra.mxu0 0.0
      %994 = vmatprep.subr.mxu0 0.0
      %995 = vmatpush1.msra.mxu0 0.0
      %996 = vmatprep.subr.mxu0 0.0
      %997 = vmatpush1.msra.mxu0 0.0
      %998 = vmatprep.subr.mxu0 0.0
      %999 = vmatpush1.msra.mxu0 0.0
      %1000 = vmatprep.subr.mxu0 0.0
      %1001 = vmatpush1.msra.mxu0 0.0
      %1002 = vmatprep.subr.mxu0 0.0
      %1003 = vmatpush1.msra.mxu0 0.0
      %1004 = vmatprep.subr.mxu0 0.0
      %1005 = vmatpush1.msra.mxu0 0.0
      %1006 = vmatprep.subr.mxu0 0.0
      %1007 = vmatpush1.msra.mxu0 0.0
      %1008 = vmatprep.subr.mxu0 0.0
      %1009 = vmatpush1.msra.mxu0 0.0
      %1010 = vmatprep.subr.mxu0 0.0
      %1011 = vmatpush1.msra.mxu0 0.0
      %1012 = vmatprep.subr.mxu0 0.0
      %1013 = vmatpush1.msra.mxu0 0.0
      %1014 = vmatprep.subr.mxu0 0.0
      %1015 = vmatpush1.msra.mxu0 0.0
      %1016 = vmatprep.subr.mxu0 0.0
      %1017 = vmatpush1.msra.mxu0 0.0
      %1018 = vmatprep.subr.mxu0 0.0
      %1019 = vmatpush1.msra.mxu0 0.0
      %1020 = vmatprep.subr.mxu0 0.0
      %1021 = vmatpush1.msra.mxu0 0.0
      %1022 = vmatprep.subr.mxu0 0.0
      %1023 = vmatpush1.msra.mxu0 0.0
      %1024 = vmatprep.subr.mxu0 0.0
      %1025 = vmatpush1.msra.mxu0 0.0
      %1026 = vmatprep.subr.mxu0 0.0
      %1027 = vmatpush1.msra.mxu0 0.0
      %1028 = vmatprep.subr.mxu0 0.0
      %1029 = vmatpush1.msra.mxu0 0.0
      %1030 = vmatprep.subr.mxu0 0.0
      %1031 = vmatpush1.msra.mxu0 0.0
      %1032 = vmatprep.subr.mxu0 0.0
      %1033 = vmatpush1.msra.mxu0 0.0
      %1034 = vmatprep.mubr.f32.mxu0 0.0
      %1035 = vmatmul.mubr.f32.gmra.mrb[0].mxu0 %v968
      %v1036 = vpop.f32.mrb[0].mxu0
      %v1037 = vadd.f32 %v639, %v1036
      %v1038 = vpop.f32.mrb[0].mxu0
      %1039 = vdwg.mxu0
      %v1040 = vxor.u32 %v1037, 2147483648
      %v1041 = vmul.f32 %v1040, 1.442695
      %v1042 = vpow.pop %v1041
      %v1043 = vadd.f32 %v1042, 1.0
      %v1044 = vrcp.pop %v1043
      %v1045 = vmul.f32 1.0, %v1044
      %v1046 = vtanh.pop %v1037
      %v1047 = vmul.f32 %v1045, 0.0
      %1049 = vrot.lane.b32.xlu0 %v1046, 64
      %v1050 = vpop.permute.xlu0 %1049
      %v1052 = vmul.f32 %v1045, %v1050
      %1054 = vrot.lane.b32.xlu0 %v1052, 32
      %v1055 = vpop.permute.xlu0 %1054
      %v1057 = vadd.f32 %v1047, %v1055
      %v1058 = vtanh.pop %v1057
      %1060 = vrot.lane.b32.xlu0 %v1058, 64
      %v1061 = vpop.permute.xlu0 %1060
      %v1063 = vmul.f32 %v1045, %v1061
      %v1065 = vlaneseq
      %v1066 = vshrl.u32 %v1065, 7
      %v1067 = vsub.s32 0, %v1066
      %v1068 = vrot.slane %v641, %v1067
      %1069 = vrot.lane.b32.xlu0 %v1068, 96
      %v1070 = vpop.permute.xlu0 %1069
      %v1072 = vmul.f32 %v1063, %v1070
      %1074 = vrot.lane.b32.xlu0 %v1072, 32
      %v1075 = vpop.permute.xlu0 %1074
      %v1077 = vsel %vm643, %v1075, 0.0
      %1078 = vadd.xlane.f32.xlu0 %v1077
      %v1079 = vpop.xlane.xlu0 %1078
      %v1081 = vlaneseq
      %v1082 = vshrl.u32 %v1081, 7
      %v1083 = vsub.s32 0, %v1082
      %v1084 = vrot.slane %v642, %v1083
      %v1086 = vadd.f32 %v1079, %v1084
      %v1087 = vsel %vm643, %v963, 0
      %1089 = vmatprep.subr.mxu0 0.0
      %1090 = vmatpush1.msra.mxu0 %v622
      %1091 = vmatprep.subr.mxu0 0.0
      %1092 = vmatpush1.msra.mxu0 %v623
      %1093 = vmatprep.subr.mxu0 0.0
      %1094 = vmatpush1.msra.mxu0 %v624
      %1095 = vmatprep.subr.mxu0 0.0
      %1096 = vmatpush1.msra.mxu0 %v625
      %1097 = vmatprep.subr.mxu0 0.0
      %1098 = vmatpush1.msra.mxu0 0.0
      %1099 = vmatprep.subr.mxu0 0.0
      %1100 = vmatpush1.msra.mxu0 0.0
      %1101 = vmatprep.subr.mxu0 0.0
      %1102 = vmatpush1.msra.mxu0 0.0
      %1103 = vmatprep.subr.mxu0 0.0
      %1104 = vmatpush1.msra.mxu0 0.0
      %1105 = vmatprep.subr.mxu0 0.0
      %1106 = vmatpush1.msra.mxu0 0.0
      %1107 = vmatprep.subr.mxu0 0.0
      %1108 = vmatpush1.msra.mxu0 0.0
      %1109 = vmatprep.subr.mxu0 0.0
      %1110 = vmatpush1.msra.mxu0 0.0
      %1111 = vmatprep.subr.mxu0 0.0
      %1112 = vmatpush1.msra.mxu0 0.0
      %1113 = vmatprep.subr.mxu0 0.0
      %1114 = vmatpush1.msra.mxu0 0.0
      %1115 = vmatprep.subr.mxu0 0.0
      %1116 = vmatpush1.msra.mxu0 0.0
      %1117 = vmatprep.subr.mxu0 0.0
      %1118 = vmatpush1.msra.mxu0 0.0
      %1119 = vmatprep.subr.mxu0 0.0
      %1120 = vmatpush1.msra.mxu0 0.0
      %1121 = vmatprep.subr.mxu0 0.0
      %1122 = vmatpush1.msra.mxu0 0.0
      %1123 = vmatprep.subr.mxu0 0.0
      %1124 = vmatpush1.msra.mxu0 0.0
      %1125 = vmatprep.subr.mxu0 0.0
      %1126 = vmatpush1.msra.mxu0 0.0
      %1127 = vmatprep.subr.mxu0 0.0
      %1128 = vmatpush1.msra.mxu0 0.0
      %1129 = vmatprep.subr.mxu0 0.0
      %1130 = vmatpush1.msra.mxu0 0.0
      %1131 = vmatprep.subr.mxu0 0.0
      %1132 = vmatpush1.msra.mxu0 0.0
      %1133 = vmatprep.subr.mxu0 0.0
      %1134 = vmatpush1.msra.mxu0 0.0
      %1135 = vmatprep.subr.mxu0 0.0
      %1136 = vmatpush1.msra.mxu0 0.0
      %1137 = vmatprep.subr.mxu0 0.0
      %1138 = vmatpush1.msra.mxu0 0.0
      %1139 = vmatprep.subr.mxu0 0.0
      %1140 = vmatpush1.msra.mxu0 0.0
      %1141 = vmatprep.subr.mxu0 0.0
      %1142 = vmatpush1.msra.mxu0 0.0
      %1143 = vmatprep.subr.mxu0 0.0
      %1144 = vmatpush1.msra.mxu0 0.0
      %1145 = vmatprep.subr.mxu0 0.0
      %1146 = vmatpush1.msra.mxu0 0.0
      %1147 = vmatprep.subr.mxu0 0.0
      %1148 = vmatpush1.msra.mxu0 0.0
      %1149 = vmatprep.subr.mxu0 0.0
      %1150 = vmatpush1.msra.mxu0 0.0
      %1151 = vmatprep.subr.mxu0 0.0
      %1152 = vmatpush1.msra.mxu0 0.0
      %1153 = vmatprep.mubr.f32.mxu0 0.0
      %1154 = vmatmul.mubr.f32.gmra.mrb[0].mxu0 %v1087
      %v1155 = vpop.f32.mrb[0].mxu0
      %v1156 = vadd.f32 0.0, %v1155
      %v1157 = vpop.f32.mrb[0].mxu0
      %1158 = vdwg.mxu0
      %v1160 = vrot.slane %v1156, 7
      %v1161 = vrot.slane %v1156, 1
      %v1162 = vrot.slane %v1156, 2
      %v1163 = vrot.slane %v1156, 3
      %v1164 = vrot.slane %v1156, 4
      %v1165 = vrot.slane %v1156, 5
      %v1166 = vrot.slane %v1156, 6
      %v1175 = vadd.f32 %v584, %v1160
      %v1176 = vadd.f32 %v589, %v1156
      %v1177 = vadd.f32 %v594, %v1161
      %v1178 = vadd.f32 %v599, %v1162
      %v1179 = vadd.f32 %v604, %v1163
      %v1180 = vadd.f32 %v609, %v1164
      %v1181 = vadd.f32 %v614, %v1165
      %v1182 = vadd.f32 %v619, %v1166
      %v1183 = vxor.u32 %v1175, 2147483648
      %v1184 = vxor.u32 %v1176, 2147483648
      %v1185 = vxor.u32 %v1177, 2147483648
      %v1186 = vxor.u32 %v1178, 2147483648
      %v1187 = vxor.u32 %v1179, 2147483648
      %v1188 = vxor.u32 %v1180, 2147483648
      %v1189 = vxor.u32 %v1181, 2147483648
      %v1190 = vxor.u32 %v1182, 2147483648
      %v1191 = vmul.f32 %v1183, 1.442695
      %v1192 = vpow.pop %v1191
      %v1193 = vmul.f32 %v1184, 1.442695
      %v1194 = vpow.pop %v1193
      %v1195 = vmul.f32 %v1185, 1.442695
      %v1196 = vpow.pop %v1195
      %v1197 = vmul.f32 %v1186, 1.442695
      %v1198 = vpow.pop %v1197
      %v1199 = vmul.f32 %v1187, 1.442695
      %v1200 = vpow.pop %v1199
      %v1201 = vmul.f32 %v1188, 1.442695
      %v1202 = vpow.pop %v1201
      %v1203 = vmul.f32 %v1189, 1.442695
      %v1204 = vpow.pop %v1203
      %v1205 = vmul.f32 %v1190, 1.442695
      %v1206 = vpow.pop %v1205
      %v1207 = vadd.f32 %v1192, 1.0
      %v1208 = vadd.f32 %v1194, 1.0
      %v1209 = vadd.f32 %v1196, 1.0
      %v1210 = vadd.f32 %v1198, 1.0
      %v1211 = vadd.f32 %v1200, 1.0
      %v1212 = vadd.f32 %v1202, 1.0
      %v1213 = vadd.f32 %v1204, 1.0
      %v1214 = vadd.f32 %v1206, 1.0
      %v1215 = vrcp.pop %v1207
      %v1216 = vmul.f32 1.0, %v1215
      %v1217 = vrcp.pop %v1208
      %v1218 = vmul.f32 1.0, %v1217
      %v1219 = vrcp.pop %v1209
      %v1220 = vmul.f32 1.0, %v1219
      %v1221 = vrcp.pop %v1210
      %v1222 = vmul.f32 1.0, %v1221
      %v1223 = vrcp.pop %v1211
      %v1224 = vmul.f32 1.0, %v1223
      %v1225 = vrcp.pop %v1212
      %v1226 = vmul.f32 1.0, %v1225
      %v1227 = vrcp.pop %v1213
      %v1228 = vmul.f32 1.0, %v1227
      %v1229 = vrcp.pop %v1214
      %v1230 = vmul.f32 1.0, %v1229
      %v1231 = vtanh.pop %v1175
      %v1232 = vtanh.pop %v1176
      %v1233 = vtanh.pop %v1177
      %v1234 = vtanh.pop %v1178
      %v1235 = vtanh.pop %v1179
      %v1236 = vtanh.pop %v1180
      %v1237 = vtanh.pop %v1181
      %v1238 = vtanh.pop %v1182
      %v1247 = vrot.slane %v877, 7
      %v1248 = vrot.slane %v878, 7
      %v1249 = vrot.slane %v879, 7
      %v1250 = vrot.slane %v880, 7
      %v1251 = vrot.slane %v881, 7
      %v1252 = vrot.slane %v882, 7
      %v1253 = vrot.slane %v883, 7
      %v1254 = vrot.slane %v884, 7
      %v1263 = vmul.f32 %v1216, %v1247
      %v1264 = vmul.f32 %v1218, %v1248
      %v1265 = vmul.f32 %v1220, %v1249
      %v1266 = vmul.f32 %v1222, %v1250
      %v1267 = vmul.f32 %v1224, %v1251
      %v1268 = vmul.f32 %v1226, %v1252
      %v1269 = vmul.f32 %v1228, %v1253
      %v1270 = vmul.f32 %v1230, %v1254
      %1279 = vrot.lane.b32.xlu0 %v1231, 64
      %v1280 = vpop.permute.xlu0 %1279
      %1281 = vrot.lane.b32.xlu0 %v1232, 64
      %v1282 = vpop.permute.xlu0 %1281
      %1283 = vrot.lane.b32.xlu0 %v1233, 64
      %v1284 = vpop.permute.xlu0 %1283
      %1285 = vrot.lane.b32.xlu0 %v1234, 64
      %v1286 = vpop.permute.xlu0 %1285
      %1287 = vrot.lane.b32.xlu0 %v1235, 64
      %v1288 = vpop.permute.xlu0 %1287
      %1289 = vrot.lane.b32.xlu0 %v1236, 64
      %v1290 = vpop.permute.xlu0 %1289
      %1291 = vrot.lane.b32.xlu0 %v1237, 64
      %v1292 = vpop.permute.xlu0 %1291
      %1293 = vrot.lane.b32.xlu0 %v1238, 64
      %v1294 = vpop.permute.xlu0 %1293
      %v1303 = vmul.f32 %v1216, %v1280
      %v1304 = vmul.f32 %v1218, %v1282
      %v1305 = vmul.f32 %v1220, %v1284
      %v1306 = vmul.f32 %v1222, %v1286
      %v1307 = vmul.f32 %v1224, %v1288
      %v1308 = vmul.f32 %v1226, %v1290
      %v1309 = vmul.f32 %v1228, %v1292
      %v1310 = vmul.f32 %v1230, %v1294
      %1319 = vrot.lane.b32.xlu0 %v1303, 32
      %v1320 = vpop.permute.xlu0 %1319
      %1321 = vrot.lane.b32.xlu0 %v1304, 32
      %v1322 = vpop.permute.xlu0 %1321
      %1323 = vrot.lane.b32.xlu0 %v1305, 32
      %v1324 = vpop.permute.xlu0 %1323
      %1325 = vrot.lane.b32.xlu0 %v1306, 32
      %v1326 = vpop.permute.xlu0 %1325
      %1327 = vrot.lane.b32.xlu0 %v1307, 32
      %v1328 = vpop.permute.xlu0 %1327
      %1329 = vrot.lane.b32.xlu0 %v1308, 32
      %v1330 = vpop.permute.xlu0 %1329
      %1331 = vrot.lane.b32.xlu0 %v1309, 32
      %v1332 = vpop.permute.xlu0 %1331
      %1333 = vrot.lane.b32.xlu0 %v1310, 32
      %v1334 = vpop.permute.xlu0 %1333
      %v1343 = vadd.f32 %v1263, %v1320
      %v1344 = vadd.f32 %v1264, %v1322
      %v1345 = vadd.f32 %v1265, %v1324
      %v1346 = vadd.f32 %v1266, %v1326
      %v1347 = vadd.f32 %v1267, %v1328
      %v1348 = vadd.f32 %v1268, %v1330
      %v1349 = vadd.f32 %v1269, %v1332
      %v1350 = vadd.f32 %v1270, %v1334
      %v1351 = vtanh.pop %v1343
      %v1352 = vtanh.pop %v1344
      %v1353 = vtanh.pop %v1345
      %v1354 = vtanh.pop %v1346
      %v1355 = vtanh.pop %v1347
      %v1356 = vtanh.pop %v1348
      %v1357 = vtanh.pop %v1349
      %v1358 = vtanh.pop %v1350
      %1367 = vrot.lane.b32.xlu0 %v1351, 64
      %v1368 = vpop.permute.xlu0 %1367
      %1369 = vrot.lane.b32.xlu0 %v1352, 64
      %v1370 = vpop.permute.xlu0 %1369
      %1371 = vrot.lane.b32.xlu0 %v1353, 64
      %v1372 = vpop.permute.xlu0 %1371
      %1373 = vrot.lane.b32.xlu0 %v1354, 64
      %v1374 = vpop.permute.xlu0 %1373
      %1375 = vrot.lane.b32.xlu0 %v1355, 64
      %v1376 = vpop.permute.xlu0 %1375
      %1377 = vrot.lane.b32.xlu0 %v1356, 64
      %v1378 = vpop.permute.xlu0 %1377
      %1379 = vrot.lane.b32.xlu0 %v1357, 64
      %v1380 = vpop.permute.xlu0 %1379
      %1381 = vrot.lane.b32.xlu0 %v1358, 64
      %v1382 = vpop.permute.xlu0 %1381
      %v1391 = vmul.f32 %v1216, %v1368
      %v1392 = vmul.f32 %v1218, %v1370
      %v1393 = vmul.f32 %v1220, %v1372
      %v1394 = vmul.f32 %v1222, %v1374
      %v1395 = vmul.f32 %v1224, %v1376
      %v1396 = vmul.f32 %v1226, %v1378
      %v1397 = vmul.f32 %v1228, %v1380
      %v1398 = vmul.f32 %v1230, %v1382
      %v1407 = vrot.slane %v1392, 7
      %v1408 = vsel %vm945, %v1407, %v1391
      %v1409 = vrot.slane %v1393, 6
      %v1410 = vsel %vm948, %v1409, %v1408
      %v1411 = vrot.slane %v1394, 5
      %v1412 = vsel %vm951, %v1411, %v1410
      %v1413 = vrot.slane %v1395, 4
      %v1414 = vsel %vm954, %v1413, %v1412
      %v1415 = vrot.slane %v1396, 3
      %v1416 = vsel %vm957, %v1415, %v1414
      %v1417 = vrot.slane %v1397, 2
      %v1418 = vsel %vm960, %v1417, %v1416
      %v1419 = vrot.slane %v1398, 1
      %1420 = vrot.lane.b32.xlu0 %v1418, 32
      %v1421 = vpop.permute.xlu0 %1420
      %1422 = vrot.lane.b32.xlu0 %v1419, 32
      %v1423 = vpop.permute.xlu0 %1422
      %v1427 = vrot.slane %v1063, 7
      %1428 = vrot.lane.b32.xlu0 %v1427, 64
      %v1429 = vpop.permute.xlu0 %1428
      %v1431 = vsel %vm643, %v1421, %v1429
      %v1432 = vsel %vm643, %v1423, %v1429
      %vm1435 = vcmask 1046528
      %v1436 = vrot.slane %v1431, 1
      %v1437 = vrot.slane %v1432, 1
      %v1438 = vsel %vm1435, %v1436, %v1437
      %v1439 = vsel %vm966, %v1438, 0
      %1441 = vmatprep.subr.mxu0 0.0
      %1442 = vmatpush1.msra.mxu0 %v626
      %1443 = vmatprep.subr.mxu0 0.0
      %1444 = vmatpush1.msra.mxu0 %v627
      %1445 = vmatprep.subr.mxu0 0.0
      %1446 = vmatpush1.msra.mxu0 %v628
      %1447 = vmatprep.subr.mxu0 0.0
      %1448 = vmatpush1.msra.mxu0 %v629
      %1449 = vmatprep.subr.mxu0 0.0
      %1450 = vmatpush1.msra.mxu0 %v630
      %1451 = vmatprep.subr.mxu0 0.0
      %1452 = vmatpush1.msra.mxu0 %v631
      %1453 = vmatprep.subr.mxu0 0.0
      %1454 = vmatpush1.msra.mxu0 %v632
      %1455 = vmatprep.subr.mxu0 0.0
      %1456 = vmatpush1.msra.mxu0 %v633
      %1457 = vmatprep.subr.mxu0 0.0
      %1458 = vmatpush1.msra.mxu0 0.0
      %1459 = vmatprep.subr.mxu0 0.0
      %1460 = vmatpush1.msra.mxu0 0.0
      %1461 = vmatprep.subr.mxu0 0.0
      %1462 = vmatpush1.msra.mxu0 0.0
      %1463 = vmatprep.subr.mxu0 0.0
      %1464 = vmatpush1.msra.mxu0 0.0
      %1465 = vmatprep.subr.mxu0 0.0
      %1466 = vmatpush1.msra.mxu0 0.0
      %1467 = vmatprep.subr.mxu0 0.0
      %1468 = vmatpush1.msra.mxu0 0.0
      %1469 = vmatprep.subr.mxu0 0.0
      %1470 = vmatpush1.msra.mxu0 0.0
      %1471 = vmatprep.subr.mxu0 0.0
      %1472 = vmatpush1.msra.mxu0 0.0
      %1473 = vmatprep.subr.mxu0 0.0
      %1474 = vmatpush1.msra.mxu0 0.0
      %1475 = vmatprep.subr.mxu0 0.0
      %1476 = vmatpush1.msra.mxu0 0.0
      %1477 = vmatprep.subr.mxu0 0.0
      %1478 = vmatpush1.msra.mxu0 0.0
      %1479 = vmatprep.subr.mxu0 0.0
      %1480 = vmatpush1.msra.mxu0 0.0
      %1481 = vmatprep.subr.mxu0 0.0
      %1482 = vmatpush1.msra.mxu0 0.0
      %1483 = vmatprep.subr.mxu0 0.0
      %1484 = vmatpush1.msra.mxu0 0.0
      %1485 = vmatprep.subr.mxu0 0.0
      %1486 = vmatpush1.msra.mxu0 0.0
      %1487 = vmatprep.subr.mxu0 0.0
      %1488 = vmatpush1.msra.mxu0 0.0
      %1489 = vmatprep.subr.mxu0 0.0
      %1490 = vmatpush1.msra.mxu0 0.0
      %1491 = vmatprep.subr.mxu0 0.0
      %1492 = vmatpush1.msra.mxu0 0.0
      %1493 = vmatprep.subr.mxu0 0.0
      %1494 = vmatpush1.msra.mxu0 0.0
      %1495 = vmatprep.subr.mxu0 0.0
      %1496 = vmatpush1.msra.mxu0 0.0
      %1497 = vmatprep.subr.mxu0 0.0
      %1498 = vmatpush1.msra.mxu0 0.0
      %1499 = vmatprep.subr.mxu0 0.0
      %1500 = vmatpush1.msra.mxu0 0.0
      %1501 = vmatprep.subr.mxu0 0.0
      %1502 = vmatpush1.msra.mxu0 0.0
      %1503 = vmatprep.subr.mxu0 0.0
      %1504 = vmatpush1.msra.mxu0 0.0
      %1505 = vmatprep.mubr.f32.mxu0 0.0
      %1506 = vmatmul.mubr.f32.gmra.mrb[0].mxu0 %v1439
      %v1507 = vpop.f32.mrb[0].mxu0
      %v1508 = vadd.f32 %v639, %v1507
      %v1509 = vpop.f32.mrb[0].mxu0
      %1510 = vdwg.mxu0
      %v1511 = vxor.u32 %v1508, 2147483648
      %v1512 = vmul.f32 %v1511, 1.442695
      %v1513 = vpow.pop %v1512
      %v1514 = vadd.f32 %v1513, 1.0
      %v1515 = vrcp.pop %v1514
      %v1516 = vmul.f32 1.0, %v1515
      %v1517 = vtanh.pop %v1508
      %v1518 = vmul.f32 %v1516, %v1057
      %1520 = vrot.lane.b32.xlu0 %v1517, 64
      %v1521 = vpop.permute.xlu0 %1520
      %v1523 = vmul.f32 %v1516, %v1521
      %1525 = vrot.lane.b32.xlu0 %v1523, 32
      %v1526 = vpop.permute.xlu0 %1525
      %v1528 = vadd.f32 %v1518, %v1526
      %v1529 = vtanh.pop %v1528
      %1531 = vrot.lane.b32.xlu0 %v1529, 64
      %v1532 = vpop.permute.xlu0 %1531
      %v1534 = vmul.f32 %v1516, %v1532
      %v1535 = vmul.f32 %v1534, %v1070
      %1537 = vrot.lane.b32.xlu0 %v1535, 32
      %v1538 = vpop.permute.xlu0 %1537
      %v1540 = vsel %vm643, %v1538, 0.0
      %1541 = vadd.xlane.f32.xlu0 %v1540
      %v1542 = vpop.xlane.xlu0 %1541
      %v1543 = vadd.f32 %v1542, %v1084
      %v1544 = vrot.slane %v1391, 1
      %v1545 = vsel %vm942, %v1392, %v1544
      %v1546 = vrot.slane %v1393, 7
      %v1547 = vsel %vm945, %v1546, %v1545
      %v1548 = vrot.slane %v1394, 6
      %v1549 = vsel %vm948, %v1548, %v1547
      %v1550 = vrot.slane %v1395, 5
      %v1551 = vsel %vm951, %v1550, %v1549
      %v1552 = vrot.slane %v1396, 4
      %v1553 = vsel %vm954, %v1552, %v1551
      %v1554 = vrot.slane %v1397, 3
      %v1555 = vsel %vm957, %v1554, %v1553
      %v1556 = vrot.slane %v1398, 2
      %v1557 = vsel %vm960, %v1556, %v1555
      %1558 = vrot.lane.b32.xlu0 %v1557, 32
      %v1559 = vpop.permute.xlu0 %1558
      %v1560 = vsel %vm643, %v1559, 0
      %1562 = vmatprep.subr.mxu0 0.0
      %1563 = vmatpush1.msra.mxu0 %v622
      %1564 = vmatprep.subr.mxu0 0.0
      %1565 = vmatpush1.msra.mxu0 %v623
      %1566 = vmatprep.subr.mxu0 0.0
      %1567 = vmatpush1.msra.mxu0 %v624
      %1568 = vmatprep.subr.mxu0 0.0
      %1569 = vmatpush1.msra.mxu0 %v625
      %1570 = vmatprep.subr.mxu0 0.0
      %1571 = vmatpush1.msra.mxu0 0.0
      %1572 = vmatprep.subr.mxu0 0.0
      %1573 = vmatpush1.msra.mxu0 0.0
      %1574 = vmatprep.subr.mxu0 0.0
      %1575 = vmatpush1.msra.mxu0 0.0
      %1576 = vmatprep.subr.mxu0 0.0
      %1577 = vmatpush1.msra.mxu0 0.0
      %1578 = vmatprep.subr.mxu0 0.0
      %1579 = vmatpush1.msra.mxu0 0.0
      %1580 = vmatprep.subr.mxu0 0.0
      %1581 = vmatpush1.msra.mxu0 0.0
      %1582 = vmatprep.subr.mxu0 0.0
      %1583 = vmatpush1.msra.mxu0 0.0
      %1584 = vmatprep.subr.mxu0 0.0
      %1585 = vmatpush1.msra.mxu0 0.0
      %1586 = vmatprep.subr.mxu0 0.0
      %1587 = vmatpush1.msra.mxu0 0.0
      %1588 = vmatprep.subr.mxu0 0.0
      %1589 = vmatpush1.msra.mxu0 0.0
      %1590 = vmatprep.subr.mxu0 0.0
      %1591 = vmatpush1.msra.mxu0 0.0
      %1592 = vmatprep.subr.mxu0 0.0
      %1593 = vmatpush1.msra.mxu0 0.0
      %1594 = vmatprep.subr.mxu0 0.0
      %1595 = vmatpush1.msra.mxu0 0.0
      %1596 = vmatprep.subr.mxu0 0.0
      %1597 = vmatpush1.msra.mxu0 0.0
      %1598 = vmatprep.subr.mxu0 0.0
      %1599 = vmatpush1.msra.mxu0 0.0
      %1600 = vmatprep.subr.mxu0 0.0
      %1601 = vmatpush1.msra.mxu0 0.0
      %1602 = vmatprep.subr.mxu0 0.0
      %1603 = vmatpush1.msra.mxu0 0.0
      %1604 = vmatprep.subr.mxu0 0.0
      %1605 = vmatpush1.msra.mxu0 0.0
      %1606 = vmatprep.subr.mxu0 0.0
      %1607 = vmatpush1.msra.mxu0 0.0
      %1608 = vmatprep.subr.mxu0 0.0
      %1609 = vmatpush1.msra.mxu0 0.0
      %1610 = vmatprep.subr.mxu0 0.0
      %1611 = vmatpush1.msra.mxu0 0.0
      %1612 = vmatprep.subr.mxu0 0.0
      %1613 = vmatpush1.msra.mxu0 0.0
      %1614 = vmatprep.subr.mxu0 0.0
      %1615 = vmatpush1.msra.mxu0 0.0
      %1616 = vmatprep.subr.mxu0 0.0
      %1617 = vmatpush1.msra.mxu0 0.0
      %1618 = vmatprep.subr.mxu0 0.0
      %1619 = vmatpush1.msra.mxu0 0.0
      %1620 = vmatprep.subr.mxu0 0.0
      %1621 = vmatpush1.msra.mxu0 0.0
      %1622 = vmatprep.subr.mxu0 0.0
      %1623 = vmatpush1.msra.mxu0 0.0
      %1624 = vmatprep.subr.mxu0 0.0
      %1625 = vmatpush1.msra.mxu0 0.0
      %1626 = vmatprep.mubr.f32.mxu0 0.0
      %1627 = vmatmul.mubr.f32.gmra.mrb[0].mxu0 %v1560
      %v1628 = vpop.f32.mrb[0].mxu0
      %v1629 = vadd.f32 0.0, %v1628
      %v1630 = vpop.f32.mrb[0].mxu0
      %1631 = vdwg.mxu0
      %v1633 = vrot.slane %v1629, 6
      %v1634 = vrot.slane %v1629, 7
      %v1635 = vrot.slane %v1629, 1
      %v1636 = vrot.slane %v1629, 2
      %v1637 = vrot.slane %v1629, 3
      %v1638 = vrot.slane %v1629, 4
      %v1639 = vrot.slane %v1629, 5
      %v1648 = vadd.f32 %v584, %v1633
      %v1649 = vadd.f32 %v589, %v1634
      %v1650 = vadd.f32 %v594, %v1629
      %v1651 = vadd.f32 %v599, %v1635
      %v1652 = vadd.f32 %v604, %v1636
      %v1653 = vadd.f32 %v609, %v1637
      %v1654 = vadd.f32 %v614, %v1638
      %v1655 = vadd.f32 %v619, %v1639
      %v1656 = vxor.u32 %v1648, 2147483648
      %v1657 = vxor.u32 %v1649, 2147483648
      %v1658 = vxor.u32 %v1650, 2147483648
      %v1659 = vxor.u32 %v1651, 2147483648
      %v1660 = vxor.u32 %v1652, 2147483648
      %v1661 = vxor.u32 %v1653, 2147483648
      %v1662 = vxor.u32 %v1654, 2147483648
      %v1663 = vxor.u32 %v1655, 2147483648
      %v1664 = vmul.f32 %v1656, 1.442695
      %v1665 = vpow.pop %v1664
      %v1666 = vmul.f32 %v1657, 1.442695
      %v1667 = vpow.pop %v1666
      %v1668 = vmul.f32 %v1658, 1.442695
      %v1669 = vpow.pop %v1668
      %v1670 = vmul.f32 %v1659, 1.442695
      %v1671 = vpow.pop %v1670
      %v1672 = vmul.f32 %v1660, 1.442695
      %v1673 = vpow.pop %v1672
      %v1674 = vmul.f32 %v1661, 1.442695
      %v1675 = vpow.pop %v1674
      %v1676 = vmul.f32 %v1662, 1.442695
      %v1677 = vpow.pop %v1676
      %v1678 = vmul.f32 %v1663, 1.442695
      %v1679 = vpow.pop %v1678
      %v1680 = vadd.f32 %v1665, 1.0
      %v1681 = vadd.f32 %v1667, 1.0
      %v1682 = vadd.f32 %v1669, 1.0
      %v1683 = vadd.f32 %v1671, 1.0
      %v1684 = vadd.f32 %v1673, 1.0
      %v1685 = vadd.f32 %v1675, 1.0
      %v1686 = vadd.f32 %v1677, 1.0
      %v1687 = vadd.f32 %v1679, 1.0
      %v1688 = vrcp.pop %v1680
      %v1689 = vmul.f32 1.0, %v1688
      %v1690 = vrcp.pop %v1681
      %v1691 = vmul.f32 1.0, %v1690
      %v1692 = vrcp.pop %v1682
      %v1693 = vmul.f32 1.0, %v1692
      %v1694 = vrcp.pop %v1683
      %v1695 = vmul.f32 1.0, %v1694
      %v1696 = vrcp.pop %v1684
      %v1697 = vmul.f32 1.0, %v1696
      %v1698 = vrcp.pop %v1685
      %v1699 = vmul.f32 1.0, %v1698
      %v1700 = vrcp.pop %v1686
      %v1701 = vmul.f32 1.0, %v1700
      %v1702 = vrcp.pop %v1687
      %v1703 = vmul.f32 1.0, %v1702
      %v1704 = vtanh.pop %v1648
      %v1705 = vtanh.pop %v1649
      %v1706 = vtanh.pop %v1650
      %v1707 = vtanh.pop %v1651
      %v1708 = vtanh.pop %v1652
      %v1709 = vtanh.pop %v1653
      %v1710 = vtanh.pop %v1654
      %v1711 = vtanh.pop %v1655
      %v1720 = vrot.slane %v1343, 7
      %v1721 = vrot.slane %v1344, 7
      %v1722 = vrot.slane %v1345, 7
      %v1723 = vrot.slane %v1346, 7
      %v1724 = vrot.slane %v1347, 7
      %v1725 = vrot.slane %v1348, 7
      %v1726 = vrot.slane %v1349, 7
      %v1727 = vrot.slane %v1350, 7
      %v1736 = vmul.f32 %v1689, %v1720
      %v1737 = vmul.f32 %v1691, %v1721
      %v1738 = vmul.f32 %v1693, %v1722
      %v1739 = vmul.f32 %v1695, %v1723
      %v1740 = vmul.f32 %v1697, %v1724
      %v1741 = vmul.f32 %v1699, %v1725
      %v1742 = vmul.f32 %v1701, %v1726
      %v1743 = vmul.f32 %v1703, %v1727
      %1752 = vrot.lane.b32.xlu0 %v1704, 64
      %v1753 = vpop.permute.xlu0 %1752
      %1754 = vrot.lane.b32.xlu0 %v1705, 64
      %v1755 = vpop.permute.xlu0 %1754
      %1756 = vrot.lane.b32.xlu0 %v1706, 64
      %v1757 = vpop.permute.xlu0 %1756
      %1758 = vrot.lane.b32.xlu0 %v1707, 64
      %v1759 = vpop.permute.xlu0 %1758
      %1760 = vrot.lane.b32.xlu0 %v1708, 64
      %v1761 = vpop.permute.xlu0 %1760
      %1762 = vrot.lane.b32.xlu0 %v1709, 64
      %v1763 = vpop.permute.xlu0 %1762
      %1764 = vrot.lane.b32.xlu0 %v1710, 64
      %v1765 = vpop.permute.xlu0 %1764
      %1766 = vrot.lane.b32.xlu0 %v1711, 64
      %v1767 = vpop.permute.xlu0 %1766
      %v1776 = vmul.f32 %v1689, %v1753
      %v1777 = vmul.f32 %v1691, %v1755
      %v1778 = vmul.f32 %v1693, %v1757
      %v1779 = vmul.f32 %v1695, %v1759
      %v1780 = vmul.f32 %v1697, %v1761
      %v1781 = vmul.f32 %v1699, %v1763
      %v1782 = vmul.f32 %v1701, %v1765
      %v1783 = vmul.f32 %v1703, %v1767
      %1792 = vrot.lane.b32.xlu0 %v1776, 32
      %v1793 = vpop.permute.xlu0 %1792
      %1794 = vrot.lane.b32.xlu0 %v1777, 32
      %v1795 = vpop.permute.xlu0 %1794
      %1796 = vrot.lane.b32.xlu0 %v1778, 32
      %v1797 = vpop.permute.xlu0 %1796
      %1798 = vrot.lane.b32.xlu0 %v1779, 32
      %v1799 = vpop.permute.xlu0 %1798
      %1800 = vrot.lane.b32.xlu0 %v1780, 32
      %v1801 = vpop.permute.xlu0 %1800
      %1802 = vrot.lane.b32.xlu0 %v1781, 32
      %v1803 = vpop.permute.xlu0 %1802
      %1804 = vrot.lane.b32.xlu0 %v1782, 32
      %v1805 = vpop.permute.xlu0 %1804
      %1806 = vrot.lane.b32.xlu0 %v1783, 32
      %v1807 = vpop.permute.xlu0 %1806
      %v1816 = vadd.f32 %v1736, %v1793
      %v1817 = vadd.f32 %v1737, %v1795
      %v1818 = vadd.f32 %v1738, %v1797
      %v1819 = vadd.f32 %v1739, %v1799
      %v1820 = vadd.f32 %v1740, %v1801
      %v1821 = vadd.f32 %v1741, %v1803
      %v1822 = vadd.f32 %v1742, %v1805
      %v1823 = vadd.f32 %v1743, %v1807
      %v1824 = vtanh.pop %v1816
      %v1825 = vtanh.pop %v1817
      %v1826 = vtanh.pop %v1818
      %v1827 = vtanh.pop %v1819
      %v1828 = vtanh.pop %v1820
      %v1829 = vtanh.pop %v1821
      %v1830 = vtanh.pop %v1822
      %v1831 = vtanh.pop %v1823
      %1840 = vrot.lane.b32.xlu0 %v1824, 64
      %v1841 = vpop.permute.xlu0 %1840
      %1842 = vrot.lane.b32.xlu0 %v1825, 64
      %v1843 = vpop.permute.xlu0 %1842
      %1844 = vrot.lane.b32.xlu0 %v1826, 64
      %v1845 = vpop.permute.xlu0 %1844
      %1846 = vrot.lane.b32.xlu0 %v1827, 64
      %v1847 = vpop.permute.xlu0 %1846
      %1848 = vrot.lane.b32.xlu0 %v1828, 64
      %v1849 = vpop.permute.xlu0 %1848
      %1850 = vrot.lane.b32.xlu0 %v1829, 64
      %v1851 = vpop.permute.xlu0 %1850
      %1852 = vrot.lane.b32.xlu0 %v1830, 64
      %v1853 = vpop.permute.xlu0 %1852
      %1854 = vrot.lane.b32.xlu0 %v1831, 64
      %v1855 = vpop.permute.xlu0 %1854
      %v1864 = vmul.f32 %v1689, %v1841
      %v1865 = vmul.f32 %v1691, %v1843
      %v1866 = vmul.f32 %v1693, %v1845
      %v1867 = vmul.f32 %v1695, %v1847
      %v1868 = vmul.f32 %v1697, %v1849
      %v1869 = vmul.f32 %v1699, %v1851
      %v1870 = vmul.f32 %v1701, %v1853
      %v1871 = vmul.f32 %v1703, %v1855
      %v1880 = vrot.slane %v1865, 7
      %v1881 = vsel %vm948, %v1880, %v1864
      %v1882 = vrot.slane %v1866, 6
      %v1883 = vsel %vm951, %v1882, %v1881
      %v1884 = vrot.slane %v1867, 5
      %v1885 = vsel %vm954, %v1884, %v1883
      %v1886 = vrot.slane %v1868, 4
      %v1887 = vsel %vm957, %v1886, %v1885
      %v1888 = vrot.slane %v1869, 3
      %v1889 = vsel %vm960, %v1888, %v1887
      %v1890 = vrot.slane %v1870, 2
      %v1891 = vrot.slane %v1871, 1
      %v1892 = vsel %vm942, %v1891, %v1890
      %1893 = vrot.lane.b32.xlu0 %v1889, 32
      %v1894 = vpop.permute.xlu0 %1893
      %1895 = vrot.lane.b32.xlu0 %v1892, 32
      %v1896 = vpop.permute.xlu0 %1895
      %v1900 = vrot.slane %v1534, 6
      %1901 = vrot.lane.b32.xlu0 %v1900, 64
      %v1902 = vpop.permute.xlu0 %1901
      %v1904 = vsel %vm643, %v1894, %v1902
      %v1905 = vsel %vm643, %v1896, %v1902
      %vm1908 = vcmask 1045504
      %v1909 = vrot.slane %v1904, 2
      %v1910 = vrot.slane %v1905, 2
      %v1911 = vsel %vm1908, %v1909, %v1910
      %v1912 = vsel %vm966, %v1911, 0
      %1914 = vmatprep.subr.mxu0 0.0
      %1915 = vmatpush1.msra.mxu0 %v626
      %1916 = vmatprep.subr.mxu0 0.0
      %1917 = vmatpush1.msra.mxu0 %v627
      %1918 = vmatprep.subr.mxu0 0.0
      %1919 = vmatpush1.msra.mxu0 %v628
      %1920 = vmatprep.subr.mxu0 0.0
      %1921 = vmatpush1.msra.mxu0 %v629
      %1922 = vmatprep.subr.mxu0 0.0
      %1923 = vmatpush1.msra.mxu0 %v630
      %1924 = vmatprep.subr.mxu0 0.0
      %1925 = vmatpush1.msra.mxu0 %v631
      %1926 = vmatprep.subr.mxu0 0.0
      %1927 = vmatpush1.msra.mxu0 %v632
      %1928 = vmatprep.subr.mxu0 0.0
      %1929 = vmatpush1.msra.mxu0 %v633
      %1930 = vmatprep.subr.mxu0 0.0
      %1931 = vmatpush1.msra.mxu0 0.0
      %1932 = vmatprep.subr.mxu0 0.0
      %1933 = vmatpush1.msra.mxu0 0.0
      %1934 = vmatprep.subr.mxu0 0.0
      %1935 = vmatpush1.msra.mxu0 0.0
      %1936 = vmatprep.subr.mxu0 0.0
      %1937 = vmatpush1.msra.mxu0 0.0
      %1938 = vmatprep.subr.mxu0 0.0
      %1939 = vmatpush1.msra.mxu0 0.0
      %1940 = vmatprep.subr.mxu0 0.0
      %1941 = vmatpush1.msra.mxu0 0.0
      %1942 = vmatprep.subr.mxu0 0.0
      %1943 = vmatpush1.msra.mxu0 0.0
      %1944 = vmatprep.subr.mxu0 0.0
      %1945 = vmatpush1.msra.mxu0 0.0
      %1946 = vmatprep.subr.mxu0 0.0
      %1947 = vmatpush1.msra.mxu0 0.0
      %1948 = vmatprep.subr.mxu0 0.0
      %1949 = vmatpush1.msra.mxu0 0.0
      %1950 = vmatprep.subr.mxu0 0.0
      %1951 = vmatpush1.msra.mxu0 0.0
      %1952 = vmatprep.subr.mxu0 0.0
      %1953 = vmatpush1.msra.mxu0 0.0
      %1954 = vmatprep.subr.mxu0 0.0
      %1955 = vmatpush1.msra.mxu0 0.0
      %1956 = vmatprep.subr.mxu0 0.0
      %1957 = vmatpush1.msra.mxu0 0.0
      %1958 = vmatprep.subr.mxu0 0.0
      %1959 = vmatpush1.msra.mxu0 0.0
      %1960 = vmatprep.subr.mxu0 0.0
      %1961 = vmatpush1.msra.mxu0 0.0
      %1962 = vmatprep.subr.mxu0 0.0
      %1963 = vmatpush1.msra.mxu0 0.0
      %1964 = vmatprep.subr.mxu0 0.0
      %1965 = vmatpush1.msra.mxu0 0.0
      %1966 = vmatprep.subr.mxu0 0.0
      %1967 = vmatpush1.msra.mxu0 0.0
      %1968 = vmatprep.subr.mxu0 0.0
      %1969 = vmatpush1.msra.mxu0 0.0
      %1970 = vmatprep.subr.mxu0 0.0
      %1971 = vmatpush1.msra.mxu0 0.0
      %1972 = vmatprep.subr.mxu0 0.0
      %1973 = vmatpush1.msra.mxu0 0.0
      %1974 = vmatprep.subr.mxu0 0.0
      %1975 = vmatpush1.msra.mxu0 0.0
      %1976 = vmatprep.subr.mxu0 0.0
      %1977 = vmatpush1.msra.mxu0 0.0
      %1978 = vmatprep.mubr.f32.mxu0 0.0
      %1979 = vmatmul.mubr.f32.gmra.mrb[0].mxu0 %v1912
      %v1980 = vpop.f32.mrb[0].mxu0
      %v1981 = vadd.f32 %v639, %v1980
      %v1982 = vpop.f32.mrb[0].mxu0
      %1983 = vdwg.mxu0
      %v1984 = vxor.u32 %v1981, 2147483648
      %v1985 = vmul.f32 %v1984, 1.442695
      %v1986 = vpow.pop %v1985
      %v1987 = vadd.f32 %v1986, 1.0
      %v1988 = vrcp.pop %v1987
      %v1989 = vmul.f32 1.0, %v1988
      %v1990 = vtanh.pop %v1981
      %v1991 = vmul.f32 %v1989, %v1528
      %1993 = vrot.lane.b32.xlu0 %v1990, 64
      %v1994 = vpop.permute.xlu0 %1993
      %v1996 = vmul.f32 %v1989, %v1994
      %1998 = vrot.lane.b32.xlu0 %v1996, 32
      %v1999 = vpop.permute.xlu0 %1998
      %v2001 = vadd.f32 %v1991, %v1999
      %v2002 = vtanh.pop %v2001
      %2004 = vrot.lane.b32.xlu0 %v2002, 64
      %v2005 = vpop.permute.xlu0 %2004
      %v2007 = vmul.f32 %v1989, %v2005
      %v2008 = vmul.f32 %v2007, %v1070
      %2010 = vrot.lane.b32.xlu0 %v2008, 32
      %v2011 = vpop.permute.xlu0 %2010
      %v2013 = vsel %vm643, %v2011, 0.0
      %2014 = vadd.xlane.f32.xlu0 %v2013
      %v2015 = vpop.xlane.xlu0 %2014
      %v2016 = vadd.f32 %v2015, %v1084
      %v2017 = vrot.slane %v1864, 2
      %v2018 = vrot.slane %v1865, 1
      %v2019 = vsel %vm942, %v2018, %v2017
      %v2020 = vsel %vm945, %v1866, %v2019
      %v2021 = vrot.slane %v1867, 7
      %v2022 = vsel %vm948, %v2021, %v2020
      %v2023 = vrot.slane %v1868, 6
      %v2024 = vsel %vm951, %v2023, %v2022
      %v2025 = vrot.slane %v1869, 5
      %v2026 = vsel %vm954, %v2025, %v2024
      %v2027 = vrot.slane %v1870, 4
      %v2028 = vsel %vm957, %v2027, %v2026
      %v2029 = vrot.slane %v1871, 3
      %v2030 = vsel %vm960, %v2029, %v2028
      %2031 = vrot.lane.b32.xlu0 %v2030, 32
      %v2032 = vpop.permute.xlu0 %2031
      %v2033 = vsel %vm643, %v2032, 0
      %2035 = vmatprep.subr.mxu0 0.0
      %2036 = vmatpush1.msra.mxu0 %v622
      %2037 = vmatprep.subr.mxu0 0.0
      %2038 = vmatpush1.msra.mxu0 %v623
      %2039 = vmatprep.subr.mxu0 0.0
      %2040 = vmatpush1.msra.mxu0 %v624
      %2041 = vmatprep.subr.mxu0 0.0
      %2042 = vmatpush1.msra.mxu0 %v625
      %2043 = vmatprep.subr.mxu0 0.0
      %2044 = vmatpush1.msra.mxu0 0.0
      %2045 = vmatprep.subr.mxu0 0.0
      %2046 = vmatpush1.msra.mxu0 0.0
      %2047 = vmatprep.subr.mxu0 0.0
      %2048 = vmatpush1.msra.mxu0 0.0
      %2049 = vmatprep.subr.mxu0 0.0
      %2050 = vmatpush1.msra.mxu0 0.0
      %2051 = vmatprep.subr.mxu0 0.0
      %2052 = vmatpush1.msra.mxu0 0.0
      %2053 = vmatprep.subr.mxu0 0.0
      %2054 = vmatpush1.msra.mxu0 0.0
      %2055 = vmatprep.subr.mxu0 0.0
      %2056 = vmatpush1.msra.mxu0 0.0
      %2057 = vmatprep.subr.mxu0 0.0
      %2058 = vmatpush1.msra.mxu0 0.0
      %2059 = vmatprep.subr.mxu0 0.0
      %2060 = vmatpush1.msra.mxu0 0.0
      %2061 = vmatprep.subr.mxu0 0.0
      %2062 = vmatpush1.msra.mxu0 0.0
      %2063 = vmatprep.subr.mxu0 0.0
      %2064 = vmatpush1.msra.mxu0 0.0
      %2065 = vmatprep.subr.mxu0 0.0
      %2066 = vmatpush1.msra.mxu0 0.0
      %2067 = vmatprep.subr.mxu0 0.0
      %2068 = vmatpush1.msra.mxu0 0.0
      %2069 = vmatprep.subr.mxu0 0.0
      %2070 = vmatpush1.msra.mxu0 0.0
      %2071 = vmatprep.subr.mxu0 0.0
      %2072 = vmatpush1.msra.mxu0 0.0
      %2073 = vmatprep.subr.mxu0 0.0
      %2074 = vmatpush1.msra.mxu0 0.0
      %2075 = vmatprep.subr.mxu0 0.0
      %2076 = vmatpush1.msra.mxu0 0.0
      %2077 = vmatprep.subr.mxu0 0.0
      %2078 = vmatpush1.msra.mxu0 0.0
      %2079 = vmatprep.subr.mxu0 0.0
      %2080 = vmatpush1.msra.mxu0 0.0
      %2081 = vmatprep.subr.mxu0 0.0
      %2082 = vmatpush1.msra.mxu0 0.0
      %2083 = vmatprep.subr.mxu0 0.0
      %2084 = vmatpush1.msra.mxu0 0.0
      %2085 = vmatprep.subr.mxu0 0.0
      %2086 = vmatpush1.msra.mxu0 0.0
      %2087 = vmatprep.subr.mxu0 0.0
      %2088 = vmatpush1.msra.mxu0 0.0
      %2089 = vmatprep.subr.mxu0 0.0
      %2090 = vmatpush1.msra.mxu0 0.0
      %2091 = vmatprep.subr.mxu0 0.0
      %2092 = vmatpush1.msra.mxu0 0.0
      %2093 = vmatprep.subr.mxu0 0.0
      %2094 = vmatpush1.msra.mxu0 0.0
      %2095 = vmatprep.subr.mxu0 0.0
      %2096 = vmatpush1.msra.mxu0 0.0
      %2097 = vmatprep.subr.mxu0 0.0
      %2098 = vmatpush1.msra.mxu0 0.0
      %2099 = vmatprep.mubr.f32.mxu0 0.0
      %2100 = vmatmul.mubr.f32.gmra.mrb[0].mxu0 %v2033
      %v2101 = vpop.f32.mrb[0].mxu0
      %v2102 = vadd.f32 0.0, %v2101
      %v2103 = vpop.f32.mrb[0].mxu0
      %2104 = vdwg.mxu0
      %v2106 = vrot.slane %v2102, 5
      %v2107 = vrot.slane %v2102, 6
      %v2108 = vrot.slane %v2102, 7
      %v2109 = vrot.slane %v2102, 1
      %v2110 = vrot.slane %v2102, 2
      %v2111 = vrot.slane %v2102, 3
      %v2112 = vrot.slane %v2102, 4
      %v2121 = vadd.f32 %v584, %v2106
      %v2122 = vadd.f32 %v589, %v2107
      %v2123 = vadd.f32 %v594, %v2108
      %v2124 = vadd.f32 %v599, %v2102
      %v2125 = vadd.f32 %v604, %v2109
      %v2126 = vadd.f32 %v609, %v2110
      %v2127 = vadd.f32 %v614, %v2111
      %v2128 = vadd.f32 %v619, %v2112
      %v2129 = vxor.u32 %v2121, 2147483648
      %v2130 = vxor.u32 %v2122, 2147483648
      %v2131 = vxor.u32 %v2123, 2147483648
      %v2132 = vxor.u32 %v2124, 2147483648
      %v2133 = vxor.u32 %v2125, 2147483648
      %v2134 = vxor.u32 %v2126, 2147483648
      %v2135 = vxor.u32 %v2127, 2147483648
      %v2136 = vxor.u32 %v2128, 2147483648
      %v2137 = vmul.f32 %v2129, 1.442695
      %v2138 = vpow.pop %v2137
      %v2139 = vmul.f32 %v2130, 1.442695
      %v2140 = vpow.pop %v2139
      %v2141 = vmul.f32 %v2131, 1.442695
      %v2142 = vpow.pop %v2141
      %v2143 = vmul.f32 %v2132, 1.442695
      %v2144 = vpow.pop %v2143
      %v2145 = vmul.f32 %v2133, 1.442695
      %v2146 = vpow.pop %v2145
      %v2147 = vmul.f32 %v2134, 1.442695
      %v2148 = vpow.pop %v2147
      %v2149 = vmul.f32 %v2135, 1.442695
      %v2150 = vpow.pop %v2149
      %v2151 = vmul.f32 %v2136, 1.442695
      %v2152 = vpow.pop %v2151
      %v2153 = vadd.f32 %v2138, 1.0
      %v2154 = vadd.f32 %v2140, 1.0
      %v2155 = vadd.f32 %v2142, 1.0
      %v2156 = vadd.f32 %v2144, 1.0
      %v2157 = vadd.f32 %v2146, 1.0
      %v2158 = vadd.f32 %v2148, 1.0
      %v2159 = vadd.f32 %v2150, 1.0
      %v2160 = vadd.f32 %v2152, 1.0
      %v2161 = vrcp.pop %v2153
      %v2162 = vmul.f32 1.0, %v2161
      %v2163 = vrcp.pop %v2154
      %v2164 = vmul.f32 1.0, %v2163
      %v2165 = vrcp.pop %v2155
      %v2166 = vmul.f32 1.0, %v2165
      %v2167 = vrcp.pop %v2156
      %v2168 = vmul.f32 1.0, %v2167
      %v2169 = vrcp.pop %v2157
      %v2170 = vmul.f32 1.0, %v2169
      %v2171 = vrcp.pop %v2158
      %v2172 = vmul.f32 1.0, %v2171
      %v2173 = vrcp.pop %v2159
      %v2174 = vmul.f32 1.0, %v2173
      %v2175 = vrcp.pop %v2160
      %v2176 = vmul.f32 1.0, %v2175
      %v2177 = vtanh.pop %v2121
      %v2178 = vtanh.pop %v2122
      %v2179 = vtanh.pop %v2123
      %v2180 = vtanh.pop %v2124
      %v2181 = vtanh.pop %v2125
      %v2182 = vtanh.pop %v2126
      %v2183 = vtanh.pop %v2127
      %v2184 = vtanh.pop %v2128
      %v2193 = vrot.slane %v1816, 7
      %v2194 = vrot.slane %v1817, 7
      %v2195 = vrot.slane %v1818, 7
      %v2196 = vrot.slane %v1819, 7
      %v2197 = vrot.slane %v1820, 7
      %v2198 = vrot.slane %v1821, 7
      %v2199 = vrot.slane %v1822, 7
      %v2200 = vrot.slane %v1823, 7
      %v2209 = vmul.f32 %v2162, %v2193
      %v2210 = vmul.f32 %v2164, %v2194
      %v2211 = vmul.f32 %v2166, %v2195
      %v2212 = vmul.f32 %v2168, %v2196
      %v2213 = vmul.f32 %v2170, %v2197
      %v2214 = vmul.f32 %v2172, %v2198
      %v2215 = vmul.f32 %v2174, %v2199
      %v2216 = vmul.f32 %v2176, %v2200
      %2225 = vrot.lane.b32.xlu0 %v2177, 64
      %v2226 = vpop.permute.xlu0 %2225
      %2227 = vrot.lane.b32.xlu0 %v2178, 64
      %v2228 = vpop.permute.xlu0 %2227
      %2229 = vrot.lane.b32.xlu0 %v2179, 64
      %v2230 = vpop.permute.xlu0 %2229
      %2231 = vrot.lane.b32.xlu0 %v2180, 64
      %v2232 = vpop.permute.xlu0 %2231
      %2233 = vrot.lane.b32.xlu0 %v2181, 64
      %v2234 = vpop.permute.xlu0 %2233
      %2235 = vrot.lane.b32.xlu0 %v2182, 64
      %v2236 = vpop.permute.xlu0 %2235
      %2237 = vrot.lane.b32.xlu0 %v2183, 64
      %v2238 = vpop.permute.xlu0 %2237
      %2239 = vrot.lane.b32.xlu0 %v2184, 64
      %v2240 = vpop.permute.xlu0 %2239
      %v2249 = vmul.f32 %v2162, %v2226
      %v2250 = vmul.f32 %v2164, %v2228
      %v2251 = vmul.f32 %v2166, %v2230
      %v2252 = vmul.f32 %v2168, %v2232
      %v2253 = vmul.f32 %v2170, %v2234
      %v2254 = vmul.f32 %v2172, %v2236
      %v2255 = vmul.f32 %v2174, %v2238
      %v2256 = vmul.f32 %v2176, %v2240
      %2265 = vrot.lane.b32.xlu0 %v2249, 32
      %v2266 = vpop.permute.xlu0 %2265
      %2267 = vrot.lane.b32.xlu0 %v2250, 32
      %v2268 = vpop.permute.xlu0 %2267
      %2269 = vrot.lane.b32.xlu0 %v2251, 32
      %v2270 = vpop.permute.xlu0 %2269
      %2271 = vrot.lane.b32.xlu0 %v2252, 32
      %v2272 = vpop.permute.xlu0 %2271
      %2273 = vrot.lane.b32.xlu0 %v2253, 32
      %v2274 = vpop.permute.xlu0 %2273
      %2275 = vrot.lane.b32.xlu0 %v2254, 32
      %v2276 = vpop.permute.xlu0 %2275
      %2277 = vrot.lane.b32.xlu0 %v2255, 32
      %v2278 = vpop.permute.xlu0 %2277
      %2279 = vrot.lane.b32.xlu0 %v2256, 32
      %v2280 = vpop.permute.xlu0 %2279
      %v2289 = vadd.f32 %v2209, %v2266
      %v2290 = vadd.f32 %v2210, %v2268
      %v2291 = vadd.f32 %v2211, %v2270
      %v2292 = vadd.f32 %v2212, %v2272
      %v2293 = vadd.f32 %v2213, %v2274
      %v2294 = vadd.f32 %v2214, %v2276
      %v2295 = vadd.f32 %v2215, %v2278
      %v2296 = vadd.f32 %v2216, %v2280
      %v2297 = vtanh.pop %v2289
      %v2298 = vtanh.pop %v2290
      %v2299 = vtanh.pop %v2291
      %v2300 = vtanh.pop %v2292
      %v2301 = vtanh.pop %v2293
      %v2302 = vtanh.pop %v2294
      %v2303 = vtanh.pop %v2295
      %v2304 = vtanh.pop %v2296
      %2313 = vrot.lane.b32.xlu0 %v2297, 64
      %v2314 = vpop.permute.xlu0 %2313
      %2315 = vrot.lane.b32.xlu0 %v2298, 64
      %v2316 = vpop.permute.xlu0 %2315
      %2317 = vrot.lane.b32.xlu0 %v2299, 64
      %v2318 = vpop.permute.xlu0 %2317
      %2319 = vrot.lane.b32.xlu0 %v2300, 64
      %v2320 = vpop.permute.xlu0 %2319
      %2321 = vrot.lane.b32.xlu0 %v2301, 64
      %v2322 = vpop.permute.xlu0 %2321
      %2323 = vrot.lane.b32.xlu0 %v2302, 64
      %v2324 = vpop.permute.xlu0 %2323
      %2325 = vrot.lane.b32.xlu0 %v2303, 64
      %v2326 = vpop.permute.xlu0 %2325
      %2327 = vrot.lane.b32.xlu0 %v2304, 64
      %v2328 = vpop.permute.xlu0 %2327
      %v2337 = vmul.f32 %v2162, %v2314
      %v2338 = vmul.f32 %v2164, %v2316
      %v2339 = vmul.f32 %v2166, %v2318
      %v2340 = vmul.f32 %v2168, %v2320
      %v2341 = vmul.f32 %v2170, %v2322
      %v2342 = vmul.f32 %v2172, %v2324
      %v2343 = vmul.f32 %v2174, %v2326
      %v2344 = vmul.f32 %v2176, %v2328
      %v2353 = vrot.slane %v2338, 7
      %v2354 = vsel %vm951, %v2353, %v2337
      %v2355 = vrot.slane %v2339, 6
      %v2356 = vsel %vm954, %v2355, %v2354
      %v2357 = vrot.slane %v2340, 5
      %v2358 = vsel %vm957, %v2357, %v2356
      %v2359 = vrot.slane %v2341, 4
      %v2360 = vsel %vm960, %v2359, %v2358
      %v2361 = vrot.slane %v2342, 3
      %v2362 = vrot.slane %v2343, 2
      %v2363 = vsel %vm942, %v2362, %v2361
      %v2364 = vrot.slane %v2344, 1
      %v2365 = vsel %vm945, %v2364, %v2363
      %2366 = vrot.lane.b32.xlu0 %v2360, 32
      %v2367 = vpop.permute.xlu0 %2366
      %2368 = vrot.lane.b32.xlu0 %v2365, 32
      %v2369 = vpop.permute.xlu0 %2368
      %v2373 = vrot.slane %v2007, 5
      %2374 = vrot.lane.b32.xlu0 %v2373, 64
      %v2375 = vpop.permute.xlu0 %2374
      %v2377 = vsel %vm643, %v2367, %v2375
      %v2378 = vsel %vm643, %v2369, %v2375
      %vm2381 = vcmask 1044480
      %v2382 = vrot.slane %v2377, 3
      %v2383 = vrot.slane %v2378, 3
      %v2384 = vsel %vm2381, %v2382, %v2383
      %v2385 = vsel %vm966, %v2384, 0
      %2387 = vmatprep.subr.mxu0 0.0
      %2388 = vmatpush1.msra.mxu0 %v626
      %2389 = vmatprep.subr.mxu0 0.0
      %2390 = vmatpush1.msra.mxu0 %v627
      %2391 = vmatprep.subr.mxu0 0.0
      %2392 = vmatpush1.msra.mxu0 %v628
      %2393 = vmatprep.subr.mxu0 0.0
      %2394 = vmatpush1.msra.mxu0 %v629
      %2395 = vmatprep.subr.mxu0 0.0
      %2396 = vmatpush1.msra.mxu0 %v630
      %2397 = vmatprep.subr.mxu0 0.0
      %2398 = vmatpush1.msra.mxu0 %v631
      %2399 = vmatprep.subr.mxu0 0.0
      %2400 = vmatpush1.msra.mxu0 %v632
      %2401 = vmatprep.subr.mxu0 0.0
      %2402 = vmatpush1.msra.mxu0 %v633
      %2403 = vmatprep.subr.mxu0 0.0
      %2404 = vmatpush1.msra.mxu0 0.0
      %2405 = vmatprep.subr.mxu0 0.0
      %2406 = vmatpush1.msra.mxu0 0.0
      %2407 = vmatprep.subr.mxu0 0.0
      %2408 = vmatpush1.msra.mxu0 0.0
      %2409 = vmatprep.subr.mxu0 0.0
      %2410 = vmatpush1.msra.mxu0 0.0
      %2411 = vmatprep.subr.mxu0 0.0
      %2412 = vmatpush1.msra.mxu0 0.0
      %2413 = vmatprep.subr.mxu0 0.0
      %2414 = vmatpush1.msra.mxu0 0.0
      %2415 = vmatprep.subr.mxu0 0.0
      %2416 = vmatpush1.msra.mxu0 0.0
      %2417 = vmatprep.subr.mxu0 0.0
      %2418 = vmatpush1.msra.mxu0 0.0
      %2419 = vmatprep.subr.mxu0 0.0
      %2420 = vmatpush1.msra.mxu0 0.0
      %2421 = vmatprep.subr.mxu0 0.0
      %2422 = vmatpush1.msra.mxu0 0.0
      %2423 = vmatprep.subr.mxu0 0.0
      %2424 = vmatpush1.msra.mxu0 0.0
      %2425 = vmatprep.subr.mxu0 0.0
      %2426 = vmatpush1.msra.mxu0 0.0
      %2427 = vmatprep.subr.mxu0 0.0
      %2428 = vmatpush1.msra.mxu0 0.0
      %2429 = vmatprep.subr.mxu0 0.0
      %2430 = vmatpush1.msra.mxu0 0.0
      %2431 = vmatprep.subr.mxu0 0.0
      %2432 = vmatpush1.msra.mxu0 0.0
      %2433 = vmatprep.subr.mxu0 0.0
      %2434 = vmatpush1.msra.mxu0 0.0
      %2435 = vmatprep.subr.mxu0 0.0
      %2436 = vmatpush1.msra.mxu0 0.0
      %2437 = vmatprep.subr.mxu0 0.0
      %2438 = vmatpush1.msra.mxu0 0.0
      %2439 = vmatprep.subr.mxu0 0.0
      %2440 = vmatpush1.msra.mxu0 0.0
      %2441 = vmatprep.subr.mxu0 0.0
      %2442 = vmatpush1.msra.mxu0 0.0
      %2443 = vmatprep.subr.mxu0 0.0
      %2444 = vmatpush1.msra.mxu0 0.0
      %2445 = vmatprep.subr.mxu0 0.0
      %2446 = vmatpush1.msra.mxu0 0.0
      %2447 = vmatprep.subr.mxu0 0.0
      %2448 = vmatpush1.msra.mxu0 0.0
      %2449 = vmatprep.subr.mxu0 0.0
      %2450 = vmatpush1.msra.mxu0 0.0
      %2451 = vmatprep.mubr.f32.mxu0 0.0
      %2452 = vmatmul.mubr.f32.gmra.mrb[0].mxu0 %v2385
      %v2453 = vpop.f32.mrb[0].mxu0
      %v2454 = vadd.f32 %v639, %v2453
      %v2455 = vpop.f32.mrb[0].mxu0
      %2456 = vdwg.mxu0
      %v2457 = vxor.u32 %v2454, 2147483648
      %v2458 = vmul.f32 %v2457, 1.442695
      %v2459 = vpow.pop %v2458
      %v2460 = vadd.f32 %v2459, 1.0
      %v2461 = vrcp.pop %v2460
      %v2462 = vmul.f32 1.0, %v2461
      %v2463 = vtanh.pop %v2454
      %v2464 = vmul.f32 %v2462, %v2001
      %2466 = vrot.lane.b32.xlu0 %v2463, 64
      %v2467 = vpop.permute.xlu0 %2466
      %v2469 = vmul.f32 %v2462, %v2467
      %2471 = vrot.lane.b32.xlu0 %v2469, 32
      %v2472 = vpop.permute.xlu0 %2471
      %v2474 = vadd.f32 %v2464, %v2472
      %v2475 = vtanh.pop %v2474
      %2477 = vrot.lane.b32.xlu0 %v2475, 64
      %v2478 = vpop.permute.xlu0 %2477
      %v2480 = vmul.f32 %v2462, %v2478
      %v2481 = vmul.f32 %v2480, %v1070
      %2483 = vrot.lane.b32.xlu0 %v2481, 32
      %v2484 = vpop.permute.xlu0 %2483
      %v2486 = vsel %vm643, %v2484, 0.0
      %2487 = vadd.xlane.f32.xlu0 %v2486
      %v2488 = vpop.xlane.xlu0 %2487
      %v2489 = vadd.f32 %v2488, %v1084
      %v2490 = vrot.slane %v2337, 3
      %v2491 = vrot.slane %v2338, 2
      %v2492 = vsel %vm942, %v2491, %v2490
      %v2493 = vrot.slane %v2339, 1
      %v2494 = vsel %vm945, %v2493, %v2492
      %v2495 = vsel %vm948, %v2340, %v2494
      %v2496 = vrot.slane %v2341, 7
      %v2497 = vsel %vm951, %v2496, %v2495
      %v2498 = vrot.slane %v2342, 6
      %v2499 = vsel %vm954, %v2498, %v2497
      %v2500 = vrot.slane %v2343, 5
      %v2501 = vsel %vm957, %v2500, %v2499
      %v2502 = vrot.slane %v2344, 4
      %v2503 = vsel %vm960, %v2502, %v2501
      %2504 = vrot.lane.b32.xlu0 %v2503, 32
      %v2505 = vpop.permute.xlu0 %2504
      %v2506 = vsel %vm643, %v2505, 0
      %2508 = vmatprep.subr.mxu0 0.0
      %2509 = vmatpush1.msra.mxu0 %v622
      %2510 = vmatprep.subr.mxu0 0.0
      %2511 = vmatpush1.msra.mxu0 %v623
      %2512 = vmatprep.subr.mxu0 0.0
      %2513 = vmatpush1.msra.mxu0 %v624
      %2514 = vmatprep.subr.mxu0 0.0
      %2515 = vmatpush1.msra.mxu0 %v625
      %2516 = vmatprep.subr.mxu0 0.0
      %2517 = vmatpush1.msra.mxu0 0.0
      %2518 = vmatprep.subr.mxu0 0.0
      %2519 = vmatpush1.msra.mxu0 0.0
      %2520 = vmatprep.subr.mxu0 0.0
      %2521 = vmatpush1.msra.mxu0 0.0
      %2522 = vmatprep.subr.mxu0 0.0
      %2523 = vmatpush1.msra.mxu0 0.0
      %2524 = vmatprep.subr.mxu0 0.0
      %2525 = vmatpush1.msra.mxu0 0.0
      %2526 = vmatprep.subr.mxu0 0.0
      %2527 = vmatpush1.msra.mxu0 0.0
      %2528 = vmatprep.subr.mxu0 0.0
      %2529 = vmatpush1.msra.mxu0 0.0
      %2530 = vmatprep.subr.mxu0 0.0
      %2531 = vmatpush1.msra.mxu0 0.0
      %2532 = vmatprep.subr.mxu0 0.0
      %2533 = vmatpush1.msra.mxu0 0.0
      %2534 = vmatprep.subr.mxu0 0.0
      %2535 = vmatpush1.msra.mxu0 0.0
      %2536 = vmatprep.subr.mxu0 0.0
      %2537 = vmatpush1.msra.mxu0 0.0
      %2538 = vmatprep.subr.mxu0 0.0
      %2539 = vmatpush1.msra.mxu0 0.0
      %2540 = vmatprep.subr.mxu0 0.0
      %2541 = vmatpush1.msra.mxu0 0.0
      %2542 = vmatprep.subr.mxu0 0.0
      %2543 = vmatpush1.msra.mxu0 0.0
      %2544 = vmatprep.subr.mxu0 0.0
      %2545 = vmatpush1.msra.mxu0 0.0
      %2546 = vmatprep.subr.mxu0 0.0
      %2547 = vmatpush1.msra.mxu0 0.0
      %2548 = vmatprep.subr.mxu0 0.0
      %2549 = vmatpush1.msra.mxu0 0.0
      %2550 = vmatprep.subr.mxu0 0.0
      %2551 = vmatpush1.msra.mxu0 0.0
      %2552 = vmatprep.subr.mxu0 0.0
      %2553 = vmatpush1.msra.mxu0 0.0
      %2554 = vmatprep.subr.mxu0 0.0
      %2555 = vmatpush1.msra.mxu0 0.0
      %2556 = vmatprep.subr.mxu0 0.0
      %2557 = vmatpush1.msra.mxu0 0.0
      %2558 = vmatprep.subr.mxu0 0.0
      %2559 = vmatpush1.msra.mxu0 0.0
      %2560 = vmatprep.subr.mxu0 0.0
      %2561 = vmatpush1.msra.mxu0 0.0
      %2562 = vmatprep.subr.mxu0 0.0
      %2563 = vmatpush1.msra.mxu0 0.0
      %2564 = vmatprep.subr.mxu0 0.0
      %2565 = vmatpush1.msra.mxu0 0.0
      %2566 = vmatprep.subr.mxu0 0.0
      %2567 = vmatpush1.msra.mxu0 0.0
      %2568 = vmatprep.subr.mxu0 0.0
      %2569 = vmatpush1.msra.mxu0 0.0
      %2570 = vmatprep.subr.mxu0 0.0
      %2571 = vmatpush1.msra.mxu0 0.0
      %2572 = vmatprep.mubr.f32.mxu0 0.0
      %2573 = vmatmul.mubr.f32.gmra.mrb[0].mxu0 %v2506
      %v2574 = vpop.f32.mrb[0].mxu0
      %v2575 = vadd.f32 0.0, %v2574
      %v2576 = vpop.f32.mrb[0].mxu0
      %2577 = vdwg.mxu0
      %v2579 = vrot.slane %v2575, 4
      %v2580 = vrot.slane %v2575, 5
      %v2581 = vrot.slane %v2575, 6
      %v2582 = vrot.slane %v2575, 7
      %v2583 = vrot.slane %v2575, 1
      %v2584 = vrot.slane %v2575, 2
      %v2585 = vrot.slane %v2575, 3
      %v2594 = vadd.f32 %v584, %v2579
      %v2595 = vadd.f32 %v589, %v2580
      %v2596 = vadd.f32 %v594, %v2581
      %v2597 = vadd.f32 %v599, %v2582
      %v2598 = vadd.f32 %v604, %v2575
      %v2599 = vadd.f32 %v609, %v2583
      %v2600 = vadd.f32 %v614, %v2584
      %v2601 = vadd.f32 %v619, %v2585
      %v2602 = vxor.u32 %v2594, 2147483648
      %v2603 = vxor.u32 %v2595, 2147483648
      %v2604 = vxor.u32 %v2596, 2147483648
      %v2605 = vxor.u32 %v2597, 2147483648
      %v2606 = vxor.u32 %v2598, 2147483648
      %v2607 = vxor.u32 %v2599, 2147483648
      %v2608 = vxor.u32 %v2600, 2147483648
      %v2609 = vxor.u32 %v2601, 2147483648
      %v2610 = vmul.f32 %v2602, 1.442695
      %v2611 = vpow.pop %v2610
      %v2612 = vmul.f32 %v2603, 1.442695
      %v2613 = vpow.pop %v2612
      %v2614 = vmul.f32 %v2604, 1.442695
      %v2615 = vpow.pop %v2614
      %v2616 = vmul.f32 %v2605, 1.442695
      %v2617 = vpow.pop %v2616
      %v2618 = vmul.f32 %v2606, 1.442695
      %v2619 = vpow.pop %v2618
      %v2620 = vmul.f32 %v2607, 1.442695
      %v2621 = vpow.pop %v2620
      %v2622 = vmul.f32 %v2608, 1.442695
      %v2623 = vpow.pop %v2622
      %v2624 = vmul.f32 %v2609, 1.442695
      %v2625 = vpow.pop %v2624
      %v2626 = vadd.f32 %v2611, 1.0
      %v2627 = vadd.f32 %v2613, 1.0
      %v2628 = vadd.f32 %v2615, 1.0
      %v2629 = vadd.f32 %v2617, 1.0
      %v2630 = vadd.f32 %v2619, 1.0
      %v2631 = vadd.f32 %v2621, 1.0
      %v2632 = vadd.f32 %v2623, 1.0
      %v2633 = vadd.f32 %v2625, 1.0
      %v2634 = vrcp.pop %v2626
      %v2635 = vmul.f32 1.0, %v2634
      %v2636 = vrcp.pop %v2627
      %v2637 = vmul.f32 1.0, %v2636
      %v2638 = vrcp.pop %v2628
      %v2639 = vmul.f32 1.0, %v2638
      %v2640 = vrcp.pop %v2629
      %v2641 = vmul.f32 1.0, %v2640
      %v2642 = vrcp.pop %v2630
      %v2643 = vmul.f32 1.0, %v2642
      %v2644 = vrcp.pop %v2631
      %v2645 = vmul.f32 1.0, %v2644
      %v2646 = vrcp.pop %v2632
      %v2647 = vmul.f32 1.0, %v2646
      %v2648 = vrcp.pop %v2633
      %v2649 = vmul.f32 1.0, %v2648
      %v2650 = vtanh.pop %v2594
      %v2651 = vtanh.pop %v2595
      %v2652 = vtanh.pop %v2596
      %v2653 = vtanh.pop %v2597
      %v2654 = vtanh.pop %v2598
      %v2655 = vtanh.pop %v2599
      %v2656 = vtanh.pop %v2600
      %v2657 = vtanh.pop %v2601
      %v2666 = vrot.slane %v2289, 7
      %v2667 = vrot.slane %v2290, 7
      %v2668 = vrot.slane %v2291, 7
      %v2669 = vrot.slane %v2292, 7
      %v2670 = vrot.slane %v2293, 7
      %v2671 = vrot.slane %v2294, 7
      %v2672 = vrot.slane %v2295, 7
      %v2673 = vrot.slane %v2296, 7
      %v2682 = vmul.f32 %v2635, %v2666
      %v2683 = vmul.f32 %v2637, %v2667
      %v2684 = vmul.f32 %v2639, %v2668
      %v2685 = vmul.f32 %v2641, %v2669
      %v2686 = vmul.f32 %v2643, %v2670
      %v2687 = vmul.f32 %v2645, %v2671
      %v2688 = vmul.f32 %v2647, %v2672
      %v2689 = vmul.f32 %v2649, %v2673
      %2698 = vrot.lane.b32.xlu0 %v2650, 64
      %v2699 = vpop.permute.xlu0 %2698
      %2700 = vrot.lane.b32.xlu0 %v2651, 64
      %v2701 = vpop.permute.xlu0 %2700
      %2702 = vrot.lane.b32.xlu0 %v2652, 64
      %v2703 = vpop.permute.xlu0 %2702
      %2704 = vrot.lane.b32.xlu0 %v2653, 64
      %v2705 = vpop.permute.xlu0 %2704
      %2706 = vrot.lane.b32.xlu0 %v2654, 64
      %v2707 = vpop.permute.xlu0 %2706
      %2708 = vrot.lane.b32.xlu0 %v2655, 64
      %v2709 = vpop.permute.xlu0 %2708
      %2710 = vrot.lane.b32.xlu0 %v2656, 64
      %v2711 = vpop.permute.xlu0 %2710
      %2712 = vrot.lane.b32.xlu0 %v2657, 64
      %v2713 = vpop.permute.xlu0 %2712
      %v2722 = vmul.f32 %v2635, %v2699
      %v2723 = vmul.f32 %v2637, %v2701
      %v2724 = vmul.f32 %v2639, %v2703
      %v2725 = vmul.f32 %v2641, %v2705
      %v2726 = vmul.f32 %v2643, %v2707
      %v2727 = vmul.f32 %v2645, %v2709
      %v2728 = vmul.f32 %v2647, %v2711
      %v2729 = vmul.f32 %v2649, %v2713
      %2738 = vrot.lane.b32.xlu0 %v2722, 32
      %v2739 = vpop.permute.xlu0 %2738
      %2740 = vrot.lane.b32.xlu0 %v2723, 32
      %v2741 = vpop.permute.xlu0 %2740
      %2742 = vrot.lane.b32.xlu0 %v2724, 32
      %v2743 = vpop.permute.xlu0 %2742
      %2744 = vrot.lane.b32.xlu0 %v2725, 32
      %v2745 = vpop.permute.xlu0 %2744
      %2746 = vrot.lane.b32.xlu0 %v2726, 32
      %v2747 = vpop.permute.xlu0 %2746
      %2748 = vrot.lane.b32.xlu0 %v2727, 32
      %v2749 = vpop.permute.xlu0 %2748
      %2750 = vrot.lane.b32.xlu0 %v2728, 32
      %v2751 = vpop.permute.xlu0 %2750
      %2752 = vrot.lane.b32.xlu0 %v2729, 32
      %v2753 = vpop.permute.xlu0 %2752
      %v2762 = vadd.f32 %v2682, %v2739
      %v2763 = vadd.f32 %v2683, %v2741
      %v2764 = vadd.f32 %v2684, %v2743
      %v2765 = vadd.f32 %v2685, %v2745
      %v2766 = vadd.f32 %v2686, %v2747
      %v2767 = vadd.f32 %v2687, %v2749
      %v2768 = vadd.f32 %v2688, %v2751
      %v2769 = vadd.f32 %v2689, %v2753
      %v2770 = vtanh.pop %v2762
      %v2771 = vtanh.pop %v2763
      %v2772 = vtanh.pop %v2764
      %v2773 = vtanh.pop %v2765
      %v2774 = vtanh.pop %v2766
      %v2775 = vtanh.pop %v2767
      %v2776 = vtanh.pop %v2768
      %v2777 = vtanh.pop %v2769
      %2786 = vrot.lane.b32.xlu0 %v2770, 64
      %v2787 = vpop.permute.xlu0 %2786
      %2788 = vrot.lane.b32.xlu0 %v2771, 64
      %v2789 = vpop.permute.xlu0 %2788
      %2790 = vrot.lane.b32.xlu0 %v2772, 64
      %v2791 = vpop.permute.xlu0 %2790
      %2792 = vrot.lane.b32.xlu0 %v2773, 64
      %v2793 = vpop.permute.xlu0 %2792
      %2794 = vrot.lane.b32.xlu0 %v2774, 64
      %v2795 = vpop.permute.xlu0 %2794
      %2796 = vrot.lane.b32.xlu0 %v2775, 64
      %v2797 = vpop.permute.xlu0 %2796
      %2798 = vrot.lane.b32.xlu0 %v2776, 64
      %v2799 = vpop.permute.xlu0 %2798
      %2800 = vrot.lane.b32.xlu0 %v2777, 64
      %v2801 = vpop.permute.xlu0 %2800
      %v2810 = vmul.f32 %v2635, %v2787
      %v2811 = vmul.f32 %v2637, %v2789
      %v2812 = vmul.f32 %v2639, %v2791
      %v2813 = vmul.f32 %v2641, %v2793
      %v2814 = vmul.f32 %v2643, %v2795
      %v2815 = vmul.f32 %v2645, %v2797
      %v2816 = vmul.f32 %v2647, %v2799
      %v2817 = vmul.f32 %v2649, %v2801
      %v2826 = vrot.slane %v2811, 7
      %v2827 = vsel %vm954, %v2826, %v2810
      %v2828 = vrot.slane %v2812, 6
      %v2829 = vsel %vm957, %v2828, %v2827
      %v2830 = vrot.slane %v2813, 5
      %v2831 = vsel %vm960, %v2830, %v2829
      %v2832 = vrot.slane %v2814, 4
      %v2833 = vrot.slane %v2815, 3
      %v2834 = vsel %vm942, %v2833, %v2832
      %v2835 = vrot.slane %v2816, 2
      %v2836 = vsel %vm945, %v2835, %v2834
      %v2837 = vrot.slane %v2817, 1
      %v2838 = vsel %vm948, %v2837, %v2836
      %2839 = vrot.lane.b32.xlu0 %v2831, 32
      %v2840 = vpop.permute.xlu0 %2839
      %2841 = vrot.lane.b32.xlu0 %v2838, 32
      %v2842 = vpop.permute.xlu0 %2841
      %v2846 = vrot.slane %v2480, 4
      %2847 = vrot.lane.b32.xlu0 %v2846, 64
      %v2848 = vpop.permute.xlu0 %2847
      %v2850 = vsel %vm643, %v2840, %v2848
      %v2851 = vsel %vm643, %v2842, %v2848
      %v2854 = vrot.slane %v2850, 4
      %v2855 = vrot.slane %v2851, 4
      %v2856 = vsel %vm513, %v2854, %v2855
      %v2857 = vsel %vm966, %v2856, 0
      %2859 = vmatprep.subr.mxu0 0.0
      %2860 = vmatpush1.msra.mxu0 %v626
      %2861 = vmatprep.subr.mxu0 0.0
      %2862 = vmatpush1.msra.mxu0 %v627
      %2863 = vmatprep.subr.mxu0 0.0
      %2864 = vmatpush1.msra.mxu0 %v628
      %2865 = vmatprep.subr.mxu0 0.0
      %2866 = vmatpush1.msra.mxu0 %v629
      %2867 = vmatprep.subr.mxu0 0.0
      %2868 = vmatpush1.msra.mxu0 %v630
      %2869 = vmatprep.subr.mxu0 0.0
      %2870 = vmatpush1.msra.mxu0 %v631
      %2871 = vmatprep.subr.mxu0 0.0
      %2872 = vmatpush1.msra.mxu0 %v632
      %2873 = vmatprep.subr.mxu0 0.0
      %2874 = vmatpush1.msra.mxu0 %v633
      %2875 = vmatprep.subr.mxu0 0.0
      %2876 = vmatpush1.msra.mxu0 0.0
      %2877 = vmatprep.subr.mxu0 0.0
      %2878 = vmatpush1.msra.mxu0 0.0
      %2879 = vmatprep.subr.mxu0 0.0
      %2880 = vmatpush1.msra.mxu0 0.0
      %2881 = vmatprep.subr.mxu0 0.0
      %2882 = vmatpush1.msra.mxu0 0.0
      %2883 = vmatprep.subr.mxu0 0.0
      %2884 = vmatpush1.msra.mxu0 0.0
      %2885 = vmatprep.subr.mxu0 0.0
      %2886 = vmatpush1.msra.mxu0 0.0
      %2887 = vmatprep.subr.mxu0 0.0
      %2888 = vmatpush1.msra.mxu0 0.0
      %2889 = vmatprep.subr.mxu0 0.0
      %2890 = vmatpush1.msra.mxu0 0.0
      %2891 = vmatprep.subr.mxu0 0.0
      %2892 = vmatpush1.msra.mxu0 0.0
      %2893 = vmatprep.subr.mxu0 0.0
      %2894 = vmatpush1.msra.mxu0 0.0
      %2895 = vmatprep.subr.mxu0 0.0
      %2896 = vmatpush1.msra.mxu0 0.0
      %2897 = vmatprep.subr.mxu0 0.0
      %2898 = vmatpush1.msra.mxu0 0.0
      %2899 = vmatprep.subr.mxu0 0.0
      %2900 = vmatpush1.msra.mxu0 0.0
      %2901 = vmatprep.subr.mxu0 0.0
      %2902 = vmatpush1.msra.mxu0 0.0
      %2903 = vmatprep.subr.mxu0 0.0
      %2904 = vmatpush1.msra.mxu0 0.0
      %2905 = vmatprep.subr.mxu0 0.0
      %2906 = vmatpush1.msra.mxu0 0.0
      %2907 = vmatprep.subr.mxu0 0.0
      %2908 = vmatpush1.msra.mxu0 0.0
      %2909 = vmatprep.subr.mxu0 0.0
      %2910 = vmatpush1.msra.mxu0 0.0
      %2911 = vmatprep.subr.mxu0 0.0
      %2912 = vmatpush1.msra.mxu0 0.0
      %2913 = vmatprep.subr.mxu0 0.0
      %2914 = vmatpush1.msra.mxu0 0.0
      %2915 = vmatprep.subr.mxu0 0.0
      %2916 = vmatpush1.msra.mxu0 0.0
      %2917 = vmatprep.subr.mxu0 0.0
      %2918 = vmatpush1.msra.mxu0 0.0
      %2919 = vmatprep.subr.mxu0 0.0
      %2920 = vmatpush1.msra.mxu0 0.0
      %2921 = vmatprep.subr.mxu0 0.0
      %2922 = vmatpush1.msra.mxu0 0.0
      %2923 = vmatprep.mubr.f32.mxu0 0.0
      %2924 = vmatmul.mubr.f32.gmra.mrb[0].mxu0 %v2857
      %v2925 = vpop.f32.mrb[0].mxu0
      %v2926 = vadd.f32 %v639, %v2925
      %v2927 = vpop.f32.mrb[0].mxu0
      %2928 = vdwg.mxu0
      %v2929 = vxor.u32 %v2926, 2147483648
      %v2930 = vmul.f32 %v2929, 1.442695
      %v2931 = vpow.pop %v2930
      %v2932 = vadd.f32 %v2931, 1.0
      %v2933 = vrcp.pop %v2932
      %v2934 = vmul.f32 1.0, %v2933
      %v2935 = vtanh.pop %v2926
      %v2936 = vmul.f32 %v2934, %v2474
      %2938 = vrot.lane.b32.xlu0 %v2935, 64
      %v2939 = vpop.permute.xlu0 %2938
      %v2941 = vmul.f32 %v2934, %v2939
      %2943 = vrot.lane.b32.xlu0 %v2941, 32
      %v2944 = vpop.permute.xlu0 %2943
      %v2946 = vadd.f32 %v2936, %v2944
      %v2947 = vtanh.pop %v2946
      %2949 = vrot.lane.b32.xlu0 %v2947, 64
      %v2950 = vpop.permute.xlu0 %2949
      %v2952 = vmul.f32 %v2934, %v2950
      %v2953 = vmul.f32 %v2952, %v1070
      %2955 = vrot.lane.b32.xlu0 %v2953, 32
      %v2956 = vpop.permute.xlu0 %2955
      %v2958 = vsel %vm643, %v2956, 0.0
      %2959 = vadd.xlane.f32.xlu0 %v2958
      %v2960 = vpop.xlane.xlu0 %2959
      %v2961 = vadd.f32 %v2960, %v1084
      %v2962 = vrot.slane %v2810, 4
      %v2963 = vrot.slane %v2811, 3
      %v2964 = vsel %vm942, %v2963, %v2962
      %v2965 = vrot.slane %v2812, 2
      %v2966 = vsel %vm945, %v2965, %v2964
      %v2967 = vrot.slane %v2813, 1
      %v2968 = vsel %vm948, %v2967, %v2966
      %v2969 = vsel %vm951, %v2814, %v2968
      %v2970 = vrot.slane %v2815, 7
      %v2971 = vsel %vm954, %v2970, %v2969
      %v2972 = vrot.slane %v2816, 6
      %v2973 = vsel %vm957, %v2972, %v2971
      %v2974 = vrot.slane %v2817, 5
      %v2975 = vsel %vm960, %v2974, %v2973
      %2976 = vrot.lane.b32.xlu0 %v2975, 32
      %v2977 = vpop.permute.xlu0 %2976
      %v2978 = vsel %vm643, %v2977, 0
      %2980 = vmatprep.subr.mxu0 0.0
      %2981 = vmatpush1.msra.mxu0 %v622
      %2982 = vmatprep.subr.mxu0 0.0
      %2983 = vmatpush1.msra.mxu0 %v623
      %2984 = vmatprep.subr.mxu0 0.0
      %2985 = vmatpush1.msra.mxu0 %v624
      %2986 = vmatprep.subr.mxu0 0.0
      %2987 = vmatpush1.msra.mxu0 %v625
      %2988 = vmatprep.subr.mxu0 0.0
      %2989 = vmatpush1.msra.mxu0 0.0
      %2990 = vmatprep.subr.mxu0 0.0
      %2991 = vmatpush1.msra.mxu0 0.0
      %2992 = vmatprep.subr.mxu0 0.0
      %2993 = vmatpush1.msra.mxu0 0.0
      %2994 = vmatprep.subr.mxu0 0.0
      %2995 = vmatpush1.msra.mxu0 0.0
      %2996 = vmatprep.subr.mxu0 0.0
      %2997 = vmatpush1.msra.mxu0 0.0
      %2998 = vmatprep.subr.mxu0 0.0
      %2999 = vmatpush1.msra.mxu0 0.0
      %3000 = vmatprep.subr.mxu0 0.0
      %3001 = vmatpush1.msra.mxu0 0.0
      %3002 = vmatprep.subr.mxu0 0.0
      %3003 = vmatpush1.msra.mxu0 0.0
      %3004 = vmatprep.subr.mxu0 0.0
      %3005 = vmatpush1.msra.mxu0 0.0
      %3006 = vmatprep.subr.mxu0 0.0
      %3007 = vmatpush1.msra.mxu0 0.0
      %3008 = vmatprep.subr.mxu0 0.0
      %3009 = vmatpush1.msra.mxu0 0.0
      %3010 = vmatprep.subr.mxu0 0.0
      %3011 = vmatpush1.msra.mxu0 0.0
      %3012 = vmatprep.subr.mxu0 0.0
      %3013 = vmatpush1.msra.mxu0 0.0
      %3014 = vmatprep.subr.mxu0 0.0
      %3015 = vmatpush1.msra.mxu0 0.0
      %3016 = vmatprep.subr.mxu0 0.0
      %3017 = vmatpush1.msra.mxu0 0.0
      %3018 = vmatprep.subr.mxu0 0.0
      %3019 = vmatpush1.msra.mxu0 0.0
      %3020 = vmatprep.subr.mxu0 0.0
      %3021 = vmatpush1.msra.mxu0 0.0
      %3022 = vmatprep.subr.mxu0 0.0
      %3023 = vmatpush1.msra.mxu0 0.0
      %3024 = vmatprep.subr.mxu0 0.0
      %3025 = vmatpush1.msra.mxu0 0.0
      %3026 = vmatprep.subr.mxu0 0.0
      %3027 = vmatpush1.msra.mxu0 0.0
      %3028 = vmatprep.subr.mxu0 0.0
      %3029 = vmatpush1.msra.mxu0 0.0
      %3030 = vmatprep.subr.mxu0 0.0
      %3031 = vmatpush1.msra.mxu0 0.0
      %3032 = vmatprep.subr.mxu0 0.0
      %3033 = vmatpush1.msra.mxu0 0.0
      %3034 = vmatprep.subr.mxu0 0.0
      %3035 = vmatpush1.msra.mxu0 0.0
      %3036 = vmatprep.subr.mxu0 0.0
      %3037 = vmatpush1.msra.mxu0 0.0
      %3038 = vmatprep.subr.mxu0 0.0
      %3039 = vmatpush1.msra.mxu0 0.0
      %3040 = vmatprep.subr.mxu0 0.0
      %3041 = vmatpush1.msra.mxu0 0.0
      %3042 = vmatprep.subr.mxu0 0.0
      %3043 = vmatpush1.msra.mxu0 0.0
      %3044 = vmatprep.mubr.f32.mxu0 0.0
      %3045 = vmatmul.mubr.f32.gmra.mrb[0].mxu0 %v2978
      %v3046 = vpop.f32.mrb[0].mxu0
      %v3047 = vadd.f32 0.0, %v3046
      %v3048 = vpop.f32.mrb[0].mxu0
      %3049 = vdwg.mxu0
      %v3051 = vrot.slane %v3047, 3
      %v3052 = vrot.slane %v3047, 4
      %v3053 = vrot.slane %v3047, 5
      %v3054 = vrot.slane %v3047, 6
      %v3055 = vrot.slane %v3047, 7
      %v3056 = vrot.slane %v3047, 1
      %v3057 = vrot.slane %v3047, 2
      %v3066 = vadd.f32 %v584, %v3051
      %v3067 = vadd.f32 %v589, %v3052
      %v3068 = vadd.f32 %v594, %v3053
      %v3069 = vadd.f32 %v599, %v3054
      %v3070 = vadd.f32 %v604, %v3055
      %v3071 = vadd.f32 %v609, %v3047
      %v3072 = vadd.f32 %v614, %v3056
      %v3073 = vadd.f32 %v619, %v3057
      %v3074 = vxor.u32 %v3066, 2147483648
      %v3075 = vxor.u32 %v3067, 2147483648
      %v3076 = vxor.u32 %v3068, 2147483648
      %v3077 = vxor.u32 %v3069, 2147483648
      %v3078 = vxor.u32 %v3070, 2147483648
      %v3079 = vxor.u32 %v3071, 2147483648
      %v3080 = vxor.u32 %v3072, 2147483648
      %v3081 = vxor.u32 %v3073, 2147483648
      %v3082 = vmul.f32 %v3074, 1.442695
      %v3083 = vpow.pop %v3082
      %v3084 = vmul.f32 %v3075, 1.442695
      %v3085 = vpow.pop %v3084
      %v3086 = vmul.f32 %v3076, 1.442695
      %v3087 = vpow.pop %v3086
      %v3088 = vmul.f32 %v3077, 1.442695
      %v3089 = vpow.pop %v3088
      %v3090 = vmul.f32 %v3078, 1.442695
      %v3091 = vpow.pop %v3090
      %v3092 = vmul.f32 %v3079, 1.442695
      %v3093 = vpow.pop %v3092
      %v3094 = vmul.f32 %v3080, 1.442695
      %v3095 = vpow.pop %v3094
      %v3096 = vmul.f32 %v3081, 1.442695
      %v3097 = vpow.pop %v3096
      %v3098 = vadd.f32 %v3083, 1.0
      %v3099 = vadd.f32 %v3085, 1.0
      %v3100 = vadd.f32 %v3087, 1.0
      %v3101 = vadd.f32 %v3089, 1.0
      %v3102 = vadd.f32 %v3091, 1.0
      %v3103 = vadd.f32 %v3093, 1.0
      %v3104 = vadd.f32 %v3095, 1.0
      %v3105 = vadd.f32 %v3097, 1.0
      %v3106 = vrcp.pop %v3098
      %v3107 = vmul.f32 1.0, %v3106
      %v3108 = vrcp.pop %v3099
      %v3109 = vmul.f32 1.0, %v3108
      %v3110 = vrcp.pop %v3100
      %v3111 = vmul.f32 1.0, %v3110
      %v3112 = vrcp.pop %v3101
      %v3113 = vmul.f32 1.0, %v3112
      %v3114 = vrcp.pop %v3102
      %v3115 = vmul.f32 1.0, %v3114
      %v3116 = vrcp.pop %v3103
      %v3117 = vmul.f32 1.0, %v3116
      %v3118 = vrcp.pop %v3104
      %v3119 = vmul.f32 1.0, %v3118
      %v3120 = vrcp.pop %v3105
      %v3121 = vmul.f32 1.0, %v3120
      %v3122 = vtanh.pop %v3066
      %v3123 = vtanh.pop %v3067
      %v3124 = vtanh.pop %v3068
      %v3125 = vtanh.pop %v3069
      %v3126 = vtanh.pop %v3070
      %v3127 = vtanh.pop %v3071
      %v3128 = vtanh.pop %v3072
      %v3129 = vtanh.pop %v3073
      %v3138 = vrot.slane %v2762, 7
      %v3139 = vrot.slane %v2763, 7
      %v3140 = vrot.slane %v2764, 7
      %v3141 = vrot.slane %v2765, 7
      %v3142 = vrot.slane %v2766, 7
      %v3143 = vrot.slane %v2767, 7
      %v3144 = vrot.slane %v2768, 7
      %v3145 = vrot.slane %v2769, 7
      %v3154 = vmul.f32 %v3107, %v3138
      %v3155 = vmul.f32 %v3109, %v3139
      %v3156 = vmul.f32 %v3111, %v3140
      %v3157 = vmul.f32 %v3113, %v3141
      %v3158 = vmul.f32 %v3115, %v3142
      %v3159 = vmul.f32 %v3117, %v3143
      %v3160 = vmul.f32 %v3119, %v3144
      %v3161 = vmul.f32 %v3121, %v3145
      %3170 = vrot.lane.b32.xlu0 %v3122, 64
      %v3171 = vpop.permute.xlu0 %3170
      %3172 = vrot.lane.b32.xlu0 %v3123, 64
      %v3173 = vpop.permute.xlu0 %3172
      %3174 = vrot.lane.b32.xlu0 %v3124, 64
      %v3175 = vpop.permute.xlu0 %3174
      %3176 = vrot.lane.b32.xlu0 %v3125, 64
      %v3177 = vpop.permute.xlu0 %3176
      %3178 = vrot.lane.b32.xlu0 %v3126, 64
      %v3179 = vpop.permute.xlu0 %3178
      %3180 = vrot.lane.b32.xlu0 %v3127, 64
      %v3181 = vpop.permute.xlu0 %3180
      %3182 = vrot.lane.b32.xlu0 %v3128, 64
      %v3183 = vpop.permute.xlu0 %3182
      %3184 = vrot.lane.b32.xlu0 %v3129, 64
      %v3185 = vpop.permute.xlu0 %3184
      %v3194 = vmul.f32 %v3107, %v3171
      %v3195 = vmul.f32 %v3109, %v3173
      %v3196 = vmul.f32 %v3111, %v3175
      %v3197 = vmul.f32 %v3113, %v3177
      %v3198 = vmul.f32 %v3115, %v3179
      %v3199 = vmul.f32 %v3117, %v3181
      %v3200 = vmul.f32 %v3119, %v3183
      %v3201 = vmul.f32 %v3121, %v3185
      %3210 = vrot.lane.b32.xlu0 %v3194, 32
      %v3211 = vpop.permute.xlu0 %3210
      %3212 = vrot.lane.b32.xlu0 %v3195, 32
      %v3213 = vpop.permute.xlu0 %3212
      %3214 = vrot.lane.b32.xlu0 %v3196, 32
      %v3215 = vpop.permute.xlu0 %3214
      %3216 = vrot.lane.b32.xlu0 %v3197, 32
      %v3217 = vpop.permute.xlu0 %3216
      %3218 = vrot.lane.b32.xlu0 %v3198, 32
      %v3219 = vpop.permute.xlu0 %3218
      %3220 = vrot.lane.b32.xlu0 %v3199, 32
      %v3221 = vpop.permute.xlu0 %3220
      %3222 = vrot.lane.b32.xlu0 %v3200, 32
      %v3223 = vpop.permute.xlu0 %3222
      %3224 = vrot.lane.b32.xlu0 %v3201, 32
      %v3225 = vpop.permute.xlu0 %3224
      %v3234 = vadd.f32 %v3154, %v3211
      %v3235 = vadd.f32 %v3155, %v3213
      %v3236 = vadd.f32 %v3156, %v3215
      %v3237 = vadd.f32 %v3157, %v3217
      %v3238 = vadd.f32 %v3158, %v3219
      %v3239 = vadd.f32 %v3159, %v3221
      %v3240 = vadd.f32 %v3160, %v3223
      %v3241 = vadd.f32 %v3161, %v3225
      %v3242 = vtanh.pop %v3234
      %v3243 = vtanh.pop %v3235
      %v3244 = vtanh.pop %v3236
      %v3245 = vtanh.pop %v3237
      %v3246 = vtanh.pop %v3238
      %v3247 = vtanh.pop %v3239
      %v3248 = vtanh.pop %v3240
      %v3249 = vtanh.pop %v3241
      %3258 = vrot.lane.b32.xlu0 %v3242, 64
      %v3259 = vpop.permute.xlu0 %3258
      %3260 = vrot.lane.b32.xlu0 %v3243, 64
      %v3261 = vpop.permute.xlu0 %3260
      %3262 = vrot.lane.b32.xlu0 %v3244, 64
      %v3263 = vpop.permute.xlu0 %3262
      %3264 = vrot.lane.b32.xlu0 %v3245, 64
      %v3265 = vpop.permute.xlu0 %3264
      %3266 = vrot.lane.b32.xlu0 %v3246, 64
      %v3267 = vpop.permute.xlu0 %3266
      %3268 = vrot.lane.b32.xlu0 %v3247, 64
      %v3269 = vpop.permute.xlu0 %3268
      %3270 = vrot.lane.b32.xlu0 %v3248, 64
      %v3271 = vpop.permute.xlu0 %3270
      %3272 = vrot.lane.b32.xlu0 %v3249, 64
      %v3273 = vpop.permute.xlu0 %3272
      %v3282 = vmul.f32 %v3107, %v3259
      %v3283 = vmul.f32 %v3109, %v3261
      %v3284 = vmul.f32 %v3111, %v3263
      %v3285 = vmul.f32 %v3113, %v3265
      %v3286 = vmul.f32 %v3115, %v3267
      %v3287 = vmul.f32 %v3117, %v3269
      %v3288 = vmul.f32 %v3119, %v3271
      %v3289 = vmul.f32 %v3121, %v3273
      %v3298 = vrot.slane %v3283, 7
      %v3299 = vsel %vm957, %v3298, %v3282
      %v3300 = vrot.slane %v3284, 6
      %v3301 = vsel %vm960, %v3300, %v3299
      %v3302 = vrot.slane %v3285, 5
      %v3303 = vrot.slane %v3286, 4
      %v3304 = vsel %vm942, %v3303, %v3302
      %v3305 = vrot.slane %v3287, 3
      %v3306 = vsel %vm945, %v3305, %v3304
      %v3307 = vrot.slane %v3288, 2
      %v3308 = vsel %vm948, %v3307, %v3306
      %v3309 = vrot.slane %v3289, 1
      %v3310 = vsel %vm951, %v3309, %v3308
      %3311 = vrot.lane.b32.xlu0 %v3301, 32
      %v3312 = vpop.permute.xlu0 %3311
      %3313 = vrot.lane.b32.xlu0 %v3310, 32
      %v3314 = vpop.permute.xlu0 %3313
      %v3318 = vrot.slane %v2952, 3
      %3319 = vrot.lane.b32.xlu0 %v3318, 64
      %v3320 = vpop.permute.xlu0 %3319
      %v3322 = vsel %vm643, %v3312, %v3320
      %v3323 = vsel %vm643, %v3314, %v3320
      %vm3326 = vcmask 1042432
      %v3327 = vrot.slane %v3322, 5
      %v3328 = vrot.slane %v3323, 5
      %v3329 = vsel %vm3326, %v3327, %v3328
      %v3330 = vsel %vm966, %v3329, 0
      %3332 = vmatprep.subr.mxu0 0.0
      %3333 = vmatpush1.msra.mxu0 %v626
      %3334 = vmatprep.subr.mxu0 0.0
      %3335 = vmatpush1.msra.mxu0 %v627
      %3336 = vmatprep.subr.mxu0 0.0
      %3337 = vmatpush1.msra.mxu0 %v628
      %3338 = vmatprep.subr.mxu0 0.0
      %3339 = vmatpush1.msra.mxu0 %v629
      %3340 = vmatprep.subr.mxu0 0.0
      %3341 = vmatpush1.msra.mxu0 %v630
      %3342 = vmatprep.subr.mxu0 0.0
      %3343 = vmatpush1.msra.mxu0 %v631
      %3344 = vmatprep.subr.mxu0 0.0
      %3345 = vmatpush1.msra.mxu0 %v632
      %3346 = vmatprep.subr.mxu0 0.0
      %3347 = vmatpush1.msra.mxu0 %v633
      %3348 = vmatprep.subr.mxu0 0.0
      %3349 = vmatpush1.msra.mxu0 0.0
      %3350 = vmatprep.subr.mxu0 0.0
      %3351 = vmatpush1.msra.mxu0 0.0
      %3352 = vmatprep.subr.mxu0 0.0
      %3353 = vmatpush1.msra.mxu0 0.0
      %3354 = vmatprep.subr.mxu0 0.0
      %3355 = vmatpush1.msra.mxu0 0.0
      %3356 = vmatprep.subr.mxu0 0.0
      %3357 = vmatpush1.msra.mxu0 0.0
      %3358 = vmatprep.subr.mxu0 0.0
      %3359 = vmatpush1.msra.mxu0 0.0
      %3360 = vmatprep.subr.mxu0 0.0
      %3361 = vmatpush1.msra.mxu0 0.0
      %3362 = vmatprep.subr.mxu0 0.0
      %3363 = vmatpush1.msra.mxu0 0.0
      %3364 = vmatprep.subr.mxu0 0.0
      %3365 = vmatpush1.msra.mxu0 0.0
      %3366 = vmatprep.subr.mxu0 0.0
      %3367 = vmatpush1.msra.mxu0 0.0
      %3368 = vmatprep.subr.mxu0 0.0
      %3369 = vmatpush1.msra.mxu0 0.0
      %3370 = vmatprep.subr.mxu0 0.0
      %3371 = vmatpush1.msra.mxu0 0.0
      %3372 = vmatprep.subr.mxu0 0.0
      %3373 = vmatpush1.msra.mxu0 0.0
      %3374 = vmatprep.subr.mxu0 0.0
      %3375 = vmatpush1.msra.mxu0 0.0
      %3376 = vmatprep.subr.mxu0 0.0
      %3377 = vmatpush1.msra.mxu0 0.0
      %3378 = vmatprep.subr.mxu0 0.0
      %3379 = vmatpush1.msra.mxu0 0.0
      %3380 = vmatprep.subr.mxu0 0.0
      %3381 = vmatpush1.msra.mxu0 0.0
      %3382 = vmatprep.subr.mxu0 0.0
      %3383 = vmatpush1.msra.mxu0 0.0
      %3384 = vmatprep.subr.mxu0 0.0
      %3385 = vmatpush1.msra.mxu0 0.0
      %3386 = vmatprep.subr.mxu0 0.0
      %3387 = vmatpush1.msra.mxu0 0.0
      %3388 = vmatprep.subr.mxu0 0.0
      %3389 = vmatpush1.msra.mxu0 0.0
      %3390 = vmatprep.subr.mxu0 0.0
      %3391 = vmatpush1.msra.mxu0 0.0
      %3392 = vmatprep.subr.mxu0 0.0
      %3393 = vmatpush1.msra.mxu0 0.0
      %3394 = vmatprep.subr.mxu0 0.0
      %3395 = vmatpush1.msra.mxu0 0.0
      %3396 = vmatprep.mubr.f32.mxu0 0.0
      %3397 = vmatmul.mubr.f32.gmra.mrb[0].mxu0 %v3330
      %v3398 = vpop.f32.mrb[0].mxu0
      %v3399 = vadd.f32 %v639, %v3398
      %v3400 = vpop.f32.mrb[0].mxu0
      %3401 = vdwg.mxu0
      %v3402 = vxor.u32 %v3399, 2147483648
      %v3403 = vmul.f32 %v3402, 1.442695
      %v3404 = vpow.pop %v3403
      %v3405 = vadd.f32 %v3404, 1.0
      %v3406 = vrcp.pop %v3405
      %v3407 = vmul.f32 1.0, %v3406
      %v3408 = vtanh.pop %v3399
      %v3409 = vmul.f32 %v3407, %v2946
      %3411 = vrot.lane.b32.xlu0 %v3408, 64
      %v3412 = vpop.permute.xlu0 %3411
      %v3414 = vmul.f32 %v3407, %v3412
      %3416 = vrot.lane.b32.xlu0 %v3414, 32
      %v3417 = vpop.permute.xlu0 %3416
      %v3419 = vadd.f32 %v3409, %v3417
      %v3420 = vtanh.pop %v3419
      %3422 = vrot.lane.b32.xlu0 %v3420, 64
      %v3423 = vpop.permute.xlu0 %3422
      %v3425 = vmul.f32 %v3407, %v3423
      %v3426 = vmul.f32 %v3425, %v1070
      %3428 = vrot.lane.b32.xlu0 %v3426, 32
      %v3429 = vpop.permute.xlu0 %3428
      %v3431 = vsel %vm643, %v3429, 0.0
      %3432 = vadd.xlane.f32.xlu0 %v3431
      %v3433 = vpop.xlane.xlu0 %3432
      %v3434 = vadd.f32 %v3433, %v1084
      %v3435 = vrot.slane %v3282, 5
      %v3436 = vrot.slane %v3283, 4
      %v3437 = vsel %vm942, %v3436, %v3435
      %v3438 = vrot.slane %v3284, 3
      %v3439 = vsel %vm945, %v3438, %v3437
      %v3440 = vrot.slane %v3285, 2
      %v3441 = vsel %vm948, %v3440, %v3439
      %v3442 = vrot.slane %v3286, 1
      %v3443 = vsel %vm951, %v3442, %v3441
      %v3444 = vsel %vm954, %v3287, %v3443
      %v3445 = vrot.slane %v3288, 7
      %v3446 = vsel %vm957, %v3445, %v3444
      %v3447 = vrot.slane %v3289, 6
      %v3448 = vsel %vm960, %v3447, %v3446
      %3449 = vrot.lane.b32.xlu0 %v3448, 32
      %v3450 = vpop.permute.xlu0 %3449
      %v3451 = vsel %vm643, %v3450, 0
      %3453 = vmatprep.subr.mxu0 0.0
      %3454 = vmatpush1.msra.mxu0 %v622
      %3455 = vmatprep.subr.mxu0 0.0
      %3456 = vmatpush1.msra.mxu0 %v623
      %3457 = vmatprep.subr.mxu0 0.0
      %3458 = vmatpush1.msra.mxu0 %v624
      %3459 = vmatprep.subr.mxu0 0.0
      %3460 = vmatpush1.msra.mxu0 %v625
      %3461 = vmatprep.subr.mxu0 0.0
      %3462 = vmatpush1.msra.mxu0 0.0
      %3463 = vmatprep.subr.mxu0 0.0
      %3464 = vmatpush1.msra.mxu0 0.0
      %3465 = vmatprep.subr.mxu0 0.0
      %3466 = vmatpush1.msra.mxu0 0.0
      %3467 = vmatprep.subr.mxu0 0.0
      %3468 = vmatpush1.msra.mxu0 0.0
      %3469 = vmatprep.subr.mxu0 0.0
      %3470 = vmatpush1.msra.mxu0 0.0
      %3471 = vmatprep.subr.mxu0 0.0
      %3472 = vmatpush1.msra.mxu0 0.0
      %3473 = vmatprep.subr.mxu0 0.0
      %3474 = vmatpush1.msra.mxu0 0.0
      %3475 = vmatprep.subr.mxu0 0.0
      %3476 = vmatpush1.msra.mxu0 0.0
      %3477 = vmatprep.subr.mxu0 0.0
      %3478 = vmatpush1.msra.mxu0 0.0
      %3479 = vmatprep.subr.mxu0 0.0
      %3480 = vmatpush1.msra.mxu0 0.0
      %3481 = vmatprep.subr.mxu0 0.0
      %3482 = vmatpush1.msra.mxu0 0.0
      %3483 = vmatprep.subr.mxu0 0.0
      %3484 = vmatpush1.msra.mxu0 0.0
      %3485 = vmatprep.subr.mxu0 0.0
      %3486 = vmatpush1.msra.mxu0 0.0
      %3487 = vmatprep.subr.mxu0 0.0
      %3488 = vmatpush1.msra.mxu0 0.0
      %3489 = vmatprep.subr.mxu0 0.0
      %3490 = vmatpush1.msra.mxu0 0.0
      %3491 = vmatprep.subr.mxu0 0.0
      %3492 = vmatpush1.msra.mxu0 0.0
      %3493 = vmatprep.subr.mxu0 0.0
      %3494 = vmatpush1.msra.mxu0 0.0
      %3495 = vmatprep.subr.mxu0 0.0
      %3496 = vmatpush1.msra.mxu0 0.0
      %3497 = vmatprep.subr.mxu0 0.0
      %3498 = vmatpush1.msra.mxu0 0.0
      %3499 = vmatprep.subr.mxu0 0.0
      %3500 = vmatpush1.msra.mxu0 0.0
      %3501 = vmatprep.subr.mxu0 0.0
      %3502 = vmatpush1.msra.mxu0 0.0
      %3503 = vmatprep.subr.mxu0 0.0
      %3504 = vmatpush1.msra.mxu0 0.0
      %3505 = vmatprep.subr.mxu0 0.0
      %3506 = vmatpush1.msra.mxu0 0.0
      %3507 = vmatprep.subr.mxu0 0.0
      %3508 = vmatpush1.msra.mxu0 0.0
      %3509 = vmatprep.subr.mxu0 0.0
      %3510 = vmatpush1.msra.mxu0 0.0
      %3511 = vmatprep.subr.mxu0 0.0
      %3512 = vmatpush1.msra.mxu0 0.0
      %3513 = vmatprep.subr.mxu0 0.0
      %3514 = vmatpush1.msra.mxu0 0.0
      %3515 = vmatprep.subr.mxu0 0.0
      %3516 = vmatpush1.msra.mxu0 0.0
      %3517 = vmatprep.mubr.f32.mxu0 0.0
      %3518 = vmatmul.mubr.f32.gmra.mrb[0].mxu0 %v3451
      %v3519 = vpop.f32.mrb[0].mxu0
      %v3520 = vadd.f32 0.0, %v3519
      %v3521 = vpop.f32.mrb[0].mxu0
      %3522 = vdwg.mxu0
      %v3524 = vrot.slane %v3520, 2
      %v3525 = vrot.slane %v3520, 3
      %v3526 = vrot.slane %v3520, 4
      %v3527 = vrot.slane %v3520, 5
      %v3528 = vrot.slane %v3520, 6
      %v3529 = vrot.slane %v3520, 7
      %v3530 = vrot.slane %v3520, 1
      %v3539 = vadd.f32 %v584, %v3524
      %v3540 = vadd.f32 %v589, %v3525
      %v3541 = vadd.f32 %v594, %v3526
      %v3542 = vadd.f32 %v599, %v3527
      %v3543 = vadd.f32 %v604, %v3528
      %v3544 = vadd.f32 %v609, %v3529
      %v3545 = vadd.f32 %v614, %v3520
      %v3546 = vadd.f32 %v619, %v3530
      %v3547 = vxor.u32 %v3539, 2147483648
      %v3548 = vxor.u32 %v3540, 2147483648
      %v3549 = vxor.u32 %v3541, 2147483648
      %v3550 = vxor.u32 %v3542, 2147483648
      %v3551 = vxor.u32 %v3543, 2147483648
      %v3552 = vxor.u32 %v3544, 2147483648
      %v3553 = vxor.u32 %v3545, 2147483648
      %v3554 = vxor.u32 %v3546, 2147483648
      %v3555 = vmul.f32 %v3547, 1.442695
      %v3556 = vpow.pop %v3555
      %v3557 = vmul.f32 %v3548, 1.442695
      %v3558 = vpow.pop %v3557
      %v3559 = vmul.f32 %v3549, 1.442695
      %v3560 = vpow.pop %v3559
      %v3561 = vmul.f32 %v3550, 1.442695
      %v3562 = vpow.pop %v3561
      %v3563 = vmul.f32 %v3551, 1.442695
      %v3564 = vpow.pop %v3563
      %v3565 = vmul.f32 %v3552, 1.442695
      %v3566 = vpow.pop %v3565
      %v3567 = vmul.f32 %v3553, 1.442695
      %v3568 = vpow.pop %v3567
      %v3569 = vmul.f32 %v3554, 1.442695
      %v3570 = vpow.pop %v3569
      %v3571 = vadd.f32 %v3556, 1.0
      %v3572 = vadd.f32 %v3558, 1.0
      %v3573 = vadd.f32 %v3560, 1.0
      %v3574 = vadd.f32 %v3562, 1.0
      %v3575 = vadd.f32 %v3564, 1.0
      %v3576 = vadd.f32 %v3566, 1.0
      %v3577 = vadd.f32 %v3568, 1.0
      %v3578 = vadd.f32 %v3570, 1.0
      %v3579 = vrcp.pop %v3571
      %v3580 = vmul.f32 1.0, %v3579
      %v3581 = vrcp.pop %v3572
      %v3582 = vmul.f32 1.0, %v3581
      %v3583 = vrcp.pop %v3573
      %v3584 = vmul.f32 1.0, %v3583
      %v3585 = vrcp.pop %v3574
      %v3586 = vmul.f32 1.0, %v3585
      %v3587 = vrcp.pop %v3575
      %v3588 = vmul.f32 1.0, %v3587
      %v3589 = vrcp.pop %v3576
      %v3590 = vmul.f32 1.0, %v3589
      %v3591 = vrcp.pop %v3577
      %v3592 = vmul.f32 1.0, %v3591
      %v3593 = vrcp.pop %v3578
      %v3594 = vmul.f32 1.0, %v3593
      %v3595 = vtanh.pop %v3539
      %v3596 = vtanh.pop %v3540
      %v3597 = vtanh.pop %v3541
      %v3598 = vtanh.pop %v3542
      %v3599 = vtanh.pop %v3543
      %v3600 = vtanh.pop %v3544
      %v3601 = vtanh.pop %v3545
      %v3602 = vtanh.pop %v3546
      %v3611 = vrot.slane %v3234, 7
      %v3612 = vrot.slane %v3235, 7
      %v3613 = vrot.slane %v3236, 7
      %v3614 = vrot.slane %v3237, 7
      %v3615 = vrot.slane %v3238, 7
      %v3616 = vrot.slane %v3239, 7
      %v3617 = vrot.slane %v3240, 7
      %v3618 = vrot.slane %v3241, 7
      %v3627 = vmul.f32 %v3580, %v3611
      %v3628 = vmul.f32 %v3582, %v3612
      %v3629 = vmul.f32 %v3584, %v3613
      %v3630 = vmul.f32 %v3586, %v3614
      %v3631 = vmul.f32 %v3588, %v3615
      %v3632 = vmul.f32 %v3590, %v3616
      %v3633 = vmul.f32 %v3592, %v3617
      %v3634 = vmul.f32 %v3594, %v3618
      %3643 = vrot.lane.b32.xlu0 %v3595, 64
      %v3644 = vpop.permute.xlu0 %3643
      %3645 = vrot.lane.b32.xlu0 %v3596, 64
      %v3646 = vpop.permute.xlu0 %3645
      %3647 = vrot.lane.b32.xlu0 %v3597, 64
      %v3648 = vpop.permute.xlu0 %3647
      %3649 = vrot.lane.b32.xlu0 %v3598, 64
      %v3650 = vpop.permute.xlu0 %3649
      %3651 = vrot.lane.b32.xlu0 %v3599, 64
      %v3652 = vpop.permute.xlu0 %3651
      %3653 = vrot.lane.b32.xlu0 %v3600, 64
      %v3654 = vpop.permute.xlu0 %3653
      %3655 = vrot.lane.b32.xlu0 %v3601, 64
      %v3656 = vpop.permute.xlu0 %3655
      %3657 = vrot.lane.b32.xlu0 %v3602, 64
      %v3658 = vpop.permute.xlu0 %3657
      %v3667 = vmul.f32 %v3580, %v3644
      %v3668 = vmul.f32 %v3582, %v3646
      %v3669 = vmul.f32 %v3584, %v3648
      %v3670 = vmul.f32 %v3586, %v3650
      %v3671 = vmul.f32 %v3588, %v3652
      %v3672 = vmul.f32 %v3590, %v3654
      %v3673 = vmul.f32 %v3592, %v3656
      %v3674 = vmul.f32 %v3594, %v3658
      %3683 = vrot.lane.b32.xlu0 %v3667, 32
      %v3684 = vpop.permute.xlu0 %3683
      %3685 = vrot.lane.b32.xlu0 %v3668, 32
      %v3686 = vpop.permute.xlu0 %3685
      %3687 = vrot.lane.b32.xlu0 %v3669, 32
      %v3688 = vpop.permute.xlu0 %3687
      %3689 = vrot.lane.b32.xlu0 %v3670, 32
      %v3690 = vpop.permute.xlu0 %3689
      %3691 = vrot.lane.b32.xlu0 %v3671, 32
      %v3692 = vpop.permute.xlu0 %3691
      %3693 = vrot.lane.b32.xlu0 %v3672, 32
      %v3694 = vpop.permute.xlu0 %3693
      %3695 = vrot.lane.b32.xlu0 %v3673, 32
      %v3696 = vpop.permute.xlu0 %3695
      %3697 = vrot.lane.b32.xlu0 %v3674, 32
      %v3698 = vpop.permute.xlu0 %3697
      %v3707 = vadd.f32 %v3627, %v3684
      %v3708 = vadd.f32 %v3628, %v3686
      %v3709 = vadd.f32 %v3629, %v3688
      %v3710 = vadd.f32 %v3630, %v3690
      %v3711 = vadd.f32 %v3631, %v3692
      %v3712 = vadd.f32 %v3632, %v3694
      %v3713 = vadd.f32 %v3633, %v3696
      %v3714 = vadd.f32 %v3634, %v3698
      %v3715 = vtanh.pop %v3707
      %v3716 = vtanh.pop %v3708
      %v3717 = vtanh.pop %v3709
      %v3718 = vtanh.pop %v3710
      %v3719 = vtanh.pop %v3711
      %v3720 = vtanh.pop %v3712
      %v3721 = vtanh.pop %v3713
      %v3722 = vtanh.pop %v3714
      %3731 = vrot.lane.b32.xlu0 %v3715, 64
      %v3732 = vpop.permute.xlu0 %3731
      %3733 = vrot.lane.b32.xlu0 %v3716, 64
      %v3734 = vpop.permute.xlu0 %3733
      %3735 = vrot.lane.b32.xlu0 %v3717, 64
      %v3736 = vpop.permute.xlu0 %3735
      %3737 = vrot.lane.b32.xlu0 %v3718, 64
      %v3738 = vpop.permute.xlu0 %3737
      %3739 = vrot.lane.b32.xlu0 %v3719, 64
      %v3740 = vpop.permute.xlu0 %3739
      %3741 = vrot.lane.b32.xlu0 %v3720, 64
      %v3742 = vpop.permute.xlu0 %3741
      %3743 = vrot.lane.b32.xlu0 %v3721, 64
      %v3744 = vpop.permute.xlu0 %3743
      %3745 = vrot.lane.b32.xlu0 %v3722, 64
      %v3746 = vpop.permute.xlu0 %3745
      %v3755 = vmul.f32 %v3580, %v3732
      %v3756 = vmul.f32 %v3582, %v3734
      %v3757 = vmul.f32 %v3584, %v3736
      %v3758 = vmul.f32 %v3586, %v3738
      %v3759 = vmul.f32 %v3588, %v3740
      %v3760 = vmul.f32 %v3590, %v3742
      %v3761 = vmul.f32 %v3592, %v3744
      %v3762 = vmul.f32 %v3594, %v3746
      %v3771 = vrot.slane %v3756, 7
      %v3772 = vsel %vm960, %v3771, %v3755
      %v3773 = vrot.slane %v3757, 6
      %v3774 = vrot.slane %v3758, 5
      %v3775 = vsel %vm942, %v3774, %v3773
      %v3776 = vrot.slane %v3759, 4
      %v3777 = vsel %vm945, %v3776, %v3775
      %v3778 = vrot.slane %v3760, 3
      %v3779 = vsel %vm948, %v3778, %v3777
      %v3780 = vrot.slane %v3761, 2
      %v3781 = vsel %vm951, %v3780, %v3779
      %v3782 = vrot.slane %v3762, 1
      %v3783 = vsel %vm954, %v3782, %v3781
      %3784 = vrot.lane.b32.xlu0 %v3772, 32
      %v3785 = vpop.permute.xlu0 %3784
      %3786 = vrot.lane.b32.xlu0 %v3783, 32
      %v3787 = vpop.permute.xlu0 %3786
      %v3791 = vrot.slane %v3425, 2
      %3792 = vrot.lane.b32.xlu0 %v3791, 64
      %v3793 = vpop.permute.xlu0 %3792
      %v3795 = vsel %vm643, %v3785, %v3793
      %v3796 = vsel %vm643, %v3787, %v3793
      %vm3799 = vcmask 1041408
      %v3800 = vrot.slane %v3795, 6
      %v3801 = vrot.slane %v3796, 6
      %v3802 = vsel %vm3799, %v3800, %v3801
      %v3803 = vsel %vm966, %v3802, 0
      %3805 = vmatprep.subr.mxu0 0.0
      %3806 = vmatpush1.msra.mxu0 %v626
      %3807 = vmatprep.subr.mxu0 0.0
      %3808 = vmatpush1.msra.mxu0 %v627
      %3809 = vmatprep.subr.mxu0 0.0
      %3810 = vmatpush1.msra.mxu0 %v628
      %3811 = vmatprep.subr.mxu0 0.0
      %3812 = vmatpush1.msra.mxu0 %v629
      %3813 = vmatprep.subr.mxu0 0.0
      %3814 = vmatpush1.msra.mxu0 %v630
      %3815 = vmatprep.subr.mxu0 0.0
      %3816 = vmatpush1.msra.mxu0 %v631
      %3817 = vmatprep.subr.mxu0 0.0
      %3818 = vmatpush1.msra.mxu0 %v632
      %3819 = vmatprep.subr.mxu0 0.0
      %3820 = vmatpush1.msra.mxu0 %v633
      %3821 = vmatprep.subr.mxu0 0.0
      %3822 = vmatpush1.msra.mxu0 0.0
      %3823 = vmatprep.subr.mxu0 0.0
      %3824 = vmatpush1.msra.mxu0 0.0
      %3825 = vmatprep.subr.mxu0 0.0
      %3826 = vmatpush1.msra.mxu0 0.0
      %3827 = vmatprep.subr.mxu0 0.0
      %3828 = vmatpush1.msra.mxu0 0.0
      %3829 = vmatprep.subr.mxu0 0.0
      %3830 = vmatpush1.msra.mxu0 0.0
      %3831 = vmatprep.subr.mxu0 0.0
      %3832 = vmatpush1.msra.mxu0 0.0
      %3833 = vmatprep.subr.mxu0 0.0
      %3834 = vmatpush1.msra.mxu0 0.0
      %3835 = vmatprep.subr.mxu0 0.0
      %3836 = vmatpush1.msra.mxu0 0.0
      %3837 = vmatprep.subr.mxu0 0.0
      %3838 = vmatpush1.msra.mxu0 0.0
      %3839 = vmatprep.subr.mxu0 0.0
      %3840 = vmatpush1.msra.mxu0 0.0
      %3841 = vmatprep.subr.mxu0 0.0
      %3842 = vmatpush1.msra.mxu0 0.0
      %3843 = vmatprep.subr.mxu0 0.0
      %3844 = vmatpush1.msra.mxu0 0.0
      %3845 = vmatprep.subr.mxu0 0.0
      %3846 = vmatpush1.msra.mxu0 0.0
      %3847 = vmatprep.subr.mxu0 0.0
      %3848 = vmatpush1.msra.mxu0 0.0
      %3849 = vmatprep.subr.mxu0 0.0
      %3850 = vmatpush1.msra.mxu0 0.0
      %3851 = vmatprep.subr.mxu0 0.0
      %3852 = vmatpush1.msra.mxu0 0.0
      %3853 = vmatprep.subr.mxu0 0.0
      %3854 = vmatpush1.msra.mxu0 0.0
      %3855 = vmatprep.subr.mxu0 0.0
      %3856 = vmatpush1.msra.mxu0 0.0
      %3857 = vmatprep.subr.mxu0 0.0
      %3858 = vmatpush1.msra.mxu0 0.0
      %3859 = vmatprep.subr.mxu0 0.0
      %3860 = vmatpush1.msra.mxu0 0.0
      %3861 = vmatprep.subr.mxu0 0.0
      %3862 = vmatpush1.msra.mxu0 0.0
      %3863 = vmatprep.subr.mxu0 0.0
      %3864 = vmatpush1.msra.mxu0 0.0
      %3865 = vmatprep.subr.mxu0 0.0
      %3866 = vmatpush1.msra.mxu0 0.0
      %3867 = vmatprep.subr.mxu0 0.0
      %3868 = vmatpush1.msra.mxu0 0.0
      %3869 = vmatprep.mubr.f32.mxu0 0.0
      %3870 = vmatmul.mubr.f32.gmra.mrb[0].mxu0 %v3803
      %v3871 = vpop.f32.mrb[0].mxu0
      %v3872 = vadd.f32 %v639, %v3871
      %v3873 = vpop.f32.mrb[0].mxu0
      %3874 = vdwg.mxu0
      %v3875 = vxor.u32 %v3872, 2147483648
      %v3876 = vmul.f32 %v3875, 1.442695
      %v3877 = vpow.pop %v3876
      %v3878 = vadd.f32 %v3877, 1.0
      %v3879 = vrcp.pop %v3878
      %v3880 = vmul.f32 1.0, %v3879
      %v3881 = vtanh.pop %v3872
      %v3882 = vmul.f32 %v3880, %v3419
      %3884 = vrot.lane.b32.xlu0 %v3881, 64
      %v3885 = vpop.permute.xlu0 %3884
      %v3887 = vmul.f32 %v3880, %v3885
      %3889 = vrot.lane.b32.xlu0 %v3887, 32
      %v3890 = vpop.permute.xlu0 %3889
      %v3892 = vadd.f32 %v3882, %v3890
      %v3893 = vtanh.pop %v3892
      %3895 = vrot.lane.b32.xlu0 %v3893, 64
      %v3896 = vpop.permute.xlu0 %3895
      %v3898 = vmul.f32 %v3880, %v3896
      %v3899 = vmul.f32 %v3898, %v1070
      %3901 = vrot.lane.b32.xlu0 %v3899, 32
      %v3902 = vpop.permute.xlu0 %3901
      %v3904 = vsel %vm643, %v3902, 0.0
      %3905 = vadd.xlane.f32.xlu0 %v3904
      %v3906 = vpop.xlane.xlu0 %3905
      %v3907 = vadd.f32 %v3906, %v1084
      %v3908 = vrot.slane %v3755, 6
      %v3909 = vrot.slane %v3756, 5
      %v3910 = vsel %vm942, %v3909, %v3908
      %v3911 = vrot.slane %v3757, 4
      %v3912 = vsel %vm945, %v3911, %v3910
      %v3913 = vrot.slane %v3758, 3
      %v3914 = vsel %vm948, %v3913, %v3912
      %v3915 = vrot.slane %v3759, 2
      %v3916 = vsel %vm951, %v3915, %v3914
      %v3917 = vrot.slane %v3760, 1
      %v3918 = vsel %vm954, %v3917, %v3916
      %v3919 = vsel %vm957, %v3761, %v3918
      %v3920 = vrot.slane %v3762, 7
      %v3921 = vsel %vm960, %v3920, %v3919
      %3922 = vrot.lane.b32.xlu0 %v3921, 32
      %v3923 = vpop.permute.xlu0 %3922
      %v3924 = vsel %vm643, %v3923, 0
      %3926 = vmatprep.subr.mxu0 0.0
      %3927 = vmatpush1.msra.mxu0 %v622
      %3928 = vmatprep.subr.mxu0 0.0
      %3929 = vmatpush1.msra.mxu0 %v623
      %3930 = vmatprep.subr.mxu0 0.0
      %3931 = vmatpush1.msra.mxu0 %v624
      %3932 = vmatprep.subr.mxu0 0.0
      %3933 = vmatpush1.msra.mxu0 %v625
      %3934 = vmatprep.subr.mxu0 0.0
      %3935 = vmatpush1.msra.mxu0 0.0
      %3936 = vmatprep.subr.mxu0 0.0
      %3937 = vmatpush1.msra.mxu0 0.0
      %3938 = vmatprep.subr.mxu0 0.0
      %3939 = vmatpush1.msra.mxu0 0.0
      %3940 = vmatprep.subr.mxu0 0.0
      %3941 = vmatpush1.msra.mxu0 0.0
      %3942 = vmatprep.subr.mxu0 0.0
      %3943 = vmatpush1.msra.mxu0 0.0
      %3944 = vmatprep.subr.mxu0 0.0
      %3945 = vmatpush1.msra.mxu0 0.0
      %3946 = vmatprep.subr.mxu0 0.0
      %3947 = vmatpush1.msra.mxu0 0.0
      %3948 = vmatprep.subr.mxu0 0.0
      %3949 = vmatpush1.msra.mxu0 0.0
      %3950 = vmatprep.subr.mxu0 0.0
      %3951 = vmatpush1.msra.mxu0 0.0
      %3952 = vmatprep.subr.mxu0 0.0
      %3953 = vmatpush1.msra.mxu0 0.0
      %3954 = vmatprep.subr.mxu0 0.0
      %3955 = vmatpush1.msra.mxu0 0.0
      %3956 = vmatprep.subr.mxu0 0.0
      %3957 = vmatpush1.msra.mxu0 0.0
      %3958 = vmatprep.subr.mxu0 0.0
      %3959 = vmatpush1.msra.mxu0 0.0
      %3960 = vmatprep.subr.mxu0 0.0
      %3961 = vmatpush1.msra.mxu0 0.0
      %3962 = vmatprep.subr.mxu0 0.0
      %3963 = vmatpush1.msra.mxu0 0.0
      %3964 = vmatprep.subr.mxu0 0.0
      %3965 = vmatpush1.msra.mxu0 0.0
      %3966 = vmatprep.subr.mxu0 0.0
      %3967 = vmatpush1.msra.mxu0 0.0
      %3968 = vmatprep.subr.mxu0 0.0
      %3969 = vmatpush1.msra.mxu0 0.0
      %3970 = vmatprep.subr.mxu0 0.0
      %3971 = vmatpush1.msra.mxu0 0.0
      %3972 = vmatprep.subr.mxu0 0.0
      %3973 = vmatpush1.msra.mxu0 0.0
      %3974 = vmatprep.subr.mxu0 0.0
      %3975 = vmatpush1.msra.mxu0 0.0
      %3976 = vmatprep.subr.mxu0 0.0
      %3977 = vmatpush1.msra.mxu0 0.0
      %3978 = vmatprep.subr.mxu0 0.0
      %3979 = vmatpush1.msra.mxu0 0.0
      %3980 = vmatprep.subr.mxu0 0.0
      %3981 = vmatpush1.msra.mxu0 0.0
      %3982 = vmatprep.subr.mxu0 0.0
      %3983 = vmatpush1.msra.mxu0 0.0
      %3984 = vmatprep.subr.mxu0 0.0
      %3985 = vmatpush1.msra.mxu0 0.0
      %3986 = vmatprep.subr.mxu0 0.0
      %3987 = vmatpush1.msra.mxu0 0.0
      %3988 = vmatprep.subr.mxu0 0.0
      %3989 = vmatpush1.msra.mxu0 0.0
      %3990 = vmatprep.mubr.f32.mxu0 0.0
      %3991 = vmatmul.mubr.f32.gmra.mrb[0].mxu0 %v3924
      %v3992 = vpop.f32.mrb[0].mxu0
      %v3993 = vadd.f32 0.0, %v3992
      %v3994 = vpop.f32.mrb[0].mxu0
      %3995 = vdwg.mxu0
      %v3997 = vrot.slane %v3993, 1
      %v3998 = vrot.slane %v3993, 2
      %v3999 = vrot.slane %v3993, 3
      %v4000 = vrot.slane %v3993, 4
      %v4001 = vrot.slane %v3993, 5
      %v4002 = vrot.slane %v3993, 6
      %v4003 = vrot.slane %v3993, 7
      %v4012 = vadd.f32 %v584, %v3997
      %v4013 = vadd.f32 %v589, %v3998
      %v4014 = vadd.f32 %v594, %v3999
      %v4015 = vadd.f32 %v599, %v4000
      %v4016 = vadd.f32 %v604, %v4001
      %v4017 = vadd.f32 %v609, %v4002
      %v4018 = vadd.f32 %v614, %v4003
      %v4019 = vadd.f32 %v619, %v3993
      %v4020 = vxor.u32 %v4012, 2147483648
      %v4021 = vxor.u32 %v4013, 2147483648
      %v4022 = vxor.u32 %v4014, 2147483648
      %v4023 = vxor.u32 %v4015, 2147483648
      %v4024 = vxor.u32 %v4016, 2147483648
      %v4025 = vxor.u32 %v4017, 2147483648
      %v4026 = vxor.u32 %v4018, 2147483648
      %v4027 = vxor.u32 %v4019, 2147483648
      %v4028 = vmul.f32 %v4020, 1.442695
      %v4029 = vpow.pop %v4028
      %v4030 = vmul.f32 %v4021, 1.442695
      %v4031 = vpow.pop %v4030
      %v4032 = vmul.f32 %v4022, 1.442695
      %v4033 = vpow.pop %v4032
      %v4034 = vmul.f32 %v4023, 1.442695
      %v4035 = vpow.pop %v4034
      %v4036 = vmul.f32 %v4024, 1.442695
      %v4037 = vpow.pop %v4036
      %v4038 = vmul.f32 %v4025, 1.442695
      %v4039 = vpow.pop %v4038
      %v4040 = vmul.f32 %v4026, 1.442695
      %v4041 = vpow.pop %v4040
      %v4042 = vmul.f32 %v4027, 1.442695
      %v4043 = vpow.pop %v4042
      %v4044 = vadd.f32 %v4029, 1.0
      %v4045 = vadd.f32 %v4031, 1.0
      %v4046 = vadd.f32 %v4033, 1.0
      %v4047 = vadd.f32 %v4035, 1.0
      %v4048 = vadd.f32 %v4037, 1.0
      %v4049 = vadd.f32 %v4039, 1.0
      %v4050 = vadd.f32 %v4041, 1.0
      %v4051 = vadd.f32 %v4043, 1.0
      %v4052 = vrcp.pop %v4044
      %v4053 = vmul.f32 1.0, %v4052
      %v4054 = vrcp.pop %v4045
      %v4055 = vmul.f32 1.0, %v4054
      %v4056 = vrcp.pop %v4046
      %v4057 = vmul.f32 1.0, %v4056
      %v4058 = vrcp.pop %v4047
      %v4059 = vmul.f32 1.0, %v4058
      %v4060 = vrcp.pop %v4048
      %v4061 = vmul.f32 1.0, %v4060
      %v4062 = vrcp.pop %v4049
      %v4063 = vmul.f32 1.0, %v4062
      %v4064 = vrcp.pop %v4050
      %v4065 = vmul.f32 1.0, %v4064
      %v4066 = vrcp.pop %v4051
      %v4067 = vmul.f32 1.0, %v4066
      %v4068 = vtanh.pop %v4012
      %v4069 = vtanh.pop %v4013
      %v4070 = vtanh.pop %v4014
      %v4071 = vtanh.pop %v4015
      %v4072 = vtanh.pop %v4016
      %v4073 = vtanh.pop %v4017
      %v4074 = vtanh.pop %v4018
      %v4075 = vtanh.pop %v4019
      %v4084 = vrot.slane %v3707, 7
      %v4085 = vrot.slane %v3708, 7
      %v4086 = vrot.slane %v3709, 7
      %v4087 = vrot.slane %v3710, 7
      %v4088 = vrot.slane %v3711, 7
      %v4089 = vrot.slane %v3712, 7
      %v4090 = vrot.slane %v3713, 7
      %v4091 = vrot.slane %v3714, 7
      %v4100 = vmul.f32 %v4053, %v4084
      %v4101 = vmul.f32 %v4055, %v4085
      %v4102 = vmul.f32 %v4057, %v4086
      %v4103 = vmul.f32 %v4059, %v4087
      %v4104 = vmul.f32 %v4061, %v4088
      %v4105 = vmul.f32 %v4063, %v4089
      %v4106 = vmul.f32 %v4065, %v4090
      %v4107 = vmul.f32 %v4067, %v4091
      %4116 = vrot.lane.b32.xlu0 %v4068, 64
      %v4117 = vpop.permute.xlu0 %4116
      %4118 = vrot.lane.b32.xlu0 %v4069, 64
      %v4119 = vpop.permute.xlu0 %4118
      %4120 = vrot.lane.b32.xlu0 %v4070, 64
      %v4121 = vpop.permute.xlu0 %4120
      %4122 = vrot.lane.b32.xlu0 %v4071, 64
      %v4123 = vpop.permute.xlu0 %4122
      %4124 = vrot.lane.b32.xlu0 %v4072, 64
      %v4125 = vpop.permute.xlu0 %4124
      %4126 = vrot.lane.b32.xlu0 %v4073, 64
      %v4127 = vpop.permute.xlu0 %4126
      %4128 = vrot.lane.b32.xlu0 %v4074, 64
      %v4129 = vpop.permute.xlu0 %4128
      %4130 = vrot.lane.b32.xlu0 %v4075, 64
      %v4131 = vpop.permute.xlu0 %4130
      %v4140 = vmul.f32 %v4053, %v4117
      %v4141 = vmul.f32 %v4055, %v4119
      %v4142 = vmul.f32 %v4057, %v4121
      %v4143 = vmul.f32 %v4059, %v4123
      %v4144 = vmul.f32 %v4061, %v4125
      %v4145 = vmul.f32 %v4063, %v4127
      %v4146 = vmul.f32 %v4065, %v4129
      %v4147 = vmul.f32 %v4067, %v4131
      %4156 = vrot.lane.b32.xlu0 %v4140, 32
      %v4157 = vpop.permute.xlu0 %4156
      %4158 = vrot.lane.b32.xlu0 %v4141, 32
      %v4159 = vpop.permute.xlu0 %4158
      %4160 = vrot.lane.b32.xlu0 %v4142, 32
      %v4161 = vpop.permute.xlu0 %4160
      %4162 = vrot.lane.b32.xlu0 %v4143, 32
      %v4163 = vpop.permute.xlu0 %4162
      %4164 = vrot.lane.b32.xlu0 %v4144, 32
      %v4165 = vpop.permute.xlu0 %4164
      %4166 = vrot.lane.b32.xlu0 %v4145, 32
      %v4167 = vpop.permute.xlu0 %4166
      %4168 = vrot.lane.b32.xlu0 %v4146, 32
      %v4169 = vpop.permute.xlu0 %4168
      %4170 = vrot.lane.b32.xlu0 %v4147, 32
      %v4171 = vpop.permute.xlu0 %4170
      %v4180 = vadd.f32 %v4100, %v4157
      %v4181 = vadd.f32 %v4101, %v4159
      %v4182 = vadd.f32 %v4102, %v4161
      %v4183 = vadd.f32 %v4103, %v4163
      %v4184 = vadd.f32 %v4104, %v4165
      %v4185 = vadd.f32 %v4105, %v4167
      %v4186 = vadd.f32 %v4106, %v4169
      %v4187 = vadd.f32 %v4107, %v4171
      %v4188 = vtanh.pop %v4180
      %v4189 = vtanh.pop %v4181
      %v4190 = vtanh.pop %v4182
      %v4191 = vtanh.pop %v4183
      %v4192 = vtanh.pop %v4184
      %v4193 = vtanh.pop %v4185
      %v4194 = vtanh.pop %v4186
      %v4195 = vtanh.pop %v4187
      %4204 = vrot.lane.b32.xlu0 %v4188, 64
      %v4205 = vpop.permute.xlu0 %4204
      %4206 = vrot.lane.b32.xlu0 %v4189, 64
      %v4207 = vpop.permute.xlu0 %4206
      %4208 = vrot.lane.b32.xlu0 %v4190, 64
      %v4209 = vpop.permute.xlu0 %4208
      %4210 = vrot.lane.b32.xlu0 %v4191, 64
      %v4211 = vpop.permute.xlu0 %4210
      %4212 = vrot.lane.b32.xlu0 %v4192, 64
      %v4213 = vpop.permute.xlu0 %4212
      %4214 = vrot.lane.b32.xlu0 %v4193, 64
      %v4215 = vpop.permute.xlu0 %4214
      %4216 = vrot.lane.b32.xlu0 %v4194, 64
      %v4217 = vpop.permute.xlu0 %4216
      %4218 = vrot.lane.b32.xlu0 %v4195, 64
      %v4219 = vpop.permute.xlu0 %4218
      %v4228 = vmul.f32 %v4053, %v4205
      %v4229 = vmul.f32 %v4055, %v4207
      %v4230 = vmul.f32 %v4057, %v4209
      %v4231 = vmul.f32 %v4059, %v4211
      %v4232 = vmul.f32 %v4061, %v4213
      %v4233 = vmul.f32 %v4063, %v4215
      %v4234 = vmul.f32 %v4065, %v4217
      %v4235 = vmul.f32 %v4067, %v4219
      %v4244 = vrot.slane %v4229, 7
      %v4245 = vrot.slane %v4230, 6
      %v4246 = vsel %vm942, %v4245, %v4244
      %v4247 = vrot.slane %v4231, 5
      %v4248 = vsel %vm945, %v4247, %v4246
      %v4249 = vrot.slane %v4232, 4
      %v4250 = vsel %vm948, %v4249, %v4248
      %v4251 = vrot.slane %v4233, 3
      %v4252 = vsel %vm951, %v4251, %v4250
      %v4253 = vrot.slane %v4234, 2
      %v4254 = vsel %vm954, %v4253, %v4252
      %v4255 = vrot.slane %v4235, 1
      %v4256 = vsel %vm957, %v4255, %v4254
      %4257 = vrot.lane.b32.xlu0 %v4228, 32
      %v4258 = vpop.permute.xlu0 %4257
      %4259 = vrot.lane.b32.xlu0 %v4256, 32
      %v4260 = vpop.permute.xlu0 %4259
      %v4264 = vrot.slane %v3898, 1
      %4265 = vrot.lane.b32.xlu0 %v4264, 64
      %v4266 = vpop.permute.xlu0 %4265
      %v4268 = vsel %vm643, %v4258, %v4266
      %v4269 = vsel %vm643, %v4260, %v4266
      %vm4272 = vcmask 1040384
      %v4273 = vrot.slane %v4268, 7
      %v4274 = vrot.slane %v4269, 7
      %v4275 = vsel %vm4272, %v4273, %v4274
      %v4276 = vsel %vm966, %v4275, 0
      %4278 = vmatprep.subr.mxu0 0.0
      %4279 = vmatpush1.msra.mxu0 %v626
      %4280 = vmatprep.subr.mxu0 0.0
      %4281 = vmatpush1.msra.mxu0 %v627
      %4282 = vmatprep.subr.mxu0 0.0
      %4283 = vmatpush1.msra.mxu0 %v628
      %4284 = vmatprep.subr.mxu0 0.0
      %4285 = vmatpush1.msra.mxu0 %v629
      %4286 = vmatprep.subr.mxu0 0.0
      %4287 = vmatpush1.msra.mxu0 %v630
      %4288 = vmatprep.subr.mxu0 0.0
      %4289 = vmatpush1.msra.mxu0 %v631
      %4290 = vmatprep.subr.mxu0 0.0
      %4291 = vmatpush1.msra.mxu0 %v632
      %4292 = vmatprep.subr.mxu0 0.0
      %4293 = vmatpush1.msra.mxu0 %v633
      %4294 = vmatprep.subr.mxu0 0.0
      %4295 = vmatpush1.msra.mxu0 0.0
      %4296 = vmatprep.subr.mxu0 0.0
      %4297 = vmatpush1.msra.mxu0 0.0
      %4298 = vmatprep.subr.mxu0 0.0
      %4299 = vmatpush1.msra.mxu0 0.0
      %4300 = vmatprep.subr.mxu0 0.0
      %4301 = vmatpush1.msra.mxu0 0.0
      %4302 = vmatprep.subr.mxu0 0.0
      %4303 = vmatpush1.msra.mxu0 0.0
      %4304 = vmatprep.subr.mxu0 0.0
      %4305 = vmatpush1.msra.mxu0 0.0
      %4306 = vmatprep.subr.mxu0 0.0
      %4307 = vmatpush1.msra.mxu0 0.0
      %4308 = vmatprep.subr.mxu0 0.0
      %4309 = vmatpush1.msra.mxu0 0.0
      %4310 = vmatprep.subr.mxu0 0.0
      %4311 = vmatpush1.msra.mxu0 0.0
      %4312 = vmatprep.subr.mxu0 0.0
      %4313 = vmatpush1.msra.mxu0 0.0
      %4314 = vmatprep.subr.mxu0 0.0
      %4315 = vmatpush1.msra.mxu0 0.0
      %4316 = vmatprep.subr.mxu0 0.0
      %4317 = vmatpush1.msra.mxu0 0.0
      %4318 = vmatprep.subr.mxu0 0.0
      %4319 = vmatpush1.msra.mxu0 0.0
      %4320 = vmatprep.subr.mxu0 0.0
      %4321 = vmatpush1.msra.mxu0 0.0
      %4322 = vmatprep.subr.mxu0 0.0
      %4323 = vmatpush1.msra.mxu0 0.0
      %4324 = vmatprep.subr.mxu0 0.0
      %4325 = vmatpush1.msra.mxu0 0.0
      %4326 = vmatprep.subr.mxu0 0.0
      %4327 = vmatpush1.msra.mxu0 0.0
      %4328 = vmatprep.subr.mxu0 0.0
      %4329 = vmatpush1.msra.mxu0 0.0
      %4330 = vmatprep.subr.mxu0 0.0
      %4331 = vmatpush1.msra.mxu0 0.0
      %4332 = vmatprep.subr.mxu0 0.0
      %4333 = vmatpush1.msra.mxu0 0.0
      %4334 = vmatprep.subr.mxu0 0.0
      %4335 = vmatpush1.msra.mxu0 0.0
      %4336 = vmatprep.subr.mxu0 0.0
      %4337 = vmatpush1.msra.mxu0 0.0
      %4338 = vmatprep.subr.mxu0 0.0
      %4339 = vmatpush1.msra.mxu0 0.0
      %4340 = vmatprep.subr.mxu0 0.0
      %4341 = vmatpush1.msra.mxu0 0.0
      %4342 = vmatprep.mubr.f32.mxu0 0.0
      %4343 = vmatmul.mubr.f32.gmra.mrb[0].mxu0 %v4276
      %v4344 = vpop.f32.mrb[0].mxu0
      %v4345 = vadd.f32 %v639, %v4344
      %v4346 = vpop.f32.mrb[0].mxu0
      %4347 = vdwg.mxu0
      %v4348 = vxor.u32 %v4345, 2147483648
      %v4349 = vmul.f32 %v4348, 1.442695
      %v4350 = vpow.pop %v4349
      %v4351 = vadd.f32 %v4350, 1.0
      %v4352 = vrcp.pop %v4351
      %v4353 = vmul.f32 1.0, %v4352
      %v4354 = vtanh.pop %v4345
      %v4355 = vmul.f32 %v4353, %v3892
      %4357 = vrot.lane.b32.xlu0 %v4354, 64
      %v4358 = vpop.permute.xlu0 %4357
      %v4360 = vmul.f32 %v4353, %v4358
      %4362 = vrot.lane.b32.xlu0 %v4360, 32
      %v4363 = vpop.permute.xlu0 %4362
      %v4365 = vadd.f32 %v4355, %v4363
      %v4366 = vtanh.pop %v4365
      %4368 = vrot.lane.b32.xlu0 %v4366, 64
      %v4369 = vpop.permute.xlu0 %4368
      %v4371 = vmul.f32 %v4353, %v4369
      %v4372 = vmul.f32 %v4371, %v1070
      %4374 = vrot.lane.b32.xlu0 %v4372, 32
      %v4375 = vpop.permute.xlu0 %4374
      %v4377 = vsel %vm643, %v4375, 0.0
      %4378 = vadd.xlane.f32.xlu0 %v4377
      %v4379 = vpop.xlane.xlu0 %4378
      %v4380 = vadd.f32 %v4379, %v1084
      %4382 = vrot.lane.b32.xlu0 %v1543, 1
      %v4383 = vpop.permute.xlu0 %4382
      %4386 = vrot.lane.b32.xlu0 %v2016, 2
      %v4387 = vpop.permute.xlu0 %4386
      %4390 = vrot.lane.b32.xlu0 %v2489, 3
      %v4391 = vpop.permute.xlu0 %4390
      %4394 = vrot.lane.b32.xlu0 %v2961, 4
      %v4395 = vpop.permute.xlu0 %4394
      %4398 = vrot.lane.b32.xlu0 %v3434, 5
      %v4399 = vpop.permute.xlu0 %4398
      %4402 = vrot.lane.b32.xlu0 %v3907, 6
      %v4403 = vpop.permute.xlu0 %4402
      %4406 = vrot.lane.b32.xlu0 %v4380, 7
      %v4407 = vpop.permute.xlu0 %4406
      %vm4409 = vcmask 7168
      %v4410 = vsel %vm4409, %v1086, %v4383
      %vm4411 = vcmask 15360
      %v4412 = vsel %vm4411, %v4410, %v4387
      %vm4413 = vcmask 23552
      %v4414 = vsel %vm4413, %v4412, %v4391
      %v4415 = vsel %vm488, %v4414, %v4395
      %vm4416 = vcmask 39936
      %v4417 = vsel %vm4416, %v4415, %v4399
      %vm4418 = vcmask 48128
      %v4419 = vsel %vm4418, %v4417, %v4403
      %vm4420 = vcmask 56320
      %v4421 = vsel %vm4420, %v4419, %v4407
      %vm4422 = vcmask 64512
      %v4423 = vsel %vm4422, %v4421, -inf
      %4424 = vmax.xlane.f32.xlu0 %v4423
      %v4425 = vpop.xlane.xlu0 %4424
      %v4426 = vsub.f32 %v4421, %v4425
      %v4427 = vmul.f32 %v4426, 1.442695
      %v4428 = vpow.pop %v4427
      %v4429 = vsel %vm4422, %v4428, 0.0
      %4430 = vadd.xlane.f32.xlu0 %v4429
      %v4431 = vpop.xlane.xlu0 %4430
      %v4432 = vrcp.pop %v4431
      %v4433 = vmul.f32 %v4428, %v4432
      %4435 = vset.pattern.permute.xlu0 7
      %4436 = vperm.xlu0 %4435, %v4433
      %v4437 = vpop.permute.xlu0 %4436
      %v4439 = vmul.f32 %v4371, %v4437
      %v4440 = vld [vmem:[%s8] sm:$0xff]
      %v4441 = vld [vmem:[%s8 + $0x8] sm:$0xff]
      %v4442 = vld [vmem:[%s8 + $0x10] sm:$0xff]
      %v4443 = vld [vmem:[%s8 + $0x18] sm:$0xff]
      %v4444 = vld [vmem:[%s9] sm:$0x1]
      %v4446 = vlaneseq
      %v4447 = vshrl.u32 %v4446, 7
      %v4448 = vsub.s32 0, %v4447
      %v4449 = vrot.slane %v4444, %v4448
      %4452 = vrot.lane.b32.xlu0 %v4439, 32
      %v4453 = vpop.permute.xlu0 %4452
      %v4454 = vsel %vm643, %v4453, 0
      %4456 = vmatprep.subr.mxu0 0.0
      %4457 = vmatpush1.msra.mxu0 %v4440
      %4458 = vmatprep.subr.mxu0 0.0
      %4459 = vmatpush1.msra.mxu0 %v4441
      %4460 = vmatprep.subr.mxu0 0.0
      %4461 = vmatpush1.msra.mxu0 %v4442
      %4462 = vmatprep.subr.mxu0 0.0
      %4463 = vmatpush1.msra.mxu0 %v4443
      %4464 = vmatprep.subr.mxu0 0.0
      %4465 = vmatpush1.msra.mxu0 0.0
      %4466 = vmatprep.subr.mxu0 0.0
      %4467 = vmatpush1.msra.mxu0 0.0
      %4468 = vmatprep.subr.mxu0 0.0
      %4469 = vmatpush1.msra.mxu0 0.0
      %4470 = vmatprep.subr.mxu0 0.0
      %4471 = vmatpush1.msra.mxu0 0.0
      %4472 = vmatprep.subr.mxu0 0.0
      %4473 = vmatpush1.msra.mxu0 0.0
      %4474 = vmatprep.subr.mxu0 0.0
      %4475 = vmatpush1.msra.mxu0 0.0
      %4476 = vmatprep.subr.mxu0 0.0
      %4477 = vmatpush1.msra.mxu0 0.0
      %4478 = vmatprep.subr.mxu0 0.0
      %4479 = vmatpush1.msra.mxu0 0.0
      %4480 = vmatprep.subr.mxu0 0.0
      %4481 = vmatpush1.msra.mxu0 0.0
      %4482 = vmatprep.subr.mxu0 0.0
      %4483 = vmatpush1.msra.mxu0 0.0
      %4484 = vmatprep.subr.mxu0 0.0
      %4485 = vmatpush1.msra.mxu0 0.0
      %4486 = vmatprep.subr.mxu0 0.0
      %4487 = vmatpush1.msra.mxu0 0.0
      %4488 = vmatprep.subr.mxu0 0.0
      %4489 = vmatpush1.msra.mxu0 0.0
      %4490 = vmatprep.subr.mxu0 0.0
      %4491 = vmatpush1.msra.mxu0 0.0
      %4492 = vmatprep.subr.mxu0 0.0
      %4493 = vmatpush1.msra.mxu0 0.0
      %4494 = vmatprep.subr.mxu0 0.0
      %4495 = vmatpush1.msra.mxu0 0.0
      %4496 = vmatprep.subr.mxu0 0.0
      %4497 = vmatpush1.msra.mxu0 0.0
      %4498 = vmatprep.subr.mxu0 0.0
      %4499 = vmatpush1.msra.mxu0 0.0
      %4500 = vmatprep.subr.mxu0 0.0
      %4501 = vmatpush1.msra.mxu0 0.0
      %4502 = vmatprep.subr.mxu0 0.0
      %4503 = vmatpush1.msra.mxu0 0.0
      %4504 = vmatprep.subr.mxu0 0.0
      %4505 = vmatpush1.msra.mxu0 0.0
      %4506 = vmatprep.subr.mxu0 0.0
      %4507 = vmatpush1.msra.mxu0 0.0
      %4508 = vmatprep.subr.mxu0 0.0
      %4509 = vmatpush1.msra.mxu0 0.0
      %4510 = vmatprep.subr.mxu0 0.0
      %4511 = vmatpush1.msra.mxu0 0.0
      %4512 = vmatprep.subr.mxu0 0.0
      %4513 = vmatpush1.msra.mxu0 0.0
      %4514 = vmatprep.subr.mxu0 0.0
      %4515 = vmatpush1.msra.mxu0 0.0
      %4516 = vmatprep.subr.mxu0 0.0
      %4517 = vmatpush1.msra.mxu0 0.0
      %4518 = vmatprep.subr.mxu0 0.0
      %4519 = vmatpush1.msra.mxu0 0.0
      %4520 = vmatprep.mubr.f32.mxu0 0.0
      %4521 = vmatmul.mubr.f32.gmra.mrb[0].mxu0 %v4454
      %v4522 = vpop.f32.mrb[0].mxu0
      %v4523 = vadd.f32 %v4449, %v4522
      %v4524 = vpop.f32.mrb[0].mxu0
      %4525 = vdwg.mxu0
      %v4526 = vmax.f32 %v4523, 0.0
      %v4527 = vld [vmem:[%s10] sm:$0xff]
      %v4528 = vld [vmem:[%s10 + $0x8] sm:$0xff]
      %v4529 = vld [vmem:[%s10 + $0x10] sm:$0xff]
      %v4530 = vld [vmem:[%s10 + $0x18] sm:$0xff]
      %v4531 = vld [vmem:[%s10 + $0x20] sm:$0xff]
      %v4532 = vld [vmem:[%s10 + $0x28] sm:$0xff]
      %v4533 = vld [vmem:[%s10 + $0x30] sm:$0xff]
      %v4534 = vld [vmem:[%s10 + $0x38] sm:$0xff]
      %v4535 = vld [vmem:[%s10 + $0x40] sm:$0xff]
      %v4536 = vld [vmem:[%s10 + $0x48] sm:$0xff]
      %v4537 = vld [vmem:[%s10 + $0x50] sm:$0xff]
      %v4538 = vld [vmem:[%s10 + $0x58] sm:$0xff]
      %v4539 = vld [vmem:[%s10 + $0x60] sm:$0xff]
      %v4540 = vld [vmem:[%s10 + $0x68] sm:$0xff]
      %v4541 = vld [vmem:[%s10 + $0x70] sm:$0xff]
      %v4542 = vld [vmem:[%s10 + $0x78] sm:$0xff]
      %v4543 = vld [vmem:[%s11] sm:$0x1]
      %v4545 = vlaneseq
      %v4546 = vshrl.u32 %v4545, 7
      %v4547 = vsub.s32 0, %v4546
      %v4548 = vrot.slane %v4543, %v4547
      %4550 = vmatprep.subr.mxu0 0.0
      %4551 = vmatpush1.msra.mxu0 %v4527
      %4552 = vmatprep.subr.mxu0 0.0
      %4553 = vmatpush1.msra.mxu0 %v4528
      %4554 = vmatprep.subr.mxu0 0.0
      %4555 = vmatpush1.msra.mxu0 %v4529
      %4556 = vmatprep.subr.mxu0 0.0
      %4557 = vmatpush1.msra.mxu0 %v4530
      %4558 = vmatprep.subr.mxu0 0.0
      %4559 = vmatpush1.msra.mxu0 %v4531
      %4560 = vmatprep.subr.mxu0 0.0
      %4561 = vmatpush1.msra.mxu0 %v4532
      %4562 = vmatprep.subr.mxu0 0.0
      %4563 = vmatpush1.msra.mxu0 %v4533
      %4564 = vmatprep.subr.mxu0 0.0
      %4565 = vmatpush1.msra.mxu0 %v4534
      %4566 = vmatprep.subr.mxu0 0.0
      %4567 = vmatpush1.msra.mxu0 %v4535
      %4568 = vmatprep.subr.mxu0 0.0
      %4569 = vmatpush1.msra.mxu0 %v4536
      %4570 = vmatprep.subr.mxu0 0.0
      %4571 = vmatpush1.msra.mxu0 %v4537
      %4572 = vmatprep.subr.mxu0 0.0
      %4573 = vmatpush1.msra.mxu0 %v4538
      %4574 = vmatprep.subr.mxu0 0.0
      %4575 = vmatpush1.msra.mxu0 %v4539
      %4576 = vmatprep.subr.mxu0 0.0
      %4577 = vmatpush1.msra.mxu0 %v4540
      %4578 = vmatprep.subr.mxu0 0.0
      %4579 = vmatpush1.msra.mxu0 %v4541
      %4580 = vmatprep.subr.mxu0 0.0
      %4581 = vmatpush1.msra.mxu0 %v4542
      %4582 = vmatprep.subr.mxu0 0.0
      %4583 = vmatpush1.msra.mxu0 0.0
      %4584 = vmatprep.subr.mxu0 0.0
      %4585 = vmatpush1.msra.mxu0 0.0
      %4586 = vmatprep.subr.mxu0 0.0
      %4587 = vmatpush1.msra.mxu0 0.0
      %4588 = vmatprep.subr.mxu0 0.0
      %4589 = vmatpush1.msra.mxu0 0.0
      %4590 = vmatprep.subr.mxu0 0.0
      %4591 = vmatpush1.msra.mxu0 0.0
      %4592 = vmatprep.subr.mxu0 0.0
      %4593 = vmatpush1.msra.mxu0 0.0
      %4594 = vmatprep.subr.mxu0 0.0
      %4595 = vmatpush1.msra.mxu0 0.0
      %4596 = vmatprep.subr.mxu0 0.0
      %4597 = vmatpush1.msra.mxu0 0.0
      %4598 = vmatprep.subr.mxu0 0.0
      %4599 = vmatpush1.msra.mxu0 0.0
      %4600 = vmatprep.subr.mxu0 0.0
      %4601 = vmatpush1.msra.mxu0 0.0
      %4602 = vmatprep.subr.mxu0 0.0
      %4603 = vmatpush1.msra.mxu0 0.0
      %4604 = vmatprep.subr.mxu0 0.0
      %4605 = vmatpush1.msra.mxu0 0.0
      %4606 = vmatprep.subr.mxu0 0.0
      %4607 = vmatpush1.msra.mxu0 0.0
      %4608 = vmatprep.subr.mxu0 0.0
      %4609 = vmatpush1.msra.mxu0 0.0
      %4610 = vmatprep.subr.mxu0 0.0
      %4611 = vmatpush1.msra.mxu0 0.0
      %4612 = vmatprep.subr.mxu0 0.0
      %4613 = vmatpush1.msra.mxu0 0.0
      %4614 = vmatprep.mubr.f32.mxu0 0.0
      %4615 = vmatmul.mubr.f32.gmra.mrb[0].mxu0 %v4526
      %v4616 = vpop.f32.mrb[0].mxu0
      %v4617 = vadd.f32 %v4548, %v4616
      %v4618 = vpop.f32.mrb[0].mxu0
      %4619 = vdwg.mxu0
      %v4620 = vmax.f32 %v4617, 0.0
      %v4621 = vld [vmem:[%s12] sm:$0xff]
      %v4622 = vld [vmem:[%s12 + $0x8] sm:$0xff]
      %v4623 = vld [vmem:[%s12 + $0x10] sm:$0xff]
      %v4624 = vld [vmem:[%s12 + $0x18] sm:$0xff]
      %v4625 = vld [vmem:[%s12 + $0x20] sm:$0xff]
      %v4626 = vld [vmem:[%s12 + $0x28] sm:$0xff]
      %v4627 = vld [vmem:[%s12 + $0x30] sm:$0xff]
      %v4628 = vld [vmem:[%s12 + $0x38] sm:$0xff]
      %v4629 = vld [vmem:[#allocation3] sm:$0x1]
      %v4631 = vlaneseq
      %v4632 = vshrl.u32 %v4631, 7
      %v4633 = vsub.s32 0, %v4632
      %v4634 = vrot.slane %v4629, %v4633
      %v4637 = vsel %vm966, %v4620, 0
      %4639 = vmatprep.subr.mxu0 0.0
      %4640 = vmatpush1.msra.mxu0 %v4621
      %4641 = vmatprep.subr.mxu0 0.0
      %4642 = vmatpush1.msra.mxu0 %v4622
      %4643 = vmatprep.subr.mxu0 0.0
      %4644 = vmatpush1.msra.mxu0 %v4623
      %4645 = vmatprep.subr.mxu0 0.0
      %4646 = vmatpush1.msra.mxu0 %v4624
      %4647 = vmatprep.subr.mxu0 0.0
      %4648 = vmatpush1.msra.mxu0 %v4625
      %4649 = vmatprep.subr.mxu0 0.0
      %4650 = vmatpush1.msra.mxu0 %v4626
      %4651 = vmatprep.subr.mxu0 0.0
      %4652 = vmatpush1.msra.mxu0 %v4627
      %4653 = vmatprep.subr.mxu0 0.0
      %4654 = vmatpush1.msra.mxu0 %v4628
      %4655 = vmatprep.subr.mxu0 0.0
      %4656 = vmatpush1.msra.mxu0 0.0
      %4657 = vmatprep.subr.mxu0 0.0
      %4658 = vmatpush1.msra.mxu0 0.0
      %4659 = vmatprep.subr.mxu0 0.0
      %4660 = vmatpush1.msra.mxu0 0.0
      %4661 = vmatprep.subr.mxu0 0.0
      %4662 = vmatpush1.msra.mxu0 0.0
      %4663 = vmatprep.subr.mxu0 0.0
      %4664 = vmatpush1.msra.mxu0 0.0
      %4665 = vmatprep.subr.mxu0 0.0
      %4666 = vmatpush1.msra.mxu0 0.0
      %4667 = vmatprep.subr.mxu0 0.0
      %4668 = vmatpush1.msra.mxu0 0.0
      %4669 = vmatprep.subr.mxu0 0.0
      %4670 = vmatpush1.msra.mxu0 0.0
      %4671 = vmatprep.subr.mxu0 0.0
      %4672 = vmatpush1.msra.mxu0 0.0
      %4673 = vmatprep.subr.mxu0 0.0
      %4674 = vmatpush1.msra.mxu0 0.0
      %4675 = vmatprep.subr.mxu0 0.0
      %4676 = vmatpush1.msra.mxu0 0.0
      %4677 = vmatprep.subr.mxu0 0.0
      %4678 = vmatpush1.msra.mxu0 0.0
      %4679 = vmatprep.subr.mxu0 0.0
      %4680 = vmatpush1.msra.mxu0 0.0
      %4681 = vmatprep.subr.mxu0 0.0
      %4682 = vmatpush1.msra.mxu0 0.0
      %4683 = vmatprep.subr.mxu0 0.0
      %4684 = vmatpush1.msra.mxu0 0.0
      %4685 = vmatprep.subr.mxu0 0.0
      %4686 = vmatpush1.msra.mxu0 0.0
      %4687 = vmatprep.subr.mxu0 0.0
      %4688 = vmatpush1.msra.mxu0 0.0
      %4689 = vmatprep.subr.mxu0 0.0
      %4690 = vmatpush1.msra.mxu0 0.0
      %4691 = vmatprep.subr.mxu0 0.0
      %4692 = vmatpush1.msra.mxu0 0.0
      %4693 = vmatprep.subr.mxu0 0.0
      %4694 = vmatpush1.msra.mxu0 0.0
      %4695 = vmatprep.subr.mxu0 0.0
      %4696 = vmatpush1.msra.mxu0 0.0
      %4697 = vmatprep.subr.mxu0 0.0
      %4698 = vmatpush1.msra.mxu0 0.0
      %4699 = vmatprep.subr.mxu0 0.0
      %4700 = vmatpush1.msra.mxu0 0.0
      %4701 = vmatprep.subr.mxu0 0.0
      %4702 = vmatpush1.msra.mxu0 0.0
      %4703 = vmatprep.mubr.f32.mxu0 0.0
      %4704 = vmatmul.mubr.f32.gmra.mrb[0].mxu0 %v4637
      %v4705 = vpop.f32.mrb[0].mxu0
      %v4706 = vadd.f32 %v4634, %v4705
      %v4707 = vpop.f32.mrb[0].mxu0
      %4708 = vdwg.mxu0
      %4709 = vst.msk [vmem:[%s471] sm:$0xff] %vm4409, %v4706
      %p4710 = scmp.lt.s32.totalorder %s29, 1
      %s4711 = scalar_select %p4710, %s29, 1
      %s4712 = smul.addr %s4711, 8
      %s4713 = scalar_lea.vmem %s14, %s4712
      // Predicated region
      $region77: #{tpu_custom_call.1} parent=75 // pred_check
        %p4714 = pneg %p346
      $region78: #{tpu_custom_call.1} parent=75 // pred_check_branch
        %4716 = sbr.rel (%p4714) target = $region80
      $region79: #{tpu_custom_call.1} parent=75 // pred_region
        _
      $region80: #{tpu_custom_call.1} parent=75 // pred_fallthru
        _
    $region76: #{tpu_custom_call.1} parent=5 // pred_fallthru
      _
    %p4717 = scmp.le.s32.totalorder 2, %s24
    // Predicated region
    $region81: #{tpu_custom_call.1} parent=5 // pred_check
      %p4718 = pneg %p4717
    $region82: #{tpu_custom_call.1} parent=5 // pred_check_branch
      %4720 = sbr.rel (%p4718) target = $region84
    $region83: #{tpu_custom_call.1} parent=5 // pred_region
      %s4721 = ssub.s32 %s24, 2
      // Predicated region
      $region85: #{tpu_custom_call.1} parent=83 // pred_check
        %p4722 = pneg %p352
      $region86: #{tpu_custom_call.1} parent=83 // pred_check_branch
        %4724 = sbr.rel (%p4722) target = $region88
      $region87: #{tpu_custom_call.1} parent=83 // pred_region
        %p4725 = scmp.lt.s32.totalorder %s30, 1
        %s4726 = scalar_select %p4725, %s30, 1
        %s4727 = smul.addr %s4726, 8
        %s4728 = scalar_lea.vmem %s14, %s4727
      $region88: #{tpu_custom_call.1} parent=83 // pred_fallthru
        _
    $region84: #{tpu_custom_call.1} parent=5 // pred_fallthru
      _
  $region6: #{tpu_custom_call.1} parent=0 // loop_footer
    %s28 = sadd.s32 1, %s24
  $region7: #{tpu_custom_call.1} parent=0 // loop_footer_branch
    %23 = sbr.rel target = $region3
  $region8: #{tpu_custom_call.1} parent=0 // loop_exit
    _

</llo_original>
